<compile_context>
chip_gen: v7x
topology: tpu7x:2x2x1
jax: 0.10.0
libtpu: 0.0.40
codegen_flags: <defaults>
</compile_context>

<pallas_src>
import functools

import jax
import jax.numpy as jnp
from jax.experimental import pallas as pl
from jax.experimental.pallas import tpu as pltpu

LN_EPS = 1e-5  # torch.nn.LayerNorm default


def _round_up(n, m):
    return ((n + m - 1) // m) * m


def _pad_axis(a, axis, target):
    pad = target - a.shape[axis]
    if pad == 0:
        return a
    widths = [(0, 0)] * a.ndim
    widths[axis] = (0, pad)
    return jnp.pad(a, widths)


def _is_v7x():
    """Best-effort generation probe (only v7x has 2 TensorCores per chip)."""
    try:
        return "v7" in jax.devices()[0].device_kind.lower()
    except Exception:  # pragma: no cover - conservative fallback
        return False


def _layernorm_relu(h, gamma, beta):
    # One-pass LN in f32 (v5e has no bf16 VPU/EUP): sum(h) and sum(h*h) both
    # depend only on h, so the two lane reductions can overlap on the XLUs.
    inv_n = 1.0 / h.shape[-1]
    mu = jnp.sum(h, axis=-1, keepdims=True) * inv_n
    ms = jnp.sum(h * h, axis=-1, keepdims=True) * inv_n
    var = ms - mu * mu
    hn = (h - mu) * jax.lax.rsqrt(var + LN_EPS)
    return jnp.maximum(hn * gamma + beta, 0.0)


def actor_kernel(obs_ref, goal_ref, w1o_ref, w1g_ref, w2_ref, w3_ref, vec_ref,
                 out_ref):
    """One batch-tile of: Linear+LN+ReLU -> Linear+LN+ReLU -> Linear -> tanh."""
    hidden = w2_ref.shape[0]
    act_p = out_ref.shape[1]
    mm_dtype = w2_ref.dtype

    # Packed per-layer vectors (all f32): rows 0..6 of an (8, vec_w) slab.
    b1 = vec_ref[0:1, :hidden]
    g1 = vec_ref[1:2, :hidden]
    be1 = vec_ref[2:3, :hidden]
    b2 = vec_ref[3:4, :hidden]
    g2 = vec_ref[4:5, :hidden]
    be2 = vec_ref[5:6, :hidden]
    b3 = vec_ref[6:7, :act_p]

    obs = obs_ref[...].astype(mm_dtype)
    goal = goal_ref[...].astype(mm_dtype)

    # Linear 1 (w1 pre-split on K -> no concat) + LayerNorm + ReLU
    h = (jnp.dot(obs, w1o_ref[...], preferred_element_type=jnp.float32)
         + jnp.dot(goal, w1g_ref[...], preferred_element_type=jnp.float32)
         + b1)
    h = _layernorm_relu(h, g1, be1)

    # Linear 2 + LayerNorm + ReLU
    h = jnp.dot(h.astype(mm_dtype), w2_ref[...],
                preferred_element_type=jnp.float32) + b2
    h = _layernorm_relu(h, g2, be2)

    # Linear 3 + tanh
    o = jnp.dot(h.astype(mm_dtype), w3_ref[...],
                preferred_element_type=jnp.float32) + b3
    out_ref[...] = jnp.tanh(o).astype(out_ref.dtype)


def _const_spec(shape):
    """BlockSpec for a grid-invariant tile; single-buffered if supported."""
    idx = lambda i, _shape=shape: tuple(0 for _ in _shape)
    try:
        return pl.BlockSpec(shape, idx, pipeline_mode=pl.Buffered(1))
    except (TypeError, ValueError):
        return pl.BlockSpec(shape, idx)


def prepare_actor_params(params, state_dim, matmul_dtype=jnp.bfloat16):
    """One-time weight prep: split w1 on K, pad act dim, cast, pack vectors.

    Run this at init (NOT per forward call): the kernel is weight-bandwidth
    bound at actor batch sizes, so per-call pad/cast would 2-3x weight traffic.
    """
    hidden = params["w1"].shape[1]
    act_dim = params["w3"].shape[1]
    assert hidden % 128 == 0, (
        f"hidden={hidden} must be a multiple of 128 (lane width); padding it "
        "would change LayerNorm semantics.")
    act_p = _round_up(act_dim, 128)
    vec_w = max(hidden, act_p)

    def row(v):
        return _pad_axis(jnp.asarray(v, jnp.float32).reshape(1, -1), 1, vec_w)

    vecs = jnp.concatenate(
        [row(params["b1"]), row(params["g1"]), row(params["be1"]),
         row(params["b2"]), row(params["g2"]), row(params["be2"]),
         row(params["b3"]), jnp.zeros((1, vec_w), jnp.float32)], axis=0)

    return dict(
        w1o=params["w1"][:state_dim].astype(matmul_dtype),
        w1g=params["w1"][state_dim:].astype(matmul_dtype),
        w2=params["w2"].astype(matmul_dtype),
        w3=_pad_axis(params["w3"], 1, act_p).astype(matmul_dtype),
        vecs=vecs,
    )


@functools.partial(jax.jit, static_argnames=("act_dim", "block_b", "out_dtype"))
def actor_forward(obs, goal, prepped, act_dim, *, block_b=256, out_dtype=None):
    """obs: [B, state_dim], goal: [B, goal_dim] -> tanh(MLP(obs ++ goal)) : [B, act_dim]."""
    B, state_dim = obs.shape
    goal_dim = goal.shape[1]
    w1o, w1g, w2, w3, vecs = (prepped["w1o"], prepped["w1g"], prepped["w2"],
                              prepped["w3"], prepped["vecs"])
    hidden = w2.shape[0]
    act_p = w3.shape[1]
    vec_w = vecs.shape[1]
    mm_dtype = w2.dtype
    odt = mm_dtype if out_dtype is None else out_dtype

    # Batch tile: one big MXU-filling tile per pass.  v5e/v6e have a single
    # TensorCore so the grid is a serial loop -> never split below block_b.
    # v7x (2 TCs): split 2-way only once each half has >= 128 rows.  Tiles
    # rounded to 16 rows (bf16 sublane pack).
    tb = min(block_b, _round_up(B, 16))
    if _is_v7x() and B >= 256:
        tb = min(tb, _round_up(pl.cdiv(B, 2), 16))
    grid = (pl.cdiv(B, tb),)

    # VMEM estimate: single-buffered weights + double-buffered I/O tiles +
    # live f32 activation headroom.  No artificial floor (resident set is
    # a few MB; leave VMEM to co-resident work).
    w_sz = jnp.dtype(mm_dtype).itemsize
    o_sz = jnp.dtype(odt).itemsize
    est = ((state_dim + goal_dim) * hidden * w_sz
           + hidden * hidden * w_sz + hidden * act_p * w_sz
           + 8 * vec_w * 4
           + 2 * tb * (state_dim + goal_dim) * 4
           + 2 * tb * act_p * o_sz
           + 4 * tb * hidden * 4)
    vmem_limit = int(min(max(2 * est, 4 * 1024 * 1024), 64 * 1024 * 1024))

    out_p = pl.pallas_call(
        actor_kernel,
        out_shape=jax.ShapeDtypeStruct((B, act_p), odt),
        grid_spec=pltpu.PrefetchScalarGridSpec(
            num_scalar_prefetch=0,
            grid=grid,
            in_specs=[
                pl.BlockSpec((tb, state_dim), lambda i: (i, 0)),  # obs tile
                pl.BlockSpec((tb, goal_dim), lambda i: (i, 0)),   # goal tile
                _const_spec((state_dim, hidden)),                  # w1 (obs rows)
                _const_spec((goal_dim, hidden)),                   # w1 (goal rows)
                _const_spec((hidden, hidden)),                     # w2
                _const_spec((hidden, act_p)),                      # w3
                _const_spec((8, vec_w)),                           # b1,g1,be1,b2,g2,be2,b3
            ],
            out_specs=pl.BlockSpec((tb, act_p), lambda i: (i, 0)),
        ),
        compiler_params=pltpu.CompilerParams(
            dimension_semantics=("parallel",),
            vmem_limit_bytes=vmem_limit),
    )(obs, goal, w1o, w1g, w2, w3, vecs)

    return out_p[:, :act_dim]


def init_actor_params(key, state_dim, goal_dim, act_dim, hidden):
    """Deterministic synthetic init mimicking PyTorch Linear/LayerNorm defaults."""
    in_dim = state_dim + goal_dim
    ks = jax.random.split(key, 6)

    def linear(kw, kb, fan_in, fan_out):
        bound = 1.0 / jnp.sqrt(fan_in)
        w = jax.random.uniform(kw, (fan_in, fan_out), jnp.float32, -bound, bound)
        b = jax.random.uniform(kb, (1, fan_out), jnp.float32, -bound, bound)
        return w, b

    w1, b1 = linear(ks[0], ks[1], in_dim, hidden)
    w2, b2 = linear(ks[2], ks[3], hidden, hidden)
    w3, b3 = linear(ks[4], ks[5], hidden, act_dim)
    return dict(
        w1=w1, b1=b1,
        g1=jnp.ones((1, hidden), jnp.float32), be1=jnp.zeros((1, hidden), jnp.float32),
        w2=w2, b2=b2,
        g2=jnp.ones((1, hidden), jnp.float32), be2=jnp.zeros((1, hidden), jnp.float32),
        w3=w3, b3=b3,
    )


def actor_forward_ref(obs, goal, params, matmul_dtype=jnp.float32):
    """Pure-JAX reference for correctness checking."""
    x = jnp.concatenate([obs, goal], axis=-1)

    def ln(h, g, b):
        mu = jnp.mean(h, -1, keepdims=True)
        var = jnp.mean((h - mu) ** 2, -1, keepdims=True)
        return (h - mu) / jnp.sqrt(var + LN_EPS) * g + b

    def dot(a, w):
        return jnp.dot(a.astype(matmul_dtype), w.astype(matmul_dtype),
                       preferred_element_type=jnp.float32)

    h = jax.nn.relu(ln(dot(x, params["w1"]) + params["b1"], params["g1"], params["be1"]))
    h = jax.nn.relu(ln(dot(h, params["w2"]) + params["b2"], params["g2"], params["be2"]))
    return jnp.tanh(dot(h, params["w3"]) + params["b3"])


if __name__ == "__main__":
    # Shapes consistent with Actor(state_dim, act_dim, goal_dim, visual_perception=False);
    # hidden kept a (small) multiple of 128.
    B, STATE_DIM, GOAL_DIM, ACT_DIM, HIDDEN = 256, 64, 64, 8, 256

    key = jax.random.PRNGKey(0)
    k_obs, k_goal, k_params = jax.random.split(key, 3)

    obs = jax.random.normal(k_obs, (B, STATE_DIM), jnp.float32)
    goal = jax.random.normal(k_goal, (B, GOAL_DIM), jnp.float32)
    params = init_actor_params(k_params, STATE_DIM, GOAL_DIM, ACT_DIM, HIDDEN)

    # Hoisted one-time parameter prep (pad + cast + split + pack).
    prep_bf16 = prepare_actor_params(params, STATE_DIM, matmul_dtype=jnp.bfloat16)
    prep_f32 = prepare_actor_params(params, STATE_DIM, matmul_dtype=jnp.float32)

    # bf16-matmul path (default; bf16 output -> half the writeback bytes).
    out_bf16 = jax.block_until_ready(actor_forward(obs, goal, prep_bf16, ACT_DIM))
    ref_bf16 = actor_forward_ref(obs, goal, params, matmul_dtype=jnp.bfloat16)

    # Full-f32 path for tight numerical validation of the fused math.
    out_f32 = jax.block_until_ready(
        actor_forward(obs, goal, prep_f32, ACT_DIM, out_dtype=jnp.float32))
    ref_f32 = actor_forward_ref(obs, goal, params)

    assert out_bf16.shape == (B, ACT_DIM) and out_bf16.dtype == jnp.bfloat16
    assert out_f32.shape == (B, ACT_DIM) and out_f32.dtype == jnp.float32
    assert jnp.allclose(out_f32, ref_f32, atol=1e-3, rtol=1e-3), "f32 mismatch vs JAX reference"
    assert jnp.allclose(out_bf16.astype(jnp.float32), ref_bf16, atol=2e-2, rtol=2e-2), \
        "bf16 mismatch vs JAX reference"

    # Partial last tile (B not a multiple of the 16-row granule): LayerNorm is
    # per-row, so padded garbage rows cannot contaminate valid rows.
    B2 = 37
    out_part = jax.block_until_ready(
        actor_forward(obs[:B2], goal[:B2], prep_f32, ACT_DIM, out_dtype=jnp.float32))
    ref_part = actor_forward_ref(obs[:B2], goal[:B2], params)
    assert out_part.shape == (B2, ACT_DIM)
    assert jnp.allclose(out_part, ref_part, atol=1e-3, rtol=1e-3), "partial-tile mismatch"

    print("KERNEL_OK")
</pallas_src>

<mosaic_0001>
module attributes {stable_mosaic.version = 11 : i64} {
  func.func @actor_kernel(%arg0: i32, %arg1: memref<256x64xf32, #tpu.memory_space<vmem>>, %arg2: memref<256x64xf32, #tpu.memory_space<vmem>>, %arg3: memref<64x256xbf16, #tpu.memory_space<vmem>>, %arg4: memref<64x256xbf16, #tpu.memory_space<vmem>>, %arg5: memref<256x256xbf16, #tpu.memory_space<vmem>>, %arg6: memref<256x128xbf16, #tpu.memory_space<vmem>>, %arg7: memref<8x256xf32, #tpu.memory_space<vmem>>, %arg8: memref<256x128xbf16, #tpu.memory_space<vmem>>) attributes {dimension_semantics = [#tpu.dimension_semantics<parallel>], iteration_bounds = array<i64: 1>, scalar_prefetch = 0 : i64, scratch_operands = 0 : i64, tpu.core_type = #tpu.core_type<tc>, window_params = [{transform_indices = @transform_0, window_bounds = array<i64: 256, 64>}, {transform_indices = @transform_1, window_bounds = array<i64: 256, 64>}, {pipeline_mode = #tpu.pipeline_mode<synchronous>, transform_indices = @transform_2, window_bounds = array<i64: 64, 256>}, {pipeline_mode = #tpu.pipeline_mode<synchronous>, transform_indices = @transform_3, window_bounds = array<i64: 64, 256>}, {pipeline_mode = #tpu.pipeline_mode<synchronous>, transform_indices = @transform_4, window_bounds = array<i64: 256, 256>}, {pipeline_mode = #tpu.pipeline_mode<synchronous>, transform_indices = @transform_5, window_bounds = array<i64: 256, 128>}, {pipeline_mode = #tpu.pipeline_mode<synchronous>, transform_indices = @transform_6, window_bounds = array<i64: 8, 256>}, {transform_indices = @transform_7, window_bounds = array<i64: 256, 128>}]} {
    %c0 = arith.constant 0 : index
    %c0_0 = arith.constant 0 : index
    %0 = vector.load %arg7[%c0, %c0_0] : memref<8x256xf32, #tpu.memory_space<vmem>>, vector<1x256xf32>
    %c1 = arith.constant 1 : index
    %c0_1 = arith.constant 0 : index
    %1 = vector.load %arg7[%c1, %c0_1] : memref<8x256xf32, #tpu.memory_space<vmem>>, vector<1x256xf32>
    %c2 = arith.constant 2 : index
    %c0_2 = arith.constant 0 : index
    %2 = vector.load %arg7[%c2, %c0_2] : memref<8x256xf32, #tpu.memory_space<vmem>>, vector<1x256xf32>
    %c3 = arith.constant 3 : index
    %c0_3 = arith.constant 0 : index
    %3 = vector.load %arg7[%c3, %c0_3] : memref<8x256xf32, #tpu.memory_space<vmem>>, vector<1x256xf32>
    %c4 = arith.constant 4 : index
    %c0_4 = arith.constant 0 : index
    %4 = vector.load %arg7[%c4, %c0_4] : memref<8x256xf32, #tpu.memory_space<vmem>>, vector<1x256xf32>
    %c5 = arith.constant 5 : index
    %c0_5 = arith.constant 0 : index
    %5 = vector.load %arg7[%c5, %c0_5] : memref<8x256xf32, #tpu.memory_space<vmem>>, vector<1x256xf32>
    %c6 = arith.constant 6 : index
    %c0_6 = arith.constant 0 : index
    %6 = vector.load %arg7[%c6, %c0_6] : memref<8x256xf32, #tpu.memory_space<vmem>>, vector<1x128xf32>
    %c0_7 = arith.constant 0 : index
    %c0_8 = arith.constant 0 : index
    %7 = vector.load %arg1[%c0_7, %c0_8] : memref<256x64xf32, #tpu.memory_space<vmem>>, vector<256x64xf32>
    %8 = arith.truncf %7 : vector<256x64xf32> to vector<256x64xbf16>
    %c0_9 = arith.constant 0 : index
    %c0_10 = arith.constant 0 : index
    %9 = vector.load %arg2[%c0_9, %c0_10] : memref<256x64xf32, #tpu.memory_space<vmem>>, vector<256x64xf32>
    %10 = arith.truncf %9 : vector<256x64xf32> to vector<256x64xbf16>
    %c0_11 = arith.constant 0 : index
    %c0_12 = arith.constant 0 : index
    %11 = vector.load %arg3[%c0_11, %c0_12] : memref<64x256xbf16, #tpu.memory_space<vmem>>, vector<64x256xbf16>
    %cst = arith.constant dense<0.000000e+00> : vector<256x256xf32>
    %12 = tpu.matmul %8, %11, %cst {dimension_numbers = #tpu.dot_dimension_numbers<[1], [0], [0], [1], [0, 0, 1, 1], [], []>} : vector<256x64xbf16>, vector<64x256xbf16>, vector<256x256xf32> -> vector<256x256xf32>
    %c0_13 = arith.constant 0 : index
    %c0_14 = arith.constant 0 : index
    %13 = vector.load %arg4[%c0_13, %c0_14] : memref<64x256xbf16, #tpu.memory_space<vmem>>, vector<64x256xbf16>
    %cst_15 = arith.constant dense<0.000000e+00> : vector<256x256xf32>
    %14 = tpu.matmul %10, %13, %cst_15 {dimension_numbers = #tpu.dot_dimension_numbers<[1], [0], [0], [1], [0, 0, 1, 1], [], []>} : vector<256x64xbf16>, vector<64x256xbf16>, vector<256x256xf32> -> vector<256x256xf32>
    %15 = arith.addf %12, %14 : vector<256x256xf32>
    %16 = vector.broadcast %0 : vector<1x256xf32> to vector<256x256xf32>
    %17 = arith.addf %15, %16 : vector<256x256xf32>
    %cst_16 = arith.constant dense<0.000000e+00> : vector<256xf32>
    %18 = vector.multi_reduction <add>, %17, %cst_16 [1] : vector<256x256xf32> to vector<256xf32>
    %19 = vector.shape_cast %18 : vector<256xf32> to vector<256x1xf32>
    %cst_17 = arith.constant 3.906250e-03 : f32
    %20 = vector.broadcast %cst_17 : f32 to vector<256x1xf32>
    %21 = arith.mulf %19, %20 : vector<256x1xf32>
    %22 = arith.mulf %17, %17 : vector<256x256xf32>
    %cst_18 = arith.constant dense<0.000000e+00> : vector<256xf32>
    %23 = vector.multi_reduction <add>, %22, %cst_18 [1] : vector<256x256xf32> to vector<256xf32>
    %24 = vector.shape_cast %23 : vector<256xf32> to vector<256x1xf32>
    %cst_19 = arith.constant 3.906250e-03 : f32
    %25 = vector.broadcast %cst_19 : f32 to vector<256x1xf32>
    %26 = arith.mulf %24, %25 : vector<256x1xf32>
    %27 = arith.mulf %21, %21 : vector<256x1xf32>
    %28 = arith.subf %26, %27 : vector<256x1xf32>
    %29 = vector.broadcast %21 : vector<256x1xf32> to vector<256x256xf32>
    %30 = arith.subf %17, %29 : vector<256x256xf32>
    %cst_20 = arith.constant 9.99999974E-6 : f32
    %31 = vector.broadcast %cst_20 : f32 to vector<256x1xf32>
    %32 = arith.addf %28, %31 : vector<256x1xf32>
    %33 = math.rsqrt %32 : vector<256x1xf32>
    %34 = vector.broadcast %33 : vector<256x1xf32> to vector<256x256xf32>
    %35 = arith.mulf %30, %34 : vector<256x256xf32>
    %36 = vector.broadcast %1 : vector<1x256xf32> to vector<256x256xf32>
    %37 = arith.mulf %35, %36 : vector<256x256xf32>
    %38 = vector.broadcast %2 : vector<1x256xf32> to vector<256x256xf32>
    %39 = arith.addf %37, %38 : vector<256x256xf32>
    %cst_21 = arith.constant 0.000000e+00 : f32
    %40 = vector.broadcast %cst_21 : f32 to vector<256x256xf32>
    %41 = arith.maximumf %39, %40 : vector<256x256xf32>
    %42 = arith.truncf %41 : vector<256x256xf32> to vector<256x256xbf16>
    %c0_22 = arith.constant 0 : index
    %c0_23 = arith.constant 0 : index
    %43 = vector.load %arg5[%c0_22, %c0_23] : memref<256x256xbf16, #tpu.memory_space<vmem>>, vector<256x256xbf16>
    %cst_24 = arith.constant dense<0.000000e+00> : vector<256x256xf32>
    %44 = tpu.matmul %42, %43, %cst_24 {dimension_numbers = #tpu.dot_dimension_numbers<[1], [0], [0], [1], [0, 0, 1, 1], [], []>} : vector<256x256xbf16>, vector<256x256xbf16>, vector<256x256xf32> -> vector<256x256xf32>
    %45 = vector.broadcast %3 : vector<1x256xf32> to vector<256x256xf32>
    %46 = arith.addf %44, %45 : vector<256x256xf32>
    %cst_25 = arith.constant dense<0.000000e+00> : vector<256xf32>
    %47 = vector.multi_reduction <add>, %46, %cst_25 [1] : vector<256x256xf32> to vector<256xf32>
    %48 = vector.shape_cast %47 : vector<256xf32> to vector<256x1xf32>
    %cst_26 = arith.constant 3.906250e-03 : f32
    %49 = vector.broadcast %cst_26 : f32 to vector<256x1xf32>
    %50 = arith.mulf %48, %49 : vector<256x1xf32>
    %51 = arith.mulf %46, %46 : vector<256x256xf32>
    %cst_27 = arith.constant dense<0.000000e+00> : vector<256xf32>
    %52 = vector.multi_reduction <add>, %51, %cst_27 [1] : vector<256x256xf32> to vector<256xf32>
    %53 = vector.shape_cast %52 : vector<256xf32> to vector<256x1xf32>
    %cst_28 = arith.constant 3.906250e-03 : f32
    %54 = vector.broadcast %cst_28 : f32 to vector<256x1xf32>
    %55 = arith.mulf %53, %54 : vector<256x1xf32>
    %56 = arith.mulf %50, %50 : vector<256x1xf32>
    %57 = arith.subf %55, %56 : vector<256x1xf32>
    %58 = vector.broadcast %50 : vector<256x1xf32> to vector<256x256xf32>
    %59 = arith.subf %46, %58 : vector<256x256xf32>
    %cst_29 = arith.constant 9.99999974E-6 : f32
    %60 = vector.broadcast %cst_29 : f32 to vector<256x1xf32>
    %61 = arith.addf %57, %60 : vector<256x1xf32>
    %62 = math.rsqrt %61 : vector<256x1xf32>
    %63 = vector.broadcast %62 : vector<256x1xf32> to vector<256x256xf32>
    %64 = arith.mulf %59, %63 : vector<256x256xf32>
    %65 = vector.broadcast %4 : vector<1x256xf32> to vector<256x256xf32>
    %66 = arith.mulf %64, %65 : vector<256x256xf32>
    %67 = vector.broadcast %5 : vector<1x256xf32> to vector<256x256xf32>
    %68 = arith.addf %66, %67 : vector<256x256xf32>
    %cst_30 = arith.constant 0.000000e+00 : f32
    %69 = vector.broadcast %cst_30 : f32 to vector<256x256xf32>
    %70 = arith.maximumf %68, %69 : vector<256x256xf32>
    %71 = arith.truncf %70 : vector<256x256xf32> to vector<256x256xbf16>
    %c0_31 = arith.constant 0 : index
    %c0_32 = arith.constant 0 : index
    %72 = vector.load %arg6[%c0_31, %c0_32] : memref<256x128xbf16, #tpu.memory_space<vmem>>, vector<256x128xbf16>
    %cst_33 = arith.constant dense<0.000000e+00> : vector<256x128xf32>
    %73 = tpu.matmul %71, %72, %cst_33 {dimension_numbers = #tpu.dot_dimension_numbers<[1], [0], [0], [1], [0, 0, 1, 1], [], []>} : vector<256x256xbf16>, vector<256x128xbf16>, vector<256x128xf32> -> vector<256x128xf32>
    %74 = vector.broadcast %6 : vector<1x128xf32> to vector<256x128xf32>
    %75 = arith.addf %73, %74 : vector<256x128xf32>
    %76 = math.tanh %75 : vector<256x128xf32>
    %77 = arith.truncf %76 : vector<256x128xf32> to vector<256x128xbf16>
    %c0_34 = arith.constant 0 : index
    %c0_35 = arith.constant 0 : index
    %78 = vector.load %arg8[%c0_34, %c0_35] : memref<256x128xbf16, #tpu.memory_space<vmem>>, vector<256x128xbf16>
    tpu.vector_store %arg8[%c0_34, %c0_35], %77 {strides = array<i32>} : memref<256x128xbf16, #tpu.memory_space<vmem>>, vector<256x128xbf16>,
    return
  }
  func.func @transform_0(%arg0: i32) -> (i32, i32) {
    %c0_i32 = arith.constant 0 : i32
    %c0_i32_0 = arith.constant 0 : i32
    return %arg0, %c0_i32 : i32, i32
  }
  func.func @transform_1(%arg0: i32) -> (i32, i32) {
    %c0_i32 = arith.constant 0 : i32
    %c0_i32_0 = arith.constant 0 : i32
    return %arg0, %c0_i32 : i32, i32
  }
  func.func @transform_2(%arg0: i32) -> (i32, i32) {
    %c0_i32 = arith.constant 0 : i32
    %c0_i32_0 = arith.constant 0 : i32
    %c0_i32_1 = arith.constant 0 : i32
    return %c0_i32, %c0_i32_0 : i32, i32
  }
  func.func @transform_3(%arg0: i32) -> (i32, i32) {
    %c0_i32 = arith.constant 0 : i32
    %c0_i32_0 = arith.constant 0 : i32
    %c0_i32_1 = arith.constant 0 : i32
    return %c0_i32, %c0_i32_0 : i32, i32
  }
  func.func @transform_4(%arg0: i32) -> (i32, i32) {
    %c0_i32 = arith.constant 0 : i32
    %c0_i32_0 = arith.constant 0 : i32
    %c0_i32_1 = arith.constant 0 : i32
    return %c0_i32, %c0_i32_0 : i32, i32
  }
  func.func @transform_5(%arg0: i32) -> (i32, i32) {
    %c0_i32 = arith.constant 0 : i32
    %c0_i32_0 = arith.constant 0 : i32
    %c0_i32_1 = arith.constant 0 : i32
    return %c0_i32, %c0_i32_0 : i32, i32
  }
  func.func @transform_6(%arg0: i32) -> (i32, i32) {
    %c0_i32 = arith.constant 0 : i32
    %c0_i32_0 = arith.constant 0 : i32
    %c0_i32_1 = arith.constant 0 : i32
    return %c0_i32, %c0_i32_0 : i32, i32
  }
  func.func @transform_7(%arg0: i32) -> (i32, i32) {
    %c0_i32 = arith.constant 0 : i32
    %c0_i32_0 = arith.constant 0 : i32
    return %arg0, %c0_i32 : i32, i32
  }
}

</mosaic_0001>

<llo_original>
// kernel: actor_forward.1
$region0: #{actor_forward.1}
  #allocation0 [shape = 'u32[]', space=smem, size = 0x4, offset = 0x4, fixed_abs, tag = 'smem constant byte address 0x4 - core index']
  #allocation1 [shape = 'u32[144,128]{1,0:T(1,128)}', space=vmem, size = 0x12000, scoped, tag = 'internal scratch']
  %s0 = inlined_call_operand.vmem [shape: f32[256,64], index: 0, kind: input, shape index: {}]
  %s1 = inlined_call_operand.vmem [shape: f32[256,64], index: 1, kind: input, shape index: {}]
  %s2 = inlined_call_operand.vmem [shape: bf16[64,256], index: 2, kind: input, shape index: {}]
  %s3 = inlined_call_operand.vmem [shape: bf16[64,256], index: 3, kind: input, shape index: {}]
  %s4 = inlined_call_operand.vmem [shape: bf16[256,256], index: 4, kind: input, shape index: {}]
  %s5 = inlined_call_operand.vmem [shape: bf16[256,128], index: 5, kind: input, shape index: {}]
  %s6 = inlined_call_operand.vmem [shape: f32[8,256], index: 6, kind: input, shape index: {}]
  %s7 = inlined_call_operand.vmem [shape: bf16[256,128], index: 7, kind: output, shape index: {}]
  %s8 = sld [smem:[#allocation0]]
  $region38: #{actor_forward.1} parent=0
    _
  %s10 = ssub.s32 1, %s8
  %s11 = scalar_select 0, %s10, %s8
  // Predicated region
  $region2: #{actor_forward.1} parent=0 // pred_check
    _
  $region3: #{actor_forward.1} parent=0 // pred_check_branch
    %13 = sbr.rel (0) target = $region5
  $region4: #{actor_forward.1} parent=0 // pred_region
    _
  $region5: #{actor_forward.1} parent=0 // pred_fallthru
    _
  // Predicated region
  $region6: #{actor_forward.1} parent=0 // pred_check
    _
  $region7: #{actor_forward.1} parent=0 // pred_check_branch
    %15 = sbr.rel (0) target = $region9
  $region8: #{actor_forward.1} parent=0 // pred_region
    _
  $region9: #{actor_forward.1} parent=0 // pred_fallthru
    _
  // Predicated region
  $region10: #{actor_forward.1} parent=0 // pred_check
    _
  $region11: #{actor_forward.1} parent=0 // pred_check_branch
    %17 = sbr.rel (0) target = $region13
  $region12: #{actor_forward.1} parent=0 // pred_region
    _
  $region13: #{actor_forward.1} parent=0 // pred_fallthru
    _
  // Predicated region
  $region14: #{actor_forward.1} parent=0 // pred_check
    _
  $region15: #{actor_forward.1} parent=0 // pred_check_branch
    %19 = sbr.rel (0) target = $region17
  $region16: #{actor_forward.1} parent=0 // pred_region
    _
  $region17: #{actor_forward.1} parent=0 // pred_fallthru
    _
  // Predicated region
  $region18: #{actor_forward.1} parent=0 // pred_check
    _
  $region19: #{actor_forward.1} parent=0 // pred_check_branch
    %21 = sbr.rel (0) target = $region21
  $region20: #{actor_forward.1} parent=0 // pred_region
    _
  $region21: #{actor_forward.1} parent=0 // pred_fallthru
    _
  // Predicated region
  $region22: #{actor_forward.1} parent=0 // pred_check
    _
  $region23: #{actor_forward.1} parent=0 // pred_check_branch
    %23 = sbr.rel (0) target = $region25
  $region24: #{actor_forward.1} parent=0 // pred_region
    _
  $region25: #{actor_forward.1} parent=0 // pred_fallthru
    _
  // Predicated region
  $region26: #{actor_forward.1} parent=0 // pred_check
    _
  $region27: #{actor_forward.1} parent=0 // pred_check_branch
    %25 = sbr.rel (0) target = $region29
  $region28: #{actor_forward.1} parent=0 // pred_region
    _
  $region29: #{actor_forward.1} parent=0 // pred_fallthru
    _
  %v27 = vld [vmem:[%s6] ss:$8 sm:$0x3]
  %s28 = scalar_lea.vmem %s6, 1
  %v29 = vld [vmem:[%s28] ss:$8 sm:$0x3]
  %s30 = scalar_lea.vmem %s6, 2
  %v31 = vld [vmem:[%s30] ss:$8 sm:$0x3]
  %s32 = scalar_lea.vmem %s6, 3
  %v33 = vld [vmem:[%s32] ss:$8 sm:$0x3]
  %s34 = scalar_lea.vmem %s6, 4
  %v35 = vld [vmem:[%s34] ss:$8 sm:$0x3]
  %s36 = scalar_lea.vmem %s6, 5
  %v37 = vld [vmem:[%s36] ss:$8 sm:$0x3]
  %v38 = vld [vmem:[%s6 + $0x6] ss:$0 sm:$0xff]
  %v39 = vld [vmem:[%s0] sm:$0xff]
  %v40 = vld [vmem:[%s0 + $0x8] sm:$0xff]
  %v41 = vld [vmem:[%s0 + $0x10] sm:$0xff]
  %v42 = vld [vmem:[%s0 + $0x18] sm:$0xff]
  %v43 = vld [vmem:[%s0 + $0x20] sm:$0xff]
  %v44 = vld [vmem:[%s0 + $0x28] sm:$0xff]
  %v45 = vld [vmem:[%s0 + $0x30] sm:$0xff]
  %v46 = vld [vmem:[%s0 + $0x38] sm:$0xff]
  %v47 = vld [vmem:[%s0 + $0x40] sm:$0xff]
  %v48 = vld [vmem:[%s0 + $0x48] sm:$0xff]
  %v49 = vld [vmem:[%s0 + $0x50] sm:$0xff]
  %v50 = vld [vmem:[%s0 + $0x58] sm:$0xff]
  %v51 = vld [vmem:[%s0 + $0x60] sm:$0xff]
  %v52 = vld [vmem:[%s0 + $0x68] sm:$0xff]
  %v53 = vld [vmem:[%s0 + $0x70] sm:$0xff]
  %v54 = vld [vmem:[%s0 + $0x78] sm:$0xff]
  %v55 = vld [vmem:[%s0 + $0x80] sm:$0xff]
  %v56 = vld [vmem:[%s0 + $0x88] sm:$0xff]
  %v57 = vld [vmem:[%s0 + $0x90] sm:$0xff]
  %v58 = vld [vmem:[%s0 + $0x98] sm:$0xff]
  %v59 = vld [vmem:[%s0 + $0xa0] sm:$0xff]
  %v60 = vld [vmem:[%s0 + $0xa8] sm:$0xff]
  %v61 = vld [vmem:[%s0 + $0xb0] sm:$0xff]
  %v62 = vld [vmem:[%s0 + $0xb8] sm:$0xff]
  %v63 = vld [vmem:[%s0 + $0xc0] sm:$0xff]
  %v64 = vld [vmem:[%s0 + $0xc8] sm:$0xff]
  %v65 = vld [vmem:[%s0 + $0xd0] sm:$0xff]
  %v66 = vld [vmem:[%s0 + $0xd8] sm:$0xff]
  %v67 = vld [vmem:[%s0 + $0xe0] sm:$0xff]
  %v68 = vld [vmem:[%s0 + $0xe8] sm:$0xff]
  %v69 = vld [vmem:[%s0 + $0xf0] sm:$0xff]
  %v70 = vld [vmem:[%s0 + $0xf8] sm:$0xff]
  %v71 = vpack.c.bf16 %v40, %v39
  %v72 = vpack.c.bf16 %v42, %v41
  %v73 = vpack.c.bf16 %v44, %v43
  %v74 = vpack.c.bf16 %v46, %v45
  %v75 = vpack.c.bf16 %v48, %v47
  %v76 = vpack.c.bf16 %v50, %v49
  %v77 = vpack.c.bf16 %v52, %v51
  %v78 = vpack.c.bf16 %v54, %v53
  %v79 = vpack.c.bf16 %v56, %v55
  %v80 = vpack.c.bf16 %v58, %v57
  %v81 = vpack.c.bf16 %v60, %v59
  %v82 = vpack.c.bf16 %v62, %v61
  %v83 = vpack.c.bf16 %v64, %v63
  %v84 = vpack.c.bf16 %v66, %v65
  %v85 = vpack.c.bf16 %v68, %v67
  %v86 = vpack.c.bf16 %v70, %v69
  %v87 = vld [vmem:[%s1] sm:$0xff]
  %v88 = vld [vmem:[%s1 + $0x8] sm:$0xff]
  %v89 = vld [vmem:[%s1 + $0x10] sm:$0xff]
  %v90 = vld [vmem:[%s1 + $0x18] sm:$0xff]
  %v91 = vld [vmem:[%s1 + $0x20] sm:$0xff]
  %v92 = vld [vmem:[%s1 + $0x28] sm:$0xff]
  %v93 = vld [vmem:[%s1 + $0x30] sm:$0xff]
  %v94 = vld [vmem:[%s1 + $0x38] sm:$0xff]
  %v95 = vld [vmem:[%s1 + $0x40] sm:$0xff]
  %v96 = vld [vmem:[%s1 + $0x48] sm:$0xff]
  %v97 = vld [vmem:[%s1 + $0x50] sm:$0xff]
  %v98 = vld [vmem:[%s1 + $0x58] sm:$0xff]
  %v99 = vld [vmem:[%s1 + $0x60] sm:$0xff]
  %v100 = vld [vmem:[%s1 + $0x68] sm:$0xff]
  %v101 = vld [vmem:[%s1 + $0x70] sm:$0xff]
  %v102 = vld [vmem:[%s1 + $0x78] sm:$0xff]
  %v103 = vld [vmem:[%s1 + $0x80] sm:$0xff]
  %v104 = vld [vmem:[%s1 + $0x88] sm:$0xff]
  %v105 = vld [vmem:[%s1 + $0x90] sm:$0xff]
  %v106 = vld [vmem:[%s1 + $0x98] sm:$0xff]
  %v107 = vld [vmem:[%s1 + $0xa0] sm:$0xff]
  %v108 = vld [vmem:[%s1 + $0xa8] sm:$0xff]
  %v109 = vld [vmem:[%s1 + $0xb0] sm:$0xff]
  %v110 = vld [vmem:[%s1 + $0xb8] sm:$0xff]
  %v111 = vld [vmem:[%s1 + $0xc0] sm:$0xff]
  %v112 = vld [vmem:[%s1 + $0xc8] sm:$0xff]
  %v113 = vld [vmem:[%s1 + $0xd0] sm:$0xff]
  %v114 = vld [vmem:[%s1 + $0xd8] sm:$0xff]
  %v115 = vld [vmem:[%s1 + $0xe0] sm:$0xff]
  %v116 = vld [vmem:[%s1 + $0xe8] sm:$0xff]
  %v117 = vld [vmem:[%s1 + $0xf0] sm:$0xff]
  %v118 = vld [vmem:[%s1 + $0xf8] sm:$0xff]
  %v119 = vpack.c.bf16 %v88, %v87
  %v120 = vpack.c.bf16 %v90, %v89
  %v121 = vpack.c.bf16 %v92, %v91
  %v122 = vpack.c.bf16 %v94, %v93
  %v123 = vpack.c.bf16 %v96, %v95
  %v124 = vpack.c.bf16 %v98, %v97
  %v125 = vpack.c.bf16 %v100, %v99
  %v126 = vpack.c.bf16 %v102, %v101
  %v127 = vpack.c.bf16 %v104, %v103
  %v128 = vpack.c.bf16 %v106, %v105
  %v129 = vpack.c.bf16 %v108, %v107
  %v130 = vpack.c.bf16 %v110, %v109
  %v131 = vpack.c.bf16 %v112, %v111
  %v132 = vpack.c.bf16 %v114, %v113
  %v133 = vpack.c.bf16 %v116, %v115
  %v134 = vpack.c.bf16 %v118, %v117
  %v135 = vld [vmem:[%s2] sm:$0xff]
  %v136 = vld [vmem:[%s2 + $0x8] sm:$0xff]
  %v137 = vld [vmem:[%s2 + $0x10] sm:$0xff]
  %v138 = vld [vmem:[%s2 + $0x18] sm:$0xff]
  %v139 = vld [vmem:[%s2 + $0x20] sm:$0xff]
  %v140 = vld [vmem:[%s2 + $0x28] sm:$0xff]
  %v141 = vld [vmem:[%s2 + $0x30] sm:$0xff]
  %v142 = vld [vmem:[%s2 + $0x38] sm:$0xff]
  %v143 = vld [vmem:[%s3] sm:$0xff]
  %v144 = vld [vmem:[%s3 + $0x8] sm:$0xff]
  %v145 = vld [vmem:[%s3 + $0x10] sm:$0xff]
  %v146 = vld [vmem:[%s3 + $0x18] sm:$0xff]
  %v147 = vld [vmem:[%s3 + $0x20] sm:$0xff]
  %v148 = vld [vmem:[%s3 + $0x28] sm:$0xff]
  %v149 = vld [vmem:[%s3 + $0x30] sm:$0xff]
  %v150 = vld [vmem:[%s3 + $0x38] sm:$0xff]
  %v159 = vunpack.c.l.b16 %v143
  %v160 = vunpack.c.h.b16 %v143
  %v161 = vunpack.c.l.b16 %v144
  %v162 = vunpack.c.h.b16 %v144
  %v163 = vunpack.c.l.b16 %v145
  %v164 = vunpack.c.h.b16 %v145
  %v165 = vunpack.c.l.b16 %v146
  %v166 = vunpack.c.h.b16 %v146
  %v167 = vunpack.c.l.b16 %v147
  %v168 = vunpack.c.h.b16 %v147
  %v169 = vunpack.c.l.b16 %v148
  %v170 = vunpack.c.h.b16 %v148
  %v171 = vunpack.c.l.b16 %v149
  %v172 = vunpack.c.h.b16 %v149
  %v173 = vunpack.c.l.b16 %v150
  %v174 = vunpack.c.h.b16 %v150
  %v175 = vpack.c.b16 %v161, %v159
  %v176 = vpack.c.b16 %v162, %v160
  %v177 = vpack.c.b16 %v165, %v163
  %v178 = vpack.c.b16 %v166, %v164
  %v179 = vpack.c.b16 %v169, %v167
  %v180 = vpack.c.b16 %v170, %v168
  %v181 = vpack.c.b16 %v173, %v171
  %v182 = vpack.c.b16 %v174, %v172
  %vm191 = vcmask 523264
  %v193 = vsel %vm191, %v119, 0
  %v196 = vsel %vm191, %v120, 0
  %v199 = vsel %vm191, %v121, 0
  %v202 = vsel %vm191, %v122, 0
  %v205 = vsel %vm191, %v123, 0
  %v208 = vsel %vm191, %v124, 0
  %v211 = vsel %vm191, %v125, 0
  %v214 = vsel %vm191, %v126, 0
  %v217 = vsel %vm191, %v127, 0
  %v220 = vsel %vm191, %v128, 0
  %v223 = vsel %vm191, %v129, 0
  %v226 = vsel %vm191, %v130, 0
  %v229 = vsel %vm191, %v131, 0
  %v232 = vsel %vm191, %v132, 0
  %v235 = vsel %vm191, %v133, 0
  %v238 = vsel %vm191, %v134, 0
  %240 = vmatprep.subr.bf16.mxu0 %v176
  %241 = vmatpush1.bf16.msra.mxu0 %v175
  %242 = vmatprep.subr.bf16.mxu0 %v178
  %243 = vmatpush1.bf16.msra.mxu0 %v177
  %244 = vmatprep.subr.bf16.mxu0 %v180
  %245 = vmatpush1.bf16.msra.mxu0 %v179
  %246 = vmatprep.subr.bf16.mxu0 %v182
  %247 = vmatpush1.bf16.msra.mxu0 %v181
  %248 = vmatprep.subr.bf16.mxu0 0
  %249 = vmatpush1.bf16.msra.mxu0 0
  %250 = vmatprep.subr.bf16.mxu0 0
  %251 = vmatpush1.bf16.msra.mxu0 0
  %252 = vmatprep.subr.bf16.mxu0 0
  %253 = vmatpush1.bf16.msra.mxu0 0
  %254 = vmatprep.subr.bf16.mxu0 0
  %255 = vmatpush1.bf16.msra.mxu0 0
  %256 = vmatprep.subr.bf16.mxu0 0
  %257 = vmatpush1.bf16.msra.mxu0 0
  %258 = vmatprep.subr.bf16.mxu0 0
  %259 = vmatpush1.bf16.msra.mxu0 0
  %260 = vmatprep.subr.bf16.mxu0 0
  %261 = vmatpush1.bf16.msra.mxu0 0
  %262 = vmatprep.subr.bf16.mxu0 0
  %263 = vmatpush1.bf16.msra.mxu0 0
  %264 = vmatprep.subr.bf16.mxu0 0
  %265 = vmatpush1.bf16.msra.mxu0 0
  %266 = vmatprep.subr.bf16.mxu0 0
  %267 = vmatpush1.bf16.msra.mxu0 0
  %268 = vmatprep.subr.bf16.mxu0 0
  %269 = vmatpush1.bf16.msra.mxu0 0
  %270 = vmatprep.subr.bf16.mxu0 0
  %271 = vmatpush1.bf16.msra.mxu0 0
  %272 = vmatprep.mubr.bf16.mxu0 0
  %273 = vmatmul.mubr.bf16.gmra.mrb[0].mxu0 %v193
  %v274 = vpop.f32.mrb[0].mxu0
  %v275 = vadd.f32 0.0, %v274
  %v276 = vpop.f32.mrb[0].mxu0
  %v277 = vadd.f32 0.0, %v276
  %v278 = vpop.f32.mrb[0].mxu0
  %v279 = vadd.f32 0.0, %v278
  %v280 = vpop.f32.mrb[0].mxu0
  %v281 = vadd.f32 0.0, %v280
  %282 = vmatprep.mubr.bf16.mxu0 0
  %283 = vmatmul.mubr.bf16.gmra.mrb[0].mxu0 %v196
  %v284 = vpop.f32.mrb[0].mxu0
  %v285 = vadd.f32 0.0, %v284
  %v286 = vpop.f32.mrb[0].mxu0
  %v287 = vadd.f32 0.0, %v286
  %v288 = vpop.f32.mrb[0].mxu0
  %v289 = vadd.f32 0.0, %v288
  %v290 = vpop.f32.mrb[0].mxu0
  %v291 = vadd.f32 0.0, %v290
  %292 = vmatprep.mubr.bf16.mxu0 0
  %293 = vmatmul.mubr.bf16.gmra.mrb[0].mxu0 %v199
  %v294 = vpop.f32.mrb[0].mxu0
  %v295 = vadd.f32 0.0, %v294
  %v296 = vpop.f32.mrb[0].mxu0
  %v297 = vadd.f32 0.0, %v296
  %v298 = vpop.f32.mrb[0].mxu0
  %v299 = vadd.f32 0.0, %v298
  %v300 = vpop.f32.mrb[0].mxu0
  %v301 = vadd.f32 0.0, %v300
  %302 = vmatprep.mubr.bf16.mxu0 0
  %303 = vmatmul.mubr.bf16.gmra.mrb[0].mxu0 %v202
  %v304 = vpop.f32.mrb[0].mxu0
  %v305 = vadd.f32 0.0, %v304
  %v306 = vpop.f32.mrb[0].mxu0
  %v307 = vadd.f32 0.0, %v306
  %v308 = vpop.f32.mrb[0].mxu0
  %v309 = vadd.f32 0.0, %v308
  %v310 = vpop.f32.mrb[0].mxu0
  %v311 = vadd.f32 0.0, %v310
  %312 = vmatprep.mubr.bf16.mxu0 0
  %313 = vmatmul.mubr.bf16.gmra.mrb[0].mxu0 %v205
  %v314 = vpop.f32.mrb[0].mxu0
  %v315 = vadd.f32 0.0, %v314
  %v316 = vpop.f32.mrb[0].mxu0
  %v317 = vadd.f32 0.0, %v316
  %v318 = vpop.f32.mrb[0].mxu0
  %v319 = vadd.f32 0.0, %v318
  %v320 = vpop.f32.mrb[0].mxu0
  %v321 = vadd.f32 0.0, %v320
  %322 = vmatprep.mubr.bf16.mxu0 0
  %323 = vmatmul.mubr.bf16.gmra.mrb[0].mxu0 %v208
  %v324 = vpop.f32.mrb[0].mxu0
  %v325 = vadd.f32 0.0, %v324
  %v326 = vpop.f32.mrb[0].mxu0
  %v327 = vadd.f32 0.0, %v326
  %v328 = vpop.f32.mrb[0].mxu0
  %v329 = vadd.f32 0.0, %v328
  %v330 = vpop.f32.mrb[0].mxu0
  %v331 = vadd.f32 0.0, %v330
  %332 = vmatprep.mubr.bf16.mxu0 0
  %333 = vmatmul.mubr.bf16.gmra.mrb[0].mxu0 %v211
  %v334 = vpop.f32.mrb[0].mxu0
  %v335 = vadd.f32 0.0, %v334
  %v336 = vpop.f32.mrb[0].mxu0
  %v337 = vadd.f32 0.0, %v336
  %v338 = vpop.f32.mrb[0].mxu0
  %v339 = vadd.f32 0.0, %v338
  %v340 = vpop.f32.mrb[0].mxu0
  %v341 = vadd.f32 0.0, %v340
  %342 = vmatprep.mubr.bf16.mxu0 0
  %343 = vmatmul.mubr.bf16.gmra.mrb[0].mxu0 %v214
  %v344 = vpop.f32.mrb[0].mxu0
  %v345 = vadd.f32 0.0, %v344
  %v346 = vpop.f32.mrb[0].mxu0
  %v347 = vadd.f32 0.0, %v346
  %v348 = vpop.f32.mrb[0].mxu0
  %v349 = vadd.f32 0.0, %v348
  %v350 = vpop.f32.mrb[0].mxu0
  %v351 = vadd.f32 0.0, %v350
  %352 = vmatprep.mubr.bf16.mxu0 0
  %353 = vmatmul.mubr.bf16.gmra.mrb[0].mxu0 %v217
  %v354 = vpop.f32.mrb[0].mxu0
  %v355 = vadd.f32 0.0, %v354
  %v356 = vpop.f32.mrb[0].mxu0
  %v357 = vadd.f32 0.0, %v356
  %v358 = vpop.f32.mrb[0].mxu0
  %v359 = vadd.f32 0.0, %v358
  %v360 = vpop.f32.mrb[0].mxu0
  %v361 = vadd.f32 0.0, %v360
  %362 = vmatprep.mubr.bf16.mxu0 0
  %363 = vmatmul.mubr.bf16.gmra.mrb[0].mxu0 %v220
  %v364 = vpop.f32.mrb[0].mxu0
  %v365 = vadd.f32 0.0, %v364
  %v366 = vpop.f32.mrb[0].mxu0
  %v367 = vadd.f32 0.0, %v366
  %v368 = vpop.f32.mrb[0].mxu0
  %v369 = vadd.f32 0.0, %v368
  %v370 = vpop.f32.mrb[0].mxu0
  %v371 = vadd.f32 0.0, %v370
  %372 = vmatprep.mubr.bf16.mxu0 0
  %373 = vmatmul.mubr.bf16.gmra.mrb[0].mxu0 %v223
  %v374 = vpop.f32.mrb[0].mxu0
  %v375 = vadd.f32 0.0, %v374
  %v376 = vpop.f32.mrb[0].mxu0
  %v377 = vadd.f32 0.0, %v376
  %v378 = vpop.f32.mrb[0].mxu0
  %v379 = vadd.f32 0.0, %v378
  %v380 = vpop.f32.mrb[0].mxu0
  %v381 = vadd.f32 0.0, %v380
  %382 = vmatprep.mubr.bf16.mxu0 0
  %383 = vmatmul.mubr.bf16.gmra.mrb[0].mxu0 %v226
  %v384 = vpop.f32.mrb[0].mxu0
  %v385 = vadd.f32 0.0, %v384
  %v386 = vpop.f32.mrb[0].mxu0
  %v387 = vadd.f32 0.0, %v386
  %v388 = vpop.f32.mrb[0].mxu0
  %v389 = vadd.f32 0.0, %v388
  %v390 = vpop.f32.mrb[0].mxu0
  %v391 = vadd.f32 0.0, %v390
  %392 = vmatprep.mubr.bf16.mxu0 0
  %393 = vmatmul.mubr.bf16.gmra.mrb[0].mxu0 %v229
  %v394 = vpop.f32.mrb[0].mxu0
  %v395 = vadd.f32 0.0, %v394
  %v396 = vpop.f32.mrb[0].mxu0
  %v397 = vadd.f32 0.0, %v396
  %v398 = vpop.f32.mrb[0].mxu0
  %v399 = vadd.f32 0.0, %v398
  %v400 = vpop.f32.mrb[0].mxu0
  %v401 = vadd.f32 0.0, %v400
  %402 = vmatprep.mubr.bf16.mxu0 0
  %403 = vmatmul.mubr.bf16.gmra.mrb[0].mxu0 %v232
  %v404 = vpop.f32.mrb[0].mxu0
  %v405 = vadd.f32 0.0, %v404
  %v406 = vpop.f32.mrb[0].mxu0
  %v407 = vadd.f32 0.0, %v406
  %v408 = vpop.f32.mrb[0].mxu0
  %v409 = vadd.f32 0.0, %v408
  %v410 = vpop.f32.mrb[0].mxu0
  %v411 = vadd.f32 0.0, %v410
  %412 = vmatprep.mubr.bf16.mxu0 0
  %413 = vmatmul.mubr.bf16.gmra.mrb[0].mxu0 %v235
  %v414 = vpop.f32.mrb[0].mxu0
  %v415 = vadd.f32 0.0, %v414
  %v416 = vpop.f32.mrb[0].mxu0
  %v417 = vadd.f32 0.0, %v416
  %v418 = vpop.f32.mrb[0].mxu0
  %v419 = vadd.f32 0.0, %v418
  %v420 = vpop.f32.mrb[0].mxu0
  %v421 = vadd.f32 0.0, %v420
  %422 = vmatprep.mubr.bf16.mxu0 0
  %423 = vmatmul.mubr.bf16.gmra.mrb[0].mxu0 %v238
  %v424 = vpop.f32.mrb[0].mxu0
  %v425 = vadd.f32 0.0, %v424
  %v426 = vpop.f32.mrb[0].mxu0
  %v427 = vadd.f32 0.0, %v426
  %v428 = vpop.f32.mrb[0].mxu0
  %v429 = vadd.f32 0.0, %v428
  %v430 = vpop.f32.mrb[0].mxu0
  %v431 = vadd.f32 0.0, %v430
  %432 = vdwg.mxu0
  %v441 = vunpack.c.l.b16 %v135
  %v442 = vunpack.c.h.b16 %v135
  %v443 = vunpack.c.l.b16 %v136
  %v444 = vunpack.c.h.b16 %v136
  %v445 = vunpack.c.l.b16 %v137
  %v446 = vunpack.c.h.b16 %v137
  %v447 = vunpack.c.l.b16 %v138
  %v448 = vunpack.c.h.b16 %v138
  %v449 = vunpack.c.l.b16 %v139
  %v450 = vunpack.c.h.b16 %v139
  %v451 = vunpack.c.l.b16 %v140
  %v452 = vunpack.c.h.b16 %v140
  %v453 = vunpack.c.l.b16 %v141
  %v454 = vunpack.c.h.b16 %v141
  %v455 = vunpack.c.l.b16 %v142
  %v456 = vunpack.c.h.b16 %v142
  %v457 = vpack.c.b16 %v443, %v441
  %v458 = vpack.c.b16 %v444, %v442
  %v459 = vpack.c.b16 %v447, %v445
  %v460 = vpack.c.b16 %v448, %v446
  %v461 = vpack.c.b16 %v451, %v449
  %v462 = vpack.c.b16 %v452, %v450
  %v463 = vpack.c.b16 %v455, %v453
  %v464 = vpack.c.b16 %v456, %v454
  %v474 = vsel %vm191, %v71, 0
  %v477 = vsel %vm191, %v72, 0
  %v480 = vsel %vm191, %v73, 0
  %v483 = vsel %vm191, %v74, 0
  %v486 = vsel %vm191, %v75, 0
  %v489 = vsel %vm191, %v76, 0
  %v492 = vsel %vm191, %v77, 0
  %v495 = vsel %vm191, %v78, 0
  %v498 = vsel %vm191, %v79, 0
  %v501 = vsel %vm191, %v80, 0
  %v504 = vsel %vm191, %v81, 0
  %v507 = vsel %vm191, %v82, 0
  %v510 = vsel %vm191, %v83, 0
  %v513 = vsel %vm191, %v84, 0
  %v516 = vsel %vm191, %v85, 0
  %v519 = vsel %vm191, %v86, 0
  %521 = vmatprep.subr.bf16.mxu0 %v458
  %522 = vmatpush1.bf16.msra.mxu0 %v457
  %523 = vmatprep.subr.bf16.mxu0 %v460
  %524 = vmatpush1.bf16.msra.mxu0 %v459
  %525 = vmatprep.subr.bf16.mxu0 %v462
  %526 = vmatpush1.bf16.msra.mxu0 %v461
  %527 = vmatprep.subr.bf16.mxu0 %v464
  %528 = vmatpush1.bf16.msra.mxu0 %v463
  %529 = vmatprep.subr.bf16.mxu0 0
  %530 = vmatpush1.bf16.msra.mxu0 0
  %531 = vmatprep.subr.bf16.mxu0 0
  %532 = vmatpush1.bf16.msra.mxu0 0
  %533 = vmatprep.subr.bf16.mxu0 0
  %534 = vmatpush1.bf16.msra.mxu0 0
  %535 = vmatprep.subr.bf16.mxu0 0
  %536 = vmatpush1.bf16.msra.mxu0 0
  %537 = vmatprep.subr.bf16.mxu0 0
  %538 = vmatpush1.bf16.msra.mxu0 0
  %539 = vmatprep.subr.bf16.mxu0 0
  %540 = vmatpush1.bf16.msra.mxu0 0
  %541 = vmatprep.subr.bf16.mxu0 0
  %542 = vmatpush1.bf16.msra.mxu0 0
  %543 = vmatprep.subr.bf16.mxu0 0
  %544 = vmatpush1.bf16.msra.mxu0 0
  %545 = vmatprep.subr.bf16.mxu0 0
  %546 = vmatpush1.bf16.msra.mxu0 0
  %547 = vmatprep.subr.bf16.mxu0 0
  %548 = vmatpush1.bf16.msra.mxu0 0
  %549 = vmatprep.subr.bf16.mxu0 0
  %550 = vmatpush1.bf16.msra.mxu0 0
  %551 = vmatprep.subr.bf16.mxu0 0
  %552 = vmatpush1.bf16.msra.mxu0 0
  %553 = vmatprep.mubr.bf16.mxu0 0
  %554 = vmatmul.mubr.bf16.gmra.mrb[0].mxu0 %v474
  %v555 = vpop.f32.mrb[0].mxu0
  %v556 = vadd.f32 %v275, %v555
  %v557 = vpop.f32.mrb[0].mxu0
  %v558 = vadd.f32 %v277, %v557
  %v559 = vpop.f32.mrb[0].mxu0
  %v560 = vadd.f32 %v279, %v559
  %v561 = vpop.f32.mrb[0].mxu0
  %v562 = vadd.f32 %v281, %v561
  %563 = vmatprep.mubr.bf16.mxu0 0
  %564 = vmatmul.mubr.bf16.gmra.mrb[0].mxu0 %v477
  %v565 = vpop.f32.mrb[0].mxu0
  %v566 = vadd.f32 %v285, %v565
  %v567 = vpop.f32.mrb[0].mxu0
  %v568 = vadd.f32 %v287, %v567
  %v569 = vpop.f32.mrb[0].mxu0
  %v570 = vadd.f32 %v289, %v569
  %v571 = vpop.f32.mrb[0].mxu0
  %v572 = vadd.f32 %v291, %v571
  %573 = vmatprep.mubr.bf16.mxu0 0
  %574 = vmatmul.mubr.bf16.gmra.mrb[0].mxu0 %v480
  %v575 = vpop.f32.mrb[0].mxu0
  %v576 = vadd.f32 %v295, %v575
  %v577 = vpop.f32.mrb[0].mxu0
  %v578 = vadd.f32 %v297, %v577
  %v579 = vpop.f32.mrb[0].mxu0
  %v580 = vadd.f32 %v299, %v579
  %v581 = vpop.f32.mrb[0].mxu0
  %v582 = vadd.f32 %v301, %v581
  %583 = vmatprep.mubr.bf16.mxu0 0
  %584 = vmatmul.mubr.bf16.gmra.mrb[0].mxu0 %v483
  %v585 = vpop.f32.mrb[0].mxu0
  %v586 = vadd.f32 %v305, %v585
  %v587 = vpop.f32.mrb[0].mxu0
  %v588 = vadd.f32 %v307, %v587
  %v589 = vpop.f32.mrb[0].mxu0
  %v590 = vadd.f32 %v309, %v589
  %v591 = vpop.f32.mrb[0].mxu0
  %v592 = vadd.f32 %v311, %v591
  %593 = vmatprep.mubr.bf16.mxu0 0
  %594 = vmatmul.mubr.bf16.gmra.mrb[0].mxu0 %v486
  %v595 = vpop.f32.mrb[0].mxu0
  %v596 = vadd.f32 %v315, %v595
  %v597 = vpop.f32.mrb[0].mxu0
  %v598 = vadd.f32 %v317, %v597
  %v599 = vpop.f32.mrb[0].mxu0
  %v600 = vadd.f32 %v319, %v599
  %v601 = vpop.f32.mrb[0].mxu0
  %v602 = vadd.f32 %v321, %v601
  %603 = vmatprep.mubr.bf16.mxu0 0
  %604 = vmatmul.mubr.bf16.gmra.mrb[0].mxu0 %v489
  %v605 = vpop.f32.mrb[0].mxu0
  %v606 = vadd.f32 %v325, %v605
  %v607 = vpop.f32.mrb[0].mxu0
  %v608 = vadd.f32 %v327, %v607
  %v609 = vpop.f32.mrb[0].mxu0
  %v610 = vadd.f32 %v329, %v609
  %v611 = vpop.f32.mrb[0].mxu0
  %v612 = vadd.f32 %v331, %v611
  %613 = vmatprep.mubr.bf16.mxu0 0
  %614 = vmatmul.mubr.bf16.gmra.mrb[0].mxu0 %v492
  %v615 = vpop.f32.mrb[0].mxu0
  %v616 = vadd.f32 %v335, %v615
  %v617 = vpop.f32.mrb[0].mxu0
  %v618 = vadd.f32 %v337, %v617
  %v619 = vpop.f32.mrb[0].mxu0
  %v620 = vadd.f32 %v339, %v619
  %v621 = vpop.f32.mrb[0].mxu0
  %v622 = vadd.f32 %v341, %v621
  %623 = vmatprep.mubr.bf16.mxu0 0
  %624 = vmatmul.mubr.bf16.gmra.mrb[0].mxu0 %v495
  %v625 = vpop.f32.mrb[0].mxu0
  %v626 = vadd.f32 %v345, %v625
  %v627 = vpop.f32.mrb[0].mxu0
  %v628 = vadd.f32 %v347, %v627
  %v629 = vpop.f32.mrb[0].mxu0
  %v630 = vadd.f32 %v349, %v629
  %v631 = vpop.f32.mrb[0].mxu0
  %v632 = vadd.f32 %v351, %v631
  %633 = vmatprep.mubr.bf16.mxu0 0
  %634 = vmatmul.mubr.bf16.gmra.mrb[0].mxu0 %v498
  %v635 = vpop.f32.mrb[0].mxu0
  %v636 = vadd.f32 %v355, %v635
  %v637 = vpop.f32.mrb[0].mxu0
  %v638 = vadd.f32 %v357, %v637
  %v639 = vpop.f32.mrb[0].mxu0
  %v640 = vadd.f32 %v359, %v639
  %v641 = vpop.f32.mrb[0].mxu0
  %v642 = vadd.f32 %v361, %v641
  %643 = vmatprep.mubr.bf16.mxu0 0
  %644 = vmatmul.mubr.bf16.gmra.mrb[0].mxu0 %v501
  %v645 = vpop.f32.mrb[0].mxu0
  %v646 = vadd.f32 %v365, %v645
  %v647 = vpop.f32.mrb[0].mxu0
  %v648 = vadd.f32 %v367, %v647
  %v649 = vpop.f32.mrb[0].mxu0
  %v650 = vadd.f32 %v369, %v649
  %v651 = vpop.f32.mrb[0].mxu0
  %v652 = vadd.f32 %v371, %v651
  %653 = vmatprep.mubr.bf16.mxu0 0
  %654 = vmatmul.mubr.bf16.gmra.mrb[0].mxu0 %v504
  %v655 = vpop.f32.mrb[0].mxu0
  %v656 = vadd.f32 %v375, %v655
  %v657 = vpop.f32.mrb[0].mxu0
  %v658 = vadd.f32 %v377, %v657
  %v659 = vpop.f32.mrb[0].mxu0
  %v660 = vadd.f32 %v379, %v659
  %v661 = vpop.f32.mrb[0].mxu0
  %v662 = vadd.f32 %v381, %v661
  %663 = vmatprep.mubr.bf16.mxu0 0
  %664 = vmatmul.mubr.bf16.gmra.mrb[0].mxu0 %v507
  %v665 = vpop.f32.mrb[0].mxu0
  %v666 = vadd.f32 %v385, %v665
  %v667 = vpop.f32.mrb[0].mxu0
  %v668 = vadd.f32 %v387, %v667
  %v669 = vpop.f32.mrb[0].mxu0
  %v670 = vadd.f32 %v389, %v669
  %v671 = vpop.f32.mrb[0].mxu0
  %v672 = vadd.f32 %v391, %v671
  %673 = vmatprep.mubr.bf16.mxu0 0
  %674 = vmatmul.mubr.bf16.gmra.mrb[0].mxu0 %v510
  %v675 = vpop.f32.mrb[0].mxu0
  %v676 = vadd.f32 %v395, %v675
  %v677 = vpop.f32.mrb[0].mxu0
  %v678 = vadd.f32 %v397, %v677
  %v679 = vpop.f32.mrb[0].mxu0
  %v680 = vadd.f32 %v399, %v679
  %v681 = vpop.f32.mrb[0].mxu0
  %v682 = vadd.f32 %v401, %v681
  %683 = vmatprep.mubr.bf16.mxu0 0
  %684 = vmatmul.mubr.bf16.gmra.mrb[0].mxu0 %v513
  %v685 = vpop.f32.mrb[0].mxu0
  %v686 = vadd.f32 %v405, %v685
  %v687 = vpop.f32.mrb[0].mxu0
  %v688 = vadd.f32 %v407, %v687
  %v689 = vpop.f32.mrb[0].mxu0
  %v690 = vadd.f32 %v409, %v689
  %v691 = vpop.f32.mrb[0].mxu0
  %v692 = vadd.f32 %v411, %v691
  %693 = vmatprep.mubr.bf16.mxu0 0
  %694 = vmatmul.mubr.bf16.gmra.mrb[0].mxu0 %v516
  %v695 = vpop.f32.mrb[0].mxu0
  %v696 = vadd.f32 %v415, %v695
  %v697 = vpop.f32.mrb[0].mxu0
  %v698 = vadd.f32 %v417, %v697
  %v699 = vpop.f32.mrb[0].mxu0
  %v700 = vadd.f32 %v419, %v699
  %v701 = vpop.f32.mrb[0].mxu0
  %v702 = vadd.f32 %v421, %v701
  %703 = vmatprep.mubr.bf16.mxu0 0
  %704 = vmatmul.mubr.bf16.gmra.mrb[0].mxu0 %v519
  %v705 = vpop.f32.mrb[0].mxu0
  %v706 = vadd.f32 %v425, %v705
  %v707 = vpop.f32.mrb[0].mxu0
  %v708 = vadd.f32 %v427, %v707
  %v709 = vpop.f32.mrb[0].mxu0
  %v710 = vadd.f32 %v429, %v709
  %v711 = vpop.f32.mrb[0].mxu0
  %v712 = vadd.f32 %v431, %v711
  %713 = vdwg.mxu0
  %v715 = vlaneseq
  %v716 = vshrl.u32 %v715, 7
  %v717 = vsub.s32 0, %v716
  %v718 = vrot.slane %v27, %v717
  %v719 = vlaneseq
  %v720 = vshrl.u32 %v719, 7
  %v721 = vsub.s32 1, %v720
  %v722 = vrot.slane %v27, %v721
  %v725 = vadd.f32 %v556, %v718
  %v726 = vadd.f32 %v558, %v722
  %v727 = vadd.f32 %v560, %v718
  %v728 = vadd.f32 %v562, %v722
  %v729 = vadd.f32 %v566, %v718
  %v730 = vadd.f32 %v568, %v722
  %v731 = vadd.f32 %v570, %v718
  %v732 = vadd.f32 %v572, %v722
  %v733 = vadd.f32 %v576, %v718
  %v734 = vadd.f32 %v578, %v722
  %v735 = vadd.f32 %v580, %v718
  %v736 = vadd.f32 %v582, %v722
  %v737 = vadd.f32 %v586, %v718
  %v738 = vadd.f32 %v588, %v722
  %v739 = vadd.f32 %v590, %v718
  %v740 = vadd.f32 %v592, %v722
  %v741 = vadd.f32 %v596, %v718
  %v742 = vadd.f32 %v598, %v722
  %v743 = vadd.f32 %v600, %v718
  %v744 = vadd.f32 %v602, %v722
  %v745 = vadd.f32 %v606, %v718
  %v746 = vadd.f32 %v608, %v722
  %v747 = vadd.f32 %v610, %v718
  %v748 = vadd.f32 %v612, %v722
  %v749 = vadd.f32 %v616, %v718
  %v750 = vadd.f32 %v618, %v722
  %v751 = vadd.f32 %v620, %v718
  %v752 = vadd.f32 %v622, %v722
  %v753 = vadd.f32 %v626, %v718
  %v754 = vadd.f32 %v628, %v722
  %v755 = vadd.f32 %v630, %v718
  %v756 = vadd.f32 %v632, %v722
  %v757 = vadd.f32 %v636, %v718
  %v758 = vadd.f32 %v638, %v722
  %v759 = vadd.f32 %v640, %v718
  %v760 = vadd.f32 %v642, %v722
  %v761 = vadd.f32 %v646, %v718
  %v762 = vadd.f32 %v648, %v722
  %v763 = vadd.f32 %v650, %v718
  %v764 = vadd.f32 %v652, %v722
  %v765 = vadd.f32 %v656, %v718
  %v766 = vadd.f32 %v658, %v722
  %v767 = vadd.f32 %v660, %v718
  %v768 = vadd.f32 %v662, %v722
  %v769 = vadd.f32 %v666, %v718
  %v770 = vadd.f32 %v668, %v722
  %v771 = vadd.f32 %v670, %v718
  %v772 = vadd.f32 %v672, %v722
  %v773 = vadd.f32 %v676, %v718
  %v774 = vadd.f32 %v678, %v722
  %v775 = vadd.f32 %v680, %v718
  %v776 = vadd.f32 %v682, %v722
  %v777 = vadd.f32 %v686, %v718
  %v778 = vadd.f32 %v688, %v722
  %v779 = vadd.f32 %v690, %v718
  %v780 = vadd.f32 %v692, %v722
  %v781 = vadd.f32 %v696, %v718
  %v782 = vadd.f32 %v698, %v722
  %v783 = vadd.f32 %v700, %v718
  %v784 = vadd.f32 %v702, %v722
  %v785 = vadd.f32 %v706, %v718
  %v786 = vadd.f32 %v708, %v722
  %v787 = vadd.f32 %v710, %v718
  %v788 = vadd.f32 %v712, %v722
  %v789 = vadd.f32 %v725, %v726
  %790 = vadd.xlane.f32.xlu0 %v789
  %v791 = vpop.xlane.xlu0 %790
  %v792 = vadd.f32 %v727, %v728
  %793 = vadd.xlane.f32.xlu0 %v792
  %v794 = vpop.xlane.xlu0 %793
  %v795 = vadd.f32 %v729, %v730
  %796 = vadd.xlane.f32.xlu0 %v795
  %v797 = vpop.xlane.xlu0 %796
  %v798 = vadd.f32 %v731, %v732
  %799 = vadd.xlane.f32.xlu0 %v798
  %v800 = vpop.xlane.xlu0 %799
  %v801 = vadd.f32 %v733, %v734
  %802 = vadd.xlane.f32.xlu0 %v801
  %v803 = vpop.xlane.xlu0 %802
  %v804 = vadd.f32 %v735, %v736
  %805 = vadd.xlane.f32.xlu0 %v804
  %v806 = vpop.xlane.xlu0 %805
  %v807 = vadd.f32 %v737, %v738
  %808 = vadd.xlane.f32.xlu0 %v807
  %v809 = vpop.xlane.xlu0 %808
  %v810 = vadd.f32 %v739, %v740
  %811 = vadd.xlane.f32.xlu0 %v810
  %v812 = vpop.xlane.xlu0 %811
  %v813 = vadd.f32 %v741, %v742
  %814 = vadd.xlane.f32.xlu0 %v813
  %v815 = vpop.xlane.xlu0 %814
  %v816 = vadd.f32 %v743, %v744
  %817 = vadd.xlane.f32.xlu0 %v816
  %v818 = vpop.xlane.xlu0 %817
  %v819 = vadd.f32 %v745, %v746
  %820 = vadd.xlane.f32.xlu0 %v819
  %v821 = vpop.xlane.xlu0 %820
  %v822 = vadd.f32 %v747, %v748
  %823 = vadd.xlane.f32.xlu0 %v822
  %v824 = vpop.xlane.xlu0 %823
  %v825 = vadd.f32 %v749, %v750
  %826 = vadd.xlane.f32.xlu0 %v825
  %v827 = vpop.xlane.xlu0 %826
  %v828 = vadd.f32 %v751, %v752
  %829 = vadd.xlane.f32.xlu0 %v828
  %v830 = vpop.xlane.xlu0 %829
  %v831 = vadd.f32 %v753, %v754
  %832 = vadd.xlane.f32.xlu0 %v831
  %v833 = vpop.xlane.xlu0 %832
  %v834 = vadd.f32 %v755, %v756
  %835 = vadd.xlane.f32.xlu0 %v834
  %v836 = vpop.xlane.xlu0 %835
  %v837 = vadd.f32 %v757, %v758
  %838 = vadd.xlane.f32.xlu0 %v837
  %v839 = vpop.xlane.xlu0 %838
  %v840 = vadd.f32 %v759, %v760
  %841 = vadd.xlane.f32.xlu0 %v840
  %v842 = vpop.xlane.xlu0 %841
  %v843 = vadd.f32 %v761, %v762
  %844 = vadd.xlane.f32.xlu0 %v843
  %v845 = vpop.xlane.xlu0 %844
  %v846 = vadd.f32 %v763, %v764
  %847 = vadd.xlane.f32.xlu0 %v846
  %v848 = vpop.xlane.xlu0 %847
  %v849 = vadd.f32 %v765, %v766
  %850 = vadd.xlane.f32.xlu0 %v849
  %v851 = vpop.xlane.xlu0 %850
  %v852 = vadd.f32 %v767, %v768
  %853 = vadd.xlane.f32.xlu0 %v852
  %v854 = vpop.xlane.xlu0 %853
  %v855 = vadd.f32 %v769, %v770
  %856 = vadd.xlane.f32.xlu0 %v855
  %v857 = vpop.xlane.xlu0 %856
  %v858 = vadd.f32 %v771, %v772
  %859 = vadd.xlane.f32.xlu0 %v858
  %v860 = vpop.xlane.xlu0 %859
  %v861 = vadd.f32 %v773, %v774
  %862 = vadd.xlane.f32.xlu0 %v861
  %v863 = vpop.xlane.xlu0 %862
  %v864 = vadd.f32 %v775, %v776
  %865 = vadd.xlane.f32.xlu0 %v864
  %v866 = vpop.xlane.xlu0 %865
  %v867 = vadd.f32 %v777, %v778
  %868 = vadd.xlane.f32.xlu0 %v867
  %v869 = vpop.xlane.xlu0 %868
  %v870 = vadd.f32 %v779, %v780
  %871 = vadd.xlane.f32.xlu0 %v870
  %v872 = vpop.xlane.xlu0 %871
  %v873 = vadd.f32 %v781, %v782
  %874 = vadd.xlane.f32.xlu0 %v873
  %v875 = vpop.xlane.xlu0 %874
  %v876 = vadd.f32 %v783, %v784
  %877 = vadd.xlane.f32.xlu0 %v876
  %v878 = vpop.xlane.xlu0 %877
  %v879 = vadd.f32 %v785, %v786
  %880 = vadd.xlane.f32.xlu0 %v879
  %v881 = vpop.xlane.xlu0 %880
  %v882 = vadd.f32 %v787, %v788
  %883 = vadd.xlane.f32.xlu0 %v882
  %v884 = vpop.xlane.xlu0 %883
  %v885 = vmul.f32 %v791, 0.00390625
  %v886 = vmul.f32 %v794, 0.00390625
  %v887 = vmul.f32 %v797, 0.00390625
  %v888 = vmul.f32 %v800, 0.00390625
  %v889 = vmul.f32 %v803, 0.00390625
  %v890 = vmul.f32 %v806, 0.00390625
  %v891 = vmul.f32 %v809, 0.00390625
  %v892 = vmul.f32 %v812, 0.00390625
  %v893 = vmul.f32 %v815, 0.00390625
  %v894 = vmul.f32 %v818, 0.00390625
  %v895 = vmul.f32 %v821, 0.00390625
  %v896 = vmul.f32 %v824, 0.00390625
  %v897 = vmul.f32 %v827, 0.00390625
  %v898 = vmul.f32 %v830, 0.00390625
  %v899 = vmul.f32 %v833, 0.00390625
  %v900 = vmul.f32 %v836, 0.00390625
  %v901 = vmul.f32 %v839, 0.00390625
  %v902 = vmul.f32 %v842, 0.00390625
  %v903 = vmul.f32 %v845, 0.00390625
  %v904 = vmul.f32 %v848, 0.00390625
  %v905 = vmul.f32 %v851, 0.00390625
  %v906 = vmul.f32 %v854, 0.00390625
  %v907 = vmul.f32 %v857, 0.00390625
  %v908 = vmul.f32 %v860, 0.00390625
  %v909 = vmul.f32 %v863, 0.00390625
  %v910 = vmul.f32 %v866, 0.00390625
  %v911 = vmul.f32 %v869, 0.00390625
  %v912 = vmul.f32 %v872, 0.00390625
  %v913 = vmul.f32 %v875, 0.00390625
  %v914 = vmul.f32 %v878, 0.00390625
  %v915 = vmul.f32 %v881, 0.00390625
  %v916 = vmul.f32 %v884, 0.00390625
  %v917 = vmul.f32 %v725, %v725
  %v918 = vmul.f32 %v726, %v726
  %v919 = vmul.f32 %v727, %v727
  %v920 = vmul.f32 %v728, %v728
  %v921 = vmul.f32 %v729, %v729
  %v922 = vmul.f32 %v730, %v730
  %v923 = vmul.f32 %v731, %v731
  %v924 = vmul.f32 %v732, %v732
  %v925 = vmul.f32 %v733, %v733
  %v926 = vmul.f32 %v734, %v734
  %v927 = vmul.f32 %v735, %v735
  %v928 = vmul.f32 %v736, %v736
  %v929 = vmul.f32 %v737, %v737
  %v930 = vmul.f32 %v738, %v738
  %v931 = vmul.f32 %v739, %v739
  %v932 = vmul.f32 %v740, %v740
  %v933 = vmul.f32 %v741, %v741
  %v934 = vmul.f32 %v742, %v742
  %v935 = vmul.f32 %v743, %v743
  %v936 = vmul.f32 %v744, %v744
  %v937 = vmul.f32 %v745, %v745
  %v938 = vmul.f32 %v746, %v746
  %v939 = vmul.f32 %v747, %v747
  %v940 = vmul.f32 %v748, %v748
  %v941 = vmul.f32 %v749, %v749
  %v942 = vmul.f32 %v750, %v750
  %v943 = vmul.f32 %v751, %v751
  %v944 = vmul.f32 %v752, %v752
  %v945 = vmul.f32 %v753, %v753
  %v946 = vmul.f32 %v754, %v754
  %v947 = vmul.f32 %v755, %v755
  %v948 = vmul.f32 %v756, %v756
  %v949 = vmul.f32 %v757, %v757
  %v950 = vmul.f32 %v758, %v758
  %v951 = vmul.f32 %v759, %v759
  %v952 = vmul.f32 %v760, %v760
  %v953 = vmul.f32 %v761, %v761
  %v954 = vmul.f32 %v762, %v762
  %v955 = vmul.f32 %v763, %v763
  %v956 = vmul.f32 %v764, %v764
  %v957 = vmul.f32 %v765, %v765
  %v958 = vmul.f32 %v766, %v766
  %v959 = vmul.f32 %v767, %v767
  %v960 = vmul.f32 %v768, %v768
  %v961 = vmul.f32 %v769, %v769
  %v962 = vmul.f32 %v770, %v770
  %v963 = vmul.f32 %v771, %v771
  %v964 = vmul.f32 %v772, %v772
  %v965 = vmul.f32 %v773, %v773
  %v966 = vmul.f32 %v774, %v774
  %v967 = vmul.f32 %v775, %v775
  %v968 = vmul.f32 %v776, %v776
  %v969 = vmul.f32 %v777, %v777
  %v970 = vmul.f32 %v778, %v778
  %v971 = vmul.f32 %v779, %v779
  %v972 = vmul.f32 %v780, %v780
  %v973 = vmul.f32 %v781, %v781
  %v974 = vmul.f32 %v782, %v782
  %v975 = vmul.f32 %v783, %v783
  %v976 = vmul.f32 %v784, %v784
  %v977 = vmul.f32 %v785, %v785
  %v978 = vmul.f32 %v786, %v786
  %v979 = vmul.f32 %v787, %v787
  %v980 = vmul.f32 %v788, %v788
  %v981 = vadd.f32 %v917, %v918
  %982 = vadd.xlane.f32.xlu0 %v981
  %v983 = vpop.xlane.xlu0 %982
  %v984 = vadd.f32 %v919, %v920
  %985 = vadd.xlane.f32.xlu0 %v984
  %v986 = vpop.xlane.xlu0 %985
  %v987 = vadd.f32 %v921, %v922
  %988 = vadd.xlane.f32.xlu0 %v987
  %v989 = vpop.xlane.xlu0 %988
  %v990 = vadd.f32 %v923, %v924
  %991 = vadd.xlane.f32.xlu0 %v990
  %v992 = vpop.xlane.xlu0 %991
  %v993 = vadd.f32 %v925, %v926
  %994 = vadd.xlane.f32.xlu0 %v993
  %v995 = vpop.xlane.xlu0 %994
  %v996 = vadd.f32 %v927, %v928
  %997 = vadd.xlane.f32.xlu0 %v996
  %v998 = vpop.xlane.xlu0 %997
  %v999 = vadd.f32 %v929, %v930
  %1000 = vadd.xlane.f32.xlu0 %v999
  %v1001 = vpop.xlane.xlu0 %1000
  %v1002 = vadd.f32 %v931, %v932
  %1003 = vadd.xlane.f32.xlu0 %v1002
  %v1004 = vpop.xlane.xlu0 %1003
  %v1005 = vadd.f32 %v933, %v934
  %1006 = vadd.xlane.f32.xlu0 %v1005
  %v1007 = vpop.xlane.xlu0 %1006
  %v1008 = vadd.f32 %v935, %v936
  %1009 = vadd.xlane.f32.xlu0 %v1008
  %v1010 = vpop.xlane.xlu0 %1009
  %v1011 = vadd.f32 %v937, %v938
  %1012 = vadd.xlane.f32.xlu0 %v1011
  %v1013 = vpop.xlane.xlu0 %1012
  %v1014 = vadd.f32 %v939, %v940
  %1015 = vadd.xlane.f32.xlu0 %v1014
  %v1016 = vpop.xlane.xlu0 %1015
  %v1017 = vadd.f32 %v941, %v942
  %1018 = vadd.xlane.f32.xlu0 %v1017
  %v1019 = vpop.xlane.xlu0 %1018
  %v1020 = vadd.f32 %v943, %v944
  %1021 = vadd.xlane.f32.xlu0 %v1020
  %v1022 = vpop.xlane.xlu0 %1021
  %v1023 = vadd.f32 %v945, %v946
  %1024 = vadd.xlane.f32.xlu0 %v1023
  %v1025 = vpop.xlane.xlu0 %1024
  %v1026 = vadd.f32 %v947, %v948
  %1027 = vadd.xlane.f32.xlu0 %v1026
  %v1028 = vpop.xlane.xlu0 %1027
  %v1029 = vadd.f32 %v949, %v950
  %1030 = vadd.xlane.f32.xlu0 %v1029
  %v1031 = vpop.xlane.xlu0 %1030
  %v1032 = vadd.f32 %v951, %v952
  %1033 = vadd.xlane.f32.xlu0 %v1032
  %v1034 = vpop.xlane.xlu0 %1033
  %v1035 = vadd.f32 %v953, %v954
  %1036 = vadd.xlane.f32.xlu0 %v1035
  %v1037 = vpop.xlane.xlu0 %1036
  %v1038 = vadd.f32 %v955, %v956
  %1039 = vadd.xlane.f32.xlu0 %v1038
  %v1040 = vpop.xlane.xlu0 %1039
  %v1041 = vadd.f32 %v957, %v958
  %1042 = vadd.xlane.f32.xlu0 %v1041
  %v1043 = vpop.xlane.xlu0 %1042
  %v1044 = vadd.f32 %v959, %v960
  %1045 = vadd.xlane.f32.xlu0 %v1044
  %v1046 = vpop.xlane.xlu0 %1045
  %v1047 = vadd.f32 %v961, %v962
  %1048 = vadd.xlane.f32.xlu0 %v1047
  %v1049 = vpop.xlane.xlu0 %1048
  %v1050 = vadd.f32 %v963, %v964
  %1051 = vadd.xlane.f32.xlu0 %v1050
  %v1052 = vpop.xlane.xlu0 %1051
  %v1053 = vadd.f32 %v965, %v966
  %1054 = vadd.xlane.f32.xlu0 %v1053
  %v1055 = vpop.xlane.xlu0 %1054
  %v1056 = vadd.f32 %v967, %v968
  %1057 = vadd.xlane.f32.xlu0 %v1056
  %v1058 = vpop.xlane.xlu0 %1057
  %v1059 = vadd.f32 %v969, %v970
  %1060 = vadd.xlane.f32.xlu0 %v1059
  %v1061 = vpop.xlane.xlu0 %1060
  %v1062 = vadd.f32 %v971, %v972
  %1063 = vadd.xlane.f32.xlu0 %v1062
  %v1064 = vpop.xlane.xlu0 %1063
  %v1065 = vadd.f32 %v973, %v974
  %1066 = vadd.xlane.f32.xlu0 %v1065
  %v1067 = vpop.xlane.xlu0 %1066
  %v1068 = vadd.f32 %v975, %v976
  %1069 = vadd.xlane.f32.xlu0 %v1068
  %v1070 = vpop.xlane.xlu0 %1069
  %v1071 = vadd.f32 %v977, %v978
  %1072 = vadd.xlane.f32.xlu0 %v1071
  %v1073 = vpop.xlane.xlu0 %1072
  %v1074 = vadd.f32 %v979, %v980
  %1075 = vadd.xlane.f32.xlu0 %v1074
  %v1076 = vpop.xlane.xlu0 %1075
  %v1077 = vmul.f32 %v983, 0.00390625
  %v1078 = vmul.f32 %v986, 0.00390625
  %v1079 = vmul.f32 %v989, 0.00390625
  %v1080 = vmul.f32 %v992, 0.00390625
  %v1081 = vmul.f32 %v995, 0.00390625
  %v1082 = vmul.f32 %v998, 0.00390625
  %v1083 = vmul.f32 %v1001, 0.00390625
  %v1084 = vmul.f32 %v1004, 0.00390625
  %v1085 = vmul.f32 %v1007, 0.00390625
  %v1086 = vmul.f32 %v1010, 0.00390625
  %v1087 = vmul.f32 %v1013, 0.00390625
  %v1088 = vmul.f32 %v1016, 0.00390625
  %v1089 = vmul.f32 %v1019, 0.00390625
  %v1090 = vmul.f32 %v1022, 0.00390625
  %v1091 = vmul.f32 %v1025, 0.00390625
  %v1092 = vmul.f32 %v1028, 0.00390625
  %v1093 = vmul.f32 %v1031, 0.00390625
  %v1094 = vmul.f32 %v1034, 0.00390625
  %v1095 = vmul.f32 %v1037, 0.00390625
  %v1096 = vmul.f32 %v1040, 0.00390625
  %v1097 = vmul.f32 %v1043, 0.00390625
  %v1098 = vmul.f32 %v1046, 0.00390625
  %v1099 = vmul.f32 %v1049, 0.00390625
  %v1100 = vmul.f32 %v1052, 0.00390625
  %v1101 = vmul.f32 %v1055, 0.00390625
  %v1102 = vmul.f32 %v1058, 0.00390625
  %v1103 = vmul.f32 %v1061, 0.00390625
  %v1104 = vmul.f32 %v1064, 0.00390625
  %v1105 = vmul.f32 %v1067, 0.00390625
  %v1106 = vmul.f32 %v1070, 0.00390625
  %v1107 = vmul.f32 %v1073, 0.00390625
  %v1108 = vmul.f32 %v1076, 0.00390625
  %v1109 = vmul.f32 %v885, %v885
  %v1110 = vmul.f32 %v886, %v886
  %v1111 = vmul.f32 %v887, %v887
  %v1112 = vmul.f32 %v888, %v888
  %v1113 = vmul.f32 %v889, %v889
  %v1114 = vmul.f32 %v890, %v890
  %v1115 = vmul.f32 %v891, %v891
  %v1116 = vmul.f32 %v892, %v892
  %v1117 = vmul.f32 %v893, %v893
  %v1118 = vmul.f32 %v894, %v894
  %v1119 = vmul.f32 %v895, %v895
  %v1120 = vmul.f32 %v896, %v896
  %v1121 = vmul.f32 %v897, %v897
  %v1122 = vmul.f32 %v898, %v898
  %v1123 = vmul.f32 %v899, %v899
  %v1124 = vmul.f32 %v900, %v900
  %v1125 = vmul.f32 %v901, %v901
  %v1126 = vmul.f32 %v902, %v902
  %v1127 = vmul.f32 %v903, %v903
  %v1128 = vmul.f32 %v904, %v904
  %v1129 = vmul.f32 %v905, %v905
  %v1130 = vmul.f32 %v906, %v906
  %v1131 = vmul.f32 %v907, %v907
  %v1132 = vmul.f32 %v908, %v908
  %v1133 = vmul.f32 %v909, %v909
  %v1134 = vmul.f32 %v910, %v910
  %v1135 = vmul.f32 %v911, %v911
  %v1136 = vmul.f32 %v912, %v912
  %v1137 = vmul.f32 %v913, %v913
  %v1138 = vmul.f32 %v914, %v914
  %v1139 = vmul.f32 %v915, %v915
  %v1140 = vmul.f32 %v916, %v916
  %v1141 = vsub.f32 %v1077, %v1109
  %v1142 = vsub.f32 %v1078, %v1110
  %v1143 = vsub.f32 %v1079, %v1111
  %v1144 = vsub.f32 %v1080, %v1112
  %v1145 = vsub.f32 %v1081, %v1113
  %v1146 = vsub.f32 %v1082, %v1114
  %v1147 = vsub.f32 %v1083, %v1115
  %v1148 = vsub.f32 %v1084, %v1116
  %v1149 = vsub.f32 %v1085, %v1117
  %v1150 = vsub.f32 %v1086, %v1118
  %v1151 = vsub.f32 %v1087, %v1119
  %v1152 = vsub.f32 %v1088, %v1120
  %v1153 = vsub.f32 %v1089, %v1121
  %v1154 = vsub.f32 %v1090, %v1122
  %v1155 = vsub.f32 %v1091, %v1123
  %v1156 = vsub.f32 %v1092, %v1124
  %v1157 = vsub.f32 %v1093, %v1125
  %v1158 = vsub.f32 %v1094, %v1126
  %v1159 = vsub.f32 %v1095, %v1127
  %v1160 = vsub.f32 %v1096, %v1128
  %v1161 = vsub.f32 %v1097, %v1129
  %v1162 = vsub.f32 %v1098, %v1130
  %v1163 = vsub.f32 %v1099, %v1131
  %v1164 = vsub.f32 %v1100, %v1132
  %v1165 = vsub.f32 %v1101, %v1133
  %v1166 = vsub.f32 %v1102, %v1134
  %v1167 = vsub.f32 %v1103, %v1135
  %v1168 = vsub.f32 %v1104, %v1136
  %v1169 = vsub.f32 %v1105, %v1137
  %v1170 = vsub.f32 %v1106, %v1138
  %v1171 = vsub.f32 %v1107, %v1139
  %v1172 = vsub.f32 %v1108, %v1140
  %v1173 = vsub.f32 %v725, %v885
  %v1174 = vsub.f32 %v726, %v885
  %v1175 = vsub.f32 %v727, %v886
  %v1176 = vsub.f32 %v728, %v886
  %v1177 = vsub.f32 %v729, %v887
  %v1178 = vsub.f32 %v730, %v887
  %v1179 = vsub.f32 %v731, %v888
  %v1180 = vsub.f32 %v732, %v888
  %v1181 = vsub.f32 %v733, %v889
  %v1182 = vsub.f32 %v734, %v889
  %v1183 = vsub.f32 %v735, %v890
  %v1184 = vsub.f32 %v736, %v890
  %v1185 = vsub.f32 %v737, %v891
  %v1186 = vsub.f32 %v738, %v891
  %v1187 = vsub.f32 %v739, %v892
  %v1188 = vsub.f32 %v740, %v892
  %v1189 = vsub.f32 %v741, %v893
  %v1190 = vsub.f32 %v742, %v893
  %v1191 = vsub.f32 %v743, %v894
  %v1192 = vsub.f32 %v744, %v894
  %v1193 = vsub.f32 %v745, %v895
  %v1194 = vsub.f32 %v746, %v895
  %v1195 = vsub.f32 %v747, %v896
  %v1196 = vsub.f32 %v748, %v896
  %v1197 = vsub.f32 %v749, %v897
  %v1198 = vsub.f32 %v750, %v897
  %v1199 = vsub.f32 %v751, %v898
  %v1200 = vsub.f32 %v752, %v898
  %v1201 = vsub.f32 %v753, %v899
  %v1202 = vsub.f32 %v754, %v899
  %v1203 = vsub.f32 %v755, %v900
  %v1204 = vsub.f32 %v756, %v900
  %v1205 = vsub.f32 %v757, %v901
  %v1206 = vsub.f32 %v758, %v901
  %v1207 = vsub.f32 %v759, %v902
  %v1208 = vsub.f32 %v760, %v902
  %v1209 = vsub.f32 %v761, %v903
  %v1210 = vsub.f32 %v762, %v903
  %v1211 = vsub.f32 %v763, %v904
  %v1212 = vsub.f32 %v764, %v904
  %v1213 = vsub.f32 %v765, %v905
  %v1214 = vsub.f32 %v766, %v905
  %v1215 = vsub.f32 %v767, %v906
  %v1216 = vsub.f32 %v768, %v906
  %v1217 = vsub.f32 %v769, %v907
  %v1218 = vsub.f32 %v770, %v907
  %v1219 = vsub.f32 %v771, %v908
  %v1220 = vsub.f32 %v772, %v908
  %v1221 = vsub.f32 %v773, %v909
  %v1222 = vsub.f32 %v774, %v909
  %v1223 = vsub.f32 %v775, %v910
  %v1224 = vsub.f32 %v776, %v910
  %v1225 = vsub.f32 %v777, %v911
  %v1226 = vsub.f32 %v778, %v911
  %v1227 = vsub.f32 %v779, %v912
  %v1228 = vsub.f32 %v780, %v912
  %v1229 = vsub.f32 %v781, %v913
  %v1230 = vsub.f32 %v782, %v913
  %v1231 = vsub.f32 %v783, %v914
  %v1232 = vsub.f32 %v784, %v914
  %v1233 = vsub.f32 %v785, %v915
  %v1234 = vsub.f32 %v786, %v915
  %v1235 = vsub.f32 %v787, %v916
  %v1236 = vsub.f32 %v788, %v916
  %v1237 = vadd.f32 %v1141, 1e-05
  %v1238 = vadd.f32 %v1142, 1e-05
  %v1239 = vadd.f32 %v1143, 1e-05
  %v1240 = vadd.f32 %v1144, 1e-05
  %v1241 = vadd.f32 %v1145, 1e-05
  %v1242 = vadd.f32 %v1146, 1e-05
  %v1243 = vadd.f32 %v1147, 1e-05
  %v1244 = vadd.f32 %v1148, 1e-05
  %v1245 = vadd.f32 %v1149, 1e-05
  %v1246 = vadd.f32 %v1150, 1e-05
  %v1247 = vadd.f32 %v1151, 1e-05
  %v1248 = vadd.f32 %v1152, 1e-05
  %v1249 = vadd.f32 %v1153, 1e-05
  %v1250 = vadd.f32 %v1154, 1e-05
  %v1251 = vadd.f32 %v1155, 1e-05
  %v1252 = vadd.f32 %v1156, 1e-05
  %v1253 = vadd.f32 %v1157, 1e-05
  %v1254 = vadd.f32 %v1158, 1e-05
  %v1255 = vadd.f32 %v1159, 1e-05
  %v1256 = vadd.f32 %v1160, 1e-05
  %v1257 = vadd.f32 %v1161, 1e-05
  %v1258 = vadd.f32 %v1162, 1e-05
  %v1259 = vadd.f32 %v1163, 1e-05
  %v1260 = vadd.f32 %v1164, 1e-05
  %v1261 = vadd.f32 %v1165, 1e-05
  %v1262 = vadd.f32 %v1166, 1e-05
  %v1263 = vadd.f32 %v1167, 1e-05
  %v1264 = vadd.f32 %v1168, 1e-05
  %v1265 = vadd.f32 %v1169, 1e-05
  %v1266 = vadd.f32 %v1170, 1e-05
  %v1267 = vadd.f32 %v1171, 1e-05
  %v1268 = vadd.f32 %v1172, 1e-05
  %v1269 = vrsqrt.pop %v1237
  %v1270 = vrsqrt.pop %v1238
  %v1271 = vrsqrt.pop %v1239
  %v1272 = vrsqrt.pop %v1240
  %v1273 = vrsqrt.pop %v1241
  %v1274 = vrsqrt.pop %v1242
  %v1275 = vrsqrt.pop %v1243
  %v1276 = vrsqrt.pop %v1244
  %v1277 = vrsqrt.pop %v1245
  %v1278 = vrsqrt.pop %v1246
  %v1279 = vrsqrt.pop %v1247
  %v1280 = vrsqrt.pop %v1248
  %v1281 = vrsqrt.pop %v1249
  %v1282 = vrsqrt.pop %v1250
  %v1283 = vrsqrt.pop %v1251
  %v1284 = vrsqrt.pop %v1252
  %v1285 = vrsqrt.pop %v1253
  %v1286 = vrsqrt.pop %v1254
  %v1287 = vrsqrt.pop %v1255
  %v1288 = vrsqrt.pop %v1256
  %v1289 = vrsqrt.pop %v1257
  %v1290 = vrsqrt.pop %v1258
  %v1291 = vrsqrt.pop %v1259
  %v1292 = vrsqrt.pop %v1260
  %v1293 = vrsqrt.pop %v1261
  %v1294 = vrsqrt.pop %v1262
  %v1295 = vrsqrt.pop %v1263
  %v1296 = vrsqrt.pop %v1264
  %v1297 = vrsqrt.pop %v1265
  %v1298 = vrsqrt.pop %v1266
  %v1299 = vrsqrt.pop %v1267
  %v1300 = vrsqrt.pop %v1268
  %v1301 = vmul.f32 %v1173, %v1269
  %v1302 = vmul.f32 %v1174, %v1269
  %v1303 = vmul.f32 %v1175, %v1270
  %v1304 = vmul.f32 %v1176, %v1270
  %v1305 = vmul.f32 %v1177, %v1271
  %v1306 = vmul.f32 %v1178, %v1271
  %v1307 = vmul.f32 %v1179, %v1272
  %v1308 = vmul.f32 %v1180, %v1272
  %v1309 = vmul.f32 %v1181, %v1273
  %v1310 = vmul.f32 %v1182, %v1273
  %v1311 = vmul.f32 %v1183, %v1274
  %v1312 = vmul.f32 %v1184, %v1274
  %v1313 = vmul.f32 %v1185, %v1275
  %v1314 = vmul.f32 %v1186, %v1275
  %v1315 = vmul.f32 %v1187, %v1276
  %v1316 = vmul.f32 %v1188, %v1276
  %v1317 = vmul.f32 %v1189, %v1277
  %v1318 = vmul.f32 %v1190, %v1277
  %v1319 = vmul.f32 %v1191, %v1278
  %v1320 = vmul.f32 %v1192, %v1278
  %v1321 = vmul.f32 %v1193, %v1279
  %v1322 = vmul.f32 %v1194, %v1279
  %v1323 = vmul.f32 %v1195, %v1280
  %v1324 = vmul.f32 %v1196, %v1280
  %v1325 = vmul.f32 %v1197, %v1281
  %v1326 = vmul.f32 %v1198, %v1281
  %v1327 = vmul.f32 %v1199, %v1282
  %v1328 = vmul.f32 %v1200, %v1282
  %v1329 = vmul.f32 %v1201, %v1283
  %v1330 = vmul.f32 %v1202, %v1283
  %v1331 = vmul.f32 %v1203, %v1284
  %v1332 = vmul.f32 %v1204, %v1284
  %v1333 = vmul.f32 %v1205, %v1285
  %v1334 = vmul.f32 %v1206, %v1285
  %v1335 = vmul.f32 %v1207, %v1286
  %v1336 = vmul.f32 %v1208, %v1286
  %v1337 = vmul.f32 %v1209, %v1287
  %v1338 = vmul.f32 %v1210, %v1287
  %v1339 = vmul.f32 %v1211, %v1288
  %v1340 = vmul.f32 %v1212, %v1288
  %v1341 = vmul.f32 %v1213, %v1289
  %v1342 = vmul.f32 %v1214, %v1289
  %v1343 = vmul.f32 %v1215, %v1290
  %v1344 = vmul.f32 %v1216, %v1290
  %v1345 = vmul.f32 %v1217, %v1291
  %v1346 = vmul.f32 %v1218, %v1291
  %v1347 = vmul.f32 %v1219, %v1292
  %v1348 = vmul.f32 %v1220, %v1292
  %v1349 = vmul.f32 %v1221, %v1293
  %v1350 = vmul.f32 %v1222, %v1293
  %v1351 = vmul.f32 %v1223, %v1294
  %v1352 = vmul.f32 %v1224, %v1294
  %v1353 = vmul.f32 %v1225, %v1295
  %v1354 = vmul.f32 %v1226, %v1295
  %v1355 = vmul.f32 %v1227, %v1296
  %v1356 = vmul.f32 %v1228, %v1296
  %v1357 = vmul.f32 %v1229, %v1297
  %v1358 = vmul.f32 %v1230, %v1297
  %v1359 = vmul.f32 %v1231, %v1298
  %v1360 = vmul.f32 %v1232, %v1298
  %v1361 = vmul.f32 %v1233, %v1299
  %v1362 = vmul.f32 %v1234, %v1299
  %v1363 = vmul.f32 %v1235, %v1300
  %v1364 = vmul.f32 %v1236, %v1300
  %v1366 = vlaneseq
  %v1367 = vshrl.u32 %v1366, 7
  %v1368 = vsub.s32 0, %v1367
  %v1369 = vrot.slane %v29, %v1368
  %v1370 = vlaneseq
  %v1371 = vshrl.u32 %v1370, 7
  %v1372 = vsub.s32 1, %v1371
  %v1373 = vrot.slane %v29, %v1372
  %v1376 = vmul.f32 %v1301, %v1369
  %v1377 = vmul.f32 %v1302, %v1373
  %v1378 = vmul.f32 %v1303, %v1369
  %v1379 = vmul.f32 %v1304, %v1373
  %v1380 = vmul.f32 %v1305, %v1369
  %v1381 = vmul.f32 %v1306, %v1373
  %v1382 = vmul.f32 %v1307, %v1369
  %v1383 = vmul.f32 %v1308, %v1373
  %v1384 = vmul.f32 %v1309, %v1369
  %v1385 = vmul.f32 %v1310, %v1373
  %v1386 = vmul.f32 %v1311, %v1369
  %v1387 = vmul.f32 %v1312, %v1373
  %v1388 = vmul.f32 %v1313, %v1369
  %v1389 = vmul.f32 %v1314, %v1373
  %v1390 = vmul.f32 %v1315, %v1369
  %v1391 = vmul.f32 %v1316, %v1373
  %v1392 = vmul.f32 %v1317, %v1369
  %v1393 = vmul.f32 %v1318, %v1373
  %v1394 = vmul.f32 %v1319, %v1369
  %v1395 = vmul.f32 %v1320, %v1373
  %v1396 = vmul.f32 %v1321, %v1369
  %v1397 = vmul.f32 %v1322, %v1373
  %v1398 = vmul.f32 %v1323, %v1369
  %v1399 = vmul.f32 %v1324, %v1373
  %v1400 = vmul.f32 %v1325, %v1369
  %v1401 = vmul.f32 %v1326, %v1373
  %v1402 = vmul.f32 %v1327, %v1369
  %v1403 = vmul.f32 %v1328, %v1373
  %v1404 = vmul.f32 %v1329, %v1369
  %v1405 = vmul.f32 %v1330, %v1373
  %v1406 = vmul.f32 %v1331, %v1369
  %v1407 = vmul.f32 %v1332, %v1373
  %v1408 = vmul.f32 %v1333, %v1369
  %v1409 = vmul.f32 %v1334, %v1373
  %v1410 = vmul.f32 %v1335, %v1369
  %v1411 = vmul.f32 %v1336, %v1373
  %v1412 = vmul.f32 %v1337, %v1369
  %v1413 = vmul.f32 %v1338, %v1373
  %v1414 = vmul.f32 %v1339, %v1369
  %v1415 = vmul.f32 %v1340, %v1373
  %v1416 = vmul.f32 %v1341, %v1369
  %v1417 = vmul.f32 %v1342, %v1373
  %v1418 = vmul.f32 %v1343, %v1369
  %v1419 = vmul.f32 %v1344, %v1373
  %v1420 = vmul.f32 %v1345, %v1369
  %v1421 = vmul.f32 %v1346, %v1373
  %v1422 = vmul.f32 %v1347, %v1369
  %v1423 = vmul.f32 %v1348, %v1373
  %v1424 = vmul.f32 %v1349, %v1369
  %v1425 = vmul.f32 %v1350, %v1373
  %v1426 = vmul.f32 %v1351, %v1369
  %v1427 = vmul.f32 %v1352, %v1373
  %v1428 = vmul.f32 %v1353, %v1369
  %v1429 = vmul.f32 %v1354, %v1373
  %v1430 = vmul.f32 %v1355, %v1369
  %v1431 = vmul.f32 %v1356, %v1373
  %v1432 = vmul.f32 %v1357, %v1369
  %v1433 = vmul.f32 %v1358, %v1373
  %v1434 = vmul.f32 %v1359, %v1369
  %v1435 = vmul.f32 %v1360, %v1373
  %v1436 = vmul.f32 %v1361, %v1369
  %v1437 = vmul.f32 %v1362, %v1373
  %v1438 = vmul.f32 %v1363, %v1369
  %v1439 = vmul.f32 %v1364, %v1373
  %v1441 = vlaneseq
  %v1442 = vshrl.u32 %v1441, 7
  %v1443 = vsub.s32 0, %v1442
  %v1444 = vrot.slane %v31, %v1443
  %v1445 = vlaneseq
  %v1446 = vshrl.u32 %v1445, 7
  %v1447 = vsub.s32 1, %v1446
  %v1448 = vrot.slane %v31, %v1447
  %v1451 = vadd.f32 %v1376, %v1444
  %v1452 = vadd.f32 %v1377, %v1448
  %v1453 = vadd.f32 %v1378, %v1444
  %v1454 = vadd.f32 %v1379, %v1448
  %v1455 = vadd.f32 %v1380, %v1444
  %v1456 = vadd.f32 %v1381, %v1448
  %v1457 = vadd.f32 %v1382, %v1444
  %v1458 = vadd.f32 %v1383, %v1448
  %v1459 = vadd.f32 %v1384, %v1444
  %v1460 = vadd.f32 %v1385, %v1448
  %v1461 = vadd.f32 %v1386, %v1444
  %v1462 = vadd.f32 %v1387, %v1448
  %v1463 = vadd.f32 %v1388, %v1444
  %v1464 = vadd.f32 %v1389, %v1448
  %v1465 = vadd.f32 %v1390, %v1444
  %v1466 = vadd.f32 %v1391, %v1448
  %v1467 = vadd.f32 %v1392, %v1444
  %v1468 = vadd.f32 %v1393, %v1448
  %v1469 = vadd.f32 %v1394, %v1444
  %v1470 = vadd.f32 %v1395, %v1448
  %v1471 = vadd.f32 %v1396, %v1444
  %v1472 = vadd.f32 %v1397, %v1448
  %v1473 = vadd.f32 %v1398, %v1444
  %v1474 = vadd.f32 %v1399, %v1448
  %v1475 = vadd.f32 %v1400, %v1444
  %v1476 = vadd.f32 %v1401, %v1448
  %v1477 = vadd.f32 %v1402, %v1444
  %v1478 = vadd.f32 %v1403, %v1448
  %v1479 = vadd.f32 %v1404, %v1444
  %v1480 = vadd.f32 %v1405, %v1448
  %v1481 = vadd.f32 %v1406, %v1444
  %v1482 = vadd.f32 %v1407, %v1448
  %v1483 = vadd.f32 %v1408, %v1444
  %v1484 = vadd.f32 %v1409, %v1448
  %v1485 = vadd.f32 %v1410, %v1444
  %v1486 = vadd.f32 %v1411, %v1448
  %v1487 = vadd.f32 %v1412, %v1444
  %v1488 = vadd.f32 %v1413, %v1448
  %v1489 = vadd.f32 %v1414, %v1444
  %v1490 = vadd.f32 %v1415, %v1448
  %v1491 = vadd.f32 %v1416, %v1444
  %v1492 = vadd.f32 %v1417, %v1448
  %v1493 = vadd.f32 %v1418, %v1444
  %v1494 = vadd.f32 %v1419, %v1448
  %v1495 = vadd.f32 %v1420, %v1444
  %v1496 = vadd.f32 %v1421, %v1448
  %v1497 = vadd.f32 %v1422, %v1444
  %v1498 = vadd.f32 %v1423, %v1448
  %v1499 = vadd.f32 %v1424, %v1444
  %v1500 = vadd.f32 %v1425, %v1448
  %v1501 = vadd.f32 %v1426, %v1444
  %v1502 = vadd.f32 %v1427, %v1448
  %v1503 = vadd.f32 %v1428, %v1444
  %v1504 = vadd.f32 %v1429, %v1448
  %v1505 = vadd.f32 %v1430, %v1444
  %v1506 = vadd.f32 %v1431, %v1448
  %v1507 = vadd.f32 %v1432, %v1444
  %v1508 = vadd.f32 %v1433, %v1448
  %v1509 = vadd.f32 %v1434, %v1444
  %v1510 = vadd.f32 %v1435, %v1448
  %v1511 = vadd.f32 %v1436, %v1444
  %v1512 = vadd.f32 %v1437, %v1448
  %v1513 = vadd.f32 %v1438, %v1444
  %v1514 = vadd.f32 %v1439, %v1448
  %v1515 = vmax.f32 %v1451, 0.0
  %v1516 = vmax.f32 %v1452, 0.0
  %v1517 = vmax.f32 %v1453, 0.0
  %v1518 = vmax.f32 %v1454, 0.0
  %v1519 = vmax.f32 %v1455, 0.0
  %v1520 = vmax.f32 %v1456, 0.0
  %v1521 = vmax.f32 %v1457, 0.0
  %v1522 = vmax.f32 %v1458, 0.0
  %v1523 = vmax.f32 %v1459, 0.0
  %v1524 = vmax.f32 %v1460, 0.0
  %v1525 = vmax.f32 %v1461, 0.0
  %v1526 = vmax.f32 %v1462, 0.0
  %v1527 = vmax.f32 %v1463, 0.0
  %v1528 = vmax.f32 %v1464, 0.0
  %v1529 = vmax.f32 %v1465, 0.0
  %v1530 = vmax.f32 %v1466, 0.0
  %v1531 = vmax.f32 %v1467, 0.0
  %v1532 = vmax.f32 %v1468, 0.0
  %v1533 = vmax.f32 %v1469, 0.0
  %v1534 = vmax.f32 %v1470, 0.0
  %v1535 = vmax.f32 %v1471, 0.0
  %v1536 = vmax.f32 %v1472, 0.0
  %v1537 = vmax.f32 %v1473, 0.0
  %v1538 = vmax.f32 %v1474, 0.0
  %v1539 = vmax.f32 %v1475, 0.0
  %v1540 = vmax.f32 %v1476, 0.0
  %v1541 = vmax.f32 %v1477, 0.0
  %v1542 = vmax.f32 %v1478, 0.0
  %v1543 = vmax.f32 %v1479, 0.0
  %v1544 = vmax.f32 %v1480, 0.0
  %v1545 = vmax.f32 %v1481, 0.0
  %v1546 = vmax.f32 %v1482, 0.0
  %v1547 = vmax.f32 %v1483, 0.0
  %v1548 = vmax.f32 %v1484, 0.0
  %v1549 = vmax.f32 %v1485, 0.0
  %v1550 = vmax.f32 %v1486, 0.0
  %v1551 = vmax.f32 %v1487, 0.0
  %v1552 = vmax.f32 %v1488, 0.0
  %v1553 = vmax.f32 %v1489, 0.0
  %v1554 = vmax.f32 %v1490, 0.0
  %v1555 = vmax.f32 %v1491, 0.0
  %v1556 = vmax.f32 %v1492, 0.0
  %v1557 = vmax.f32 %v1493, 0.0
  %v1558 = vmax.f32 %v1494, 0.0
  %v1559 = vmax.f32 %v1495, 0.0
  %v1560 = vmax.f32 %v1496, 0.0
  %v1561 = vmax.f32 %v1497, 0.0
  %v1562 = vmax.f32 %v1498, 0.0
  %v1563 = vmax.f32 %v1499, 0.0
  %v1564 = vmax.f32 %v1500, 0.0
  %v1565 = vmax.f32 %v1501, 0.0
  %v1566 = vmax.f32 %v1502, 0.0
  %v1567 = vmax.f32 %v1503, 0.0
  %v1568 = vmax.f32 %v1504, 0.0
  %v1569 = vmax.f32 %v1505, 0.0
  %v1570 = vmax.f32 %v1506, 0.0
  %v1571 = vmax.f32 %v1507, 0.0
  %v1572 = vmax.f32 %v1508, 0.0
  %v1573 = vmax.f32 %v1509, 0.0
  %v1574 = vmax.f32 %v1510, 0.0
  %v1575 = vmax.f32 %v1511, 0.0
  %v1576 = vmax.f32 %v1512, 0.0
  %v1577 = vmax.f32 %v1513, 0.0
  %v1578 = vmax.f32 %v1514, 0.0
  %v1579 = vpack.c.bf16 %v1517, %v1515
  %v1580 = vpack.c.bf16 %v1518, %v1516
  %v1581 = vpack.c.bf16 %v1521, %v1519
  %v1582 = vpack.c.bf16 %v1522, %v1520
  %v1583 = vpack.c.bf16 %v1525, %v1523
  %v1584 = vpack.c.bf16 %v1526, %v1524
  %v1585 = vpack.c.bf16 %v1529, %v1527
  %v1586 = vpack.c.bf16 %v1530, %v1528
  %v1587 = vpack.c.bf16 %v1533, %v1531
  %v1588 = vpack.c.bf16 %v1534, %v1532
  %v1589 = vpack.c.bf16 %v1537, %v1535
  %v1590 = vpack.c.bf16 %v1538, %v1536
  %v1591 = vpack.c.bf16 %v1541, %v1539
  %v1592 = vpack.c.bf16 %v1542, %v1540
  %v1593 = vpack.c.bf16 %v1545, %v1543
  %v1594 = vpack.c.bf16 %v1546, %v1544
  %v1595 = vpack.c.bf16 %v1549, %v1547
  %v1596 = vpack.c.bf16 %v1550, %v1548
  %v1597 = vpack.c.bf16 %v1553, %v1551
  %v1598 = vpack.c.bf16 %v1554, %v1552
  %v1599 = vpack.c.bf16 %v1557, %v1555
  %v1600 = vpack.c.bf16 %v1558, %v1556
  %v1601 = vpack.c.bf16 %v1561, %v1559
  %v1602 = vpack.c.bf16 %v1562, %v1560
  %v1603 = vpack.c.bf16 %v1565, %v1563
  %v1604 = vpack.c.bf16 %v1566, %v1564
  %v1605 = vpack.c.bf16 %v1569, %v1567
  %v1606 = vpack.c.bf16 %v1570, %v1568
  %v1607 = vpack.c.bf16 %v1573, %v1571
  %v1608 = vpack.c.bf16 %v1574, %v1572
  %v1609 = vpack.c.bf16 %v1577, %v1575
  %v1610 = vpack.c.bf16 %v1578, %v1576
  %v1611 = vld [vmem:[%s4] sm:$0xff]
  %v1612 = vld [vmem:[%s4 + $0x8] sm:$0xff]
  %v1613 = vld [vmem:[%s4 + $0x10] sm:$0xff]
  %v1614 = vld [vmem:[%s4 + $0x18] sm:$0xff]
  %v1615 = vld [vmem:[%s4 + $0x20] sm:$0xff]
  %v1616 = vld [vmem:[%s4 + $0x28] sm:$0xff]
  %v1617 = vld [vmem:[%s4 + $0x30] sm:$0xff]
  %v1618 = vld [vmem:[%s4 + $0x38] sm:$0xff]
  %v1619 = vld [vmem:[%s4 + $0x40] sm:$0xff]
  %v1620 = vld [vmem:[%s4 + $0x48] sm:$0xff]
  %v1621 = vld [vmem:[%s4 + $0x50] sm:$0xff]
  %v1622 = vld [vmem:[%s4 + $0x58] sm:$0xff]
  %v1623 = vld [vmem:[%s4 + $0x60] sm:$0xff]
  %v1624 = vld [vmem:[%s4 + $0x68] sm:$0xff]
  %v1625 = vld [vmem:[%s4 + $0x70] sm:$0xff]
  %v1626 = vld [vmem:[%s4 + $0x78] sm:$0xff]
  %v1627 = vld [vmem:[%s4 + $0x80] sm:$0xff]
  %v1628 = vld [vmem:[%s4 + $0x88] sm:$0xff]
  %v1629 = vld [vmem:[%s4 + $0x90] sm:$0xff]
  %v1630 = vld [vmem:[%s4 + $0x98] sm:$0xff]
  %v1631 = vld [vmem:[%s4 + $0xa0] sm:$0xff]
  %v1632 = vld [vmem:[%s4 + $0xa8] sm:$0xff]
  %v1633 = vld [vmem:[%s4 + $0xb0] sm:$0xff]
  %v1634 = vld [vmem:[%s4 + $0xb8] sm:$0xff]
  %v1635 = vld [vmem:[%s4 + $0xc0] sm:$0xff]
  %v1636 = vld [vmem:[%s4 + $0xc8] sm:$0xff]
  %v1637 = vld [vmem:[%s4 + $0xd0] sm:$0xff]
  %v1638 = vld [vmem:[%s4 + $0xd8] sm:$0xff]
  %v1639 = vld [vmem:[%s4 + $0xe0] sm:$0xff]
  %v1640 = vld [vmem:[%s4 + $0xe8] sm:$0xff]
  %v1641 = vld [vmem:[%s4 + $0xf0] sm:$0xff]
  %v1642 = vld [vmem:[%s4 + $0xf8] sm:$0xff]
  %v1644 = vlaneseq
  %v1645 = vshrl.u32 %v1644, 7
  %v1646 = vsub.s32 0, %v1645
  %v1647 = vrot.slane %v33, %v1646
  %v1648 = vlaneseq
  %v1649 = vshrl.u32 %v1648, 7
  %v1650 = vsub.s32 1, %v1649
  %v1651 = vrot.slane %v33, %v1650
  %v1686 = vunpack.c.l.b16 %v1611
  %v1687 = vunpack.c.h.b16 %v1611
  %v1688 = vunpack.c.l.b16 %v1612
  %v1689 = vunpack.c.h.b16 %v1612
  %v1690 = vunpack.c.l.b16 %v1613
  %v1691 = vunpack.c.h.b16 %v1613
  %v1692 = vunpack.c.l.b16 %v1614
  %v1693 = vunpack.c.h.b16 %v1614
  %v1694 = vunpack.c.l.b16 %v1615
  %v1695 = vunpack.c.h.b16 %v1615
  %v1696 = vunpack.c.l.b16 %v1616
  %v1697 = vunpack.c.h.b16 %v1616
  %v1698 = vunpack.c.l.b16 %v1617
  %v1699 = vunpack.c.h.b16 %v1617
  %v1700 = vunpack.c.l.b16 %v1618
  %v1701 = vunpack.c.h.b16 %v1618
  %v1702 = vunpack.c.l.b16 %v1619
  %v1703 = vunpack.c.h.b16 %v1619
  %v1704 = vunpack.c.l.b16 %v1620
  %v1705 = vunpack.c.h.b16 %v1620
  %v1706 = vunpack.c.l.b16 %v1621
  %v1707 = vunpack.c.h.b16 %v1621
  %v1708 = vunpack.c.l.b16 %v1622
  %v1709 = vunpack.c.h.b16 %v1622
  %v1710 = vunpack.c.l.b16 %v1623
  %v1711 = vunpack.c.h.b16 %v1623
  %v1712 = vunpack.c.l.b16 %v1624
  %v1713 = vunpack.c.h.b16 %v1624
  %v1714 = vunpack.c.l.b16 %v1625
  %v1715 = vunpack.c.h.b16 %v1625
  %v1716 = vunpack.c.l.b16 %v1626
  %v1717 = vunpack.c.h.b16 %v1626
  %v1718 = vunpack.c.l.b16 %v1627
  %v1719 = vunpack.c.h.b16 %v1627
  %v1720 = vunpack.c.l.b16 %v1628
  %v1721 = vunpack.c.h.b16 %v1628
  %v1722 = vunpack.c.l.b16 %v1629
  %v1723 = vunpack.c.h.b16 %v1629
  %v1724 = vunpack.c.l.b16 %v1630
  %v1725 = vunpack.c.h.b16 %v1630
  %v1726 = vunpack.c.l.b16 %v1631
  %v1727 = vunpack.c.h.b16 %v1631
  %v1728 = vunpack.c.l.b16 %v1632
  %v1729 = vunpack.c.h.b16 %v1632
  %v1730 = vunpack.c.l.b16 %v1633
  %v1731 = vunpack.c.h.b16 %v1633
  %v1732 = vunpack.c.l.b16 %v1634
  %v1733 = vunpack.c.h.b16 %v1634
  %v1734 = vunpack.c.l.b16 %v1635
  %v1735 = vunpack.c.h.b16 %v1635
  %v1736 = vunpack.c.l.b16 %v1636
  %v1737 = vunpack.c.h.b16 %v1636
  %v1738 = vunpack.c.l.b16 %v1637
  %v1739 = vunpack.c.h.b16 %v1637
  %v1740 = vunpack.c.l.b16 %v1638
  %v1741 = vunpack.c.h.b16 %v1638
  %v1742 = vunpack.c.l.b16 %v1639
  %v1743 = vunpack.c.h.b16 %v1639
  %v1744 = vunpack.c.l.b16 %v1640
  %v1745 = vunpack.c.h.b16 %v1640
  %v1746 = vunpack.c.l.b16 %v1641
  %v1747 = vunpack.c.h.b16 %v1641
  %v1748 = vunpack.c.l.b16 %v1642
  %v1749 = vunpack.c.h.b16 %v1642
  %v1750 = vpack.c.b16 %v1688, %v1686
  %v1751 = vpack.c.b16 %v1689, %v1687
  %v1752 = vpack.c.b16 %v1692, %v1690
  %v1753 = vpack.c.b16 %v1693, %v1691
  %v1754 = vpack.c.b16 %v1696, %v1694
  %v1755 = vpack.c.b16 %v1697, %v1695
  %v1756 = vpack.c.b16 %v1700, %v1698
  %v1757 = vpack.c.b16 %v1701, %v1699
  %v1758 = vpack.c.b16 %v1704, %v1702
  %v1759 = vpack.c.b16 %v1705, %v1703
  %v1760 = vpack.c.b16 %v1708, %v1706
  %v1761 = vpack.c.b16 %v1709, %v1707
  %v1762 = vpack.c.b16 %v1712, %v1710
  %v1763 = vpack.c.b16 %v1713, %v1711
  %v1764 = vpack.c.b16 %v1716, %v1714
  %v1765 = vpack.c.b16 %v1717, %v1715
  %v1766 = vpack.c.b16 %v1720, %v1718
  %v1767 = vpack.c.b16 %v1721, %v1719
  %v1768 = vpack.c.b16 %v1724, %v1722
  %v1769 = vpack.c.b16 %v1725, %v1723
  %v1770 = vpack.c.b16 %v1728, %v1726
  %v1771 = vpack.c.b16 %v1729, %v1727
  %v1772 = vpack.c.b16 %v1732, %v1730
  %v1773 = vpack.c.b16 %v1733, %v1731
  %v1774 = vpack.c.b16 %v1736, %v1734
  %v1775 = vpack.c.b16 %v1737, %v1735
  %v1776 = vpack.c.b16 %v1740, %v1738
  %v1777 = vpack.c.b16 %v1741, %v1739
  %v1778 = vpack.c.b16 %v1744, %v1742
  %v1779 = vpack.c.b16 %v1745, %v1743
  %v1780 = vpack.c.b16 %v1748, %v1746
  %v1781 = vpack.c.b16 %v1749, %v1747
  %1814 = vmatprep.subr.bf16.mxu0 %v1751
  %1815 = vmatpush1.bf16.msra.mxu0 %v1750
  %1816 = vmatprep.subr.bf16.mxu0 %v1753
  %1817 = vmatpush1.bf16.msra.mxu0 %v1752
  %1818 = vmatprep.subr.bf16.mxu0 %v1755
  %1819 = vmatpush1.bf16.msra.mxu0 %v1754
  %1820 = vmatprep.subr.bf16.mxu0 %v1757
  %1821 = vmatpush1.bf16.msra.mxu0 %v1756
  %1822 = vmatprep.subr.bf16.mxu0 %v1759
  %1823 = vmatpush1.bf16.msra.mxu0 %v1758
  %1824 = vmatprep.subr.bf16.mxu0 %v1761
  %1825 = vmatpush1.bf16.msra.mxu0 %v1760
  %1826 = vmatprep.subr.bf16.mxu0 %v1763
  %1827 = vmatpush1.bf16.msra.mxu0 %v1762
  %1828 = vmatprep.subr.bf16.mxu0 %v1765
  %1829 = vmatpush1.bf16.msra.mxu0 %v1764
  %1830 = vmatprep.subr.bf16.mxu0 %v1767
  %1831 = vmatpush1.bf16.msra.mxu0 %v1766
  %1832 = vmatprep.subr.bf16.mxu0 %v1769
  %1833 = vmatpush1.bf16.msra.mxu0 %v1768
  %1834 = vmatprep.subr.bf16.mxu0 %v1771
  %1835 = vmatpush1.bf16.msra.mxu0 %v1770
  %1836 = vmatprep.subr.bf16.mxu0 %v1773
  %1837 = vmatpush1.bf16.msra.mxu0 %v1772
  %1838 = vmatprep.subr.bf16.mxu0 %v1775
  %1839 = vmatpush1.bf16.msra.mxu0 %v1774
  %1840 = vmatprep.subr.bf16.mxu0 %v1777
  %1841 = vmatpush1.bf16.msra.mxu0 %v1776
  %1842 = vmatprep.subr.bf16.mxu0 %v1779
  %1843 = vmatpush1.bf16.msra.mxu0 %v1778
  %1844 = vmatprep.subr.bf16.mxu0 %v1781
  %1845 = vmatpush1.bf16.msra.mxu0 %v1780
  %1846 = vmatprep.mubr.bf16.mxu0 %v1580
  %1847 = vmatmul.mubr.bf16.gmra.mrb[0].mxu0 %v1579
  %v1848 = vpop.f32.mrb[0].mxu0
  %v1849 = vadd.f32 %v1647, %v1848
  %v1850 = vpop.f32.mrb[0].mxu0
  %v1851 = vadd.f32 %v1651, %v1850
  %v1852 = vpop.f32.mrb[0].mxu0
  %v1853 = vadd.f32 %v1647, %v1852
  %v1854 = vpop.f32.mrb[0].mxu0
  %v1855 = vadd.f32 %v1651, %v1854
  %1856 = vmatprep.mubr.bf16.mxu0 %v1582
  %1857 = vmatmul.mubr.bf16.gmra.mrb[0].mxu0 %v1581
  %v1858 = vpop.f32.mrb[0].mxu0
  %v1859 = vadd.f32 %v1647, %v1858
  %v1860 = vpop.f32.mrb[0].mxu0
  %v1861 = vadd.f32 %v1651, %v1860
  %v1862 = vpop.f32.mrb[0].mxu0
  %v1863 = vadd.f32 %v1647, %v1862
  %v1864 = vpop.f32.mrb[0].mxu0
  %v1865 = vadd.f32 %v1651, %v1864
  %1866 = vmatprep.mubr.bf16.mxu0 %v1584
  %1867 = vmatmul.mubr.bf16.gmra.mrb[0].mxu0 %v1583
  %v1868 = vpop.f32.mrb[0].mxu0
  %v1869 = vadd.f32 %v1647, %v1868
  %v1870 = vpop.f32.mrb[0].mxu0
  %v1871 = vadd.f32 %v1651, %v1870
  %v1872 = vpop.f32.mrb[0].mxu0
  %v1873 = vadd.f32 %v1647, %v1872
  %v1874 = vpop.f32.mrb[0].mxu0
  %v1875 = vadd.f32 %v1651, %v1874
  %1876 = vmatprep.mubr.bf16.mxu0 %v1586
  %1877 = vmatmul.mubr.bf16.gmra.mrb[0].mxu0 %v1585
  %v1878 = vpop.f32.mrb[0].mxu0
  %v1879 = vadd.f32 %v1647, %v1878
  %v1880 = vpop.f32.mrb[0].mxu0
  %v1881 = vadd.f32 %v1651, %v1880
  %v1882 = vpop.f32.mrb[0].mxu0
  %v1883 = vadd.f32 %v1647, %v1882
  %v1884 = vpop.f32.mrb[0].mxu0
  %v1885 = vadd.f32 %v1651, %v1884
  %1886 = vmatprep.mubr.bf16.mxu0 %v1588
  %1887 = vmatmul.mubr.bf16.gmra.mrb[0].mxu0 %v1587
  %v1888 = vpop.f32.mrb[0].mxu0
  %v1889 = vadd.f32 %v1647, %v1888
  %v1890 = vpop.f32.mrb[0].mxu0
  %v1891 = vadd.f32 %v1651, %v1890
  %v1892 = vpop.f32.mrb[0].mxu0
  %v1893 = vadd.f32 %v1647, %v1892
  %v1894 = vpop.f32.mrb[0].mxu0
  %v1895 = vadd.f32 %v1651, %v1894
  %1896 = vmatprep.mubr.bf16.mxu0 %v1590
  %1897 = vmatmul.mubr.bf16.gmra.mrb[0].mxu0 %v1589
  %v1898 = vpop.f32.mrb[0].mxu0
  %v1899 = vadd.f32 %v1647, %v1898
  %v1900 = vpop.f32.mrb[0].mxu0
  %v1901 = vadd.f32 %v1651, %v1900
  %v1902 = vpop.f32.mrb[0].mxu0
  %v1903 = vadd.f32 %v1647, %v1902
  %v1904 = vpop.f32.mrb[0].mxu0
  %v1905 = vadd.f32 %v1651, %v1904
  %1906 = vmatprep.mubr.bf16.mxu0 %v1592
  %1907 = vmatmul.mubr.bf16.gmra.mrb[0].mxu0 %v1591
  %v1908 = vpop.f32.mrb[0].mxu0
  %v1909 = vadd.f32 %v1647, %v1908
  %v1910 = vpop.f32.mrb[0].mxu0
  %v1911 = vadd.f32 %v1651, %v1910
  %v1912 = vpop.f32.mrb[0].mxu0
  %v1913 = vadd.f32 %v1647, %v1912
  %v1914 = vpop.f32.mrb[0].mxu0
  %v1915 = vadd.f32 %v1651, %v1914
  %1916 = vmatprep.mubr.bf16.mxu0 %v1594
  %1917 = vmatmul.mubr.bf16.gmra.mrb[0].mxu0 %v1593
  %v1918 = vpop.f32.mrb[0].mxu0
  %v1919 = vadd.f32 %v1647, %v1918
  %v1920 = vpop.f32.mrb[0].mxu0
  %v1921 = vadd.f32 %v1651, %v1920
  %v1922 = vpop.f32.mrb[0].mxu0
  %v1923 = vadd.f32 %v1647, %v1922
  %v1924 = vpop.f32.mrb[0].mxu0
  %v1925 = vadd.f32 %v1651, %v1924
  %1926 = vmatprep.mubr.bf16.mxu0 %v1596
  %1927 = vmatmul.mubr.bf16.gmra.mrb[0].mxu0 %v1595
  %v1928 = vpop.f32.mrb[0].mxu0
  %v1929 = vadd.f32 %v1647, %v1928
  %v1930 = vpop.f32.mrb[0].mxu0
  %v1931 = vadd.f32 %v1651, %v1930
  %v1932 = vpop.f32.mrb[0].mxu0
  %v1933 = vadd.f32 %v1647, %v1932
  %v1934 = vpop.f32.mrb[0].mxu0
  %v1935 = vadd.f32 %v1651, %v1934
  %1936 = vmatprep.mubr.bf16.mxu0 %v1598
  %1937 = vmatmul.mubr.bf16.gmra.mrb[0].mxu0 %v1597
  %v1938 = vpop.f32.mrb[0].mxu0
  %v1939 = vadd.f32 %v1647, %v1938
  %v1940 = vpop.f32.mrb[0].mxu0
  %v1941 = vadd.f32 %v1651, %v1940
  %v1942 = vpop.f32.mrb[0].mxu0
  %v1943 = vadd.f32 %v1647, %v1942
  %v1944 = vpop.f32.mrb[0].mxu0
  %v1945 = vadd.f32 %v1651, %v1944
  %1946 = vmatprep.mubr.bf16.mxu0 %v1600
  %1947 = vmatmul.mubr.bf16.gmra.mrb[0].mxu0 %v1599
  %v1948 = vpop.f32.mrb[0].mxu0
  %v1949 = vadd.f32 %v1647, %v1948
  %v1950 = vpop.f32.mrb[0].mxu0
  %v1951 = vadd.f32 %v1651, %v1950
  %v1952 = vpop.f32.mrb[0].mxu0
  %v1953 = vadd.f32 %v1647, %v1952
  %v1954 = vpop.f32.mrb[0].mxu0
  %v1955 = vadd.f32 %v1651, %v1954
  %1956 = vmatprep.mubr.bf16.mxu0 %v1602
  %1957 = vmatmul.mubr.bf16.gmra.mrb[0].mxu0 %v1601
  %v1958 = vpop.f32.mrb[0].mxu0
  %v1959 = vadd.f32 %v1647, %v1958
  %v1960 = vpop.f32.mrb[0].mxu0
  %v1961 = vadd.f32 %v1651, %v1960
  %v1962 = vpop.f32.mrb[0].mxu0
  %v1963 = vadd.f32 %v1647, %v1962
  %v1964 = vpop.f32.mrb[0].mxu0
  %v1965 = vadd.f32 %v1651, %v1964
  %1966 = vmatprep.mubr.bf16.mxu0 %v1604
  %1967 = vmatmul.mubr.bf16.gmra.mrb[0].mxu0 %v1603
  %v1968 = vpop.f32.mrb[0].mxu0
  %v1969 = vadd.f32 %v1647, %v1968
  %v1970 = vpop.f32.mrb[0].mxu0
  %v1971 = vadd.f32 %v1651, %v1970
  %v1972 = vpop.f32.mrb[0].mxu0
  %v1973 = vadd.f32 %v1647, %v1972
  %v1974 = vpop.f32.mrb[0].mxu0
  %v1975 = vadd.f32 %v1651, %v1974
  %1976 = vmatprep.mubr.bf16.mxu0 %v1606
  %1977 = vmatmul.mubr.bf16.gmra.mrb[0].mxu0 %v1605
  %v1978 = vpop.f32.mrb[0].mxu0
  %v1979 = vadd.f32 %v1647, %v1978
  %v1980 = vpop.f32.mrb[0].mxu0
  %v1981 = vadd.f32 %v1651, %v1980
  %v1982 = vpop.f32.mrb[0].mxu0
  %v1983 = vadd.f32 %v1647, %v1982
  %v1984 = vpop.f32.mrb[0].mxu0
  %v1985 = vadd.f32 %v1651, %v1984
  %1986 = vmatprep.mubr.bf16.mxu0 %v1608
  %1987 = vmatmul.mubr.bf16.gmra.mrb[0].mxu0 %v1607
  %v1988 = vpop.f32.mrb[0].mxu0
  %v1989 = vadd.f32 %v1647, %v1988
  %v1990 = vpop.f32.mrb[0].mxu0
  %v1991 = vadd.f32 %v1651, %v1990
  %v1992 = vpop.f32.mrb[0].mxu0
  %v1993 = vadd.f32 %v1647, %v1992
  %v1994 = vpop.f32.mrb[0].mxu0
  %v1995 = vadd.f32 %v1651, %v1994
  %1996 = vmatprep.mubr.bf16.mxu0 %v1610
  %1997 = vmatmul.mubr.bf16.gmra.mrb[0].mxu0 %v1609
  %v1998 = vpop.f32.mrb[0].mxu0
  %v1999 = vadd.f32 %v1647, %v1998
  %v2000 = vpop.f32.mrb[0].mxu0
  %v2001 = vadd.f32 %v1651, %v2000
  %v2002 = vpop.f32.mrb[0].mxu0
  %v2003 = vadd.f32 %v1647, %v2002
  %v2004 = vpop.f32.mrb[0].mxu0
  %v2005 = vadd.f32 %v1651, %v2004
  %2006 = vdwg.mxu0
  %v2007 = vadd.f32 %v1849, %v1851
  %2008 = vadd.xlane.f32.xlu0 %v2007
  %v2009 = vpop.xlane.xlu0 %2008
  %v2010 = vadd.f32 %v1853, %v1855
  %2011 = vadd.xlane.f32.xlu0 %v2010
  %v2012 = vpop.xlane.xlu0 %2011
  %v2013 = vadd.f32 %v1859, %v1861
  %2014 = vadd.xlane.f32.xlu0 %v2013
  %v2015 = vpop.xlane.xlu0 %2014
  %v2016 = vadd.f32 %v1863, %v1865
  %2017 = vadd.xlane.f32.xlu0 %v2016
  %v2018 = vpop.xlane.xlu0 %2017
  %v2019 = vadd.f32 %v1869, %v1871
  %2020 = vadd.xlane.f32.xlu0 %v2019
  %v2021 = vpop.xlane.xlu0 %2020
  %v2022 = vadd.f32 %v1873, %v1875
  %2023 = vadd.xlane.f32.xlu0 %v2022
  %v2024 = vpop.xlane.xlu0 %2023
  %v2025 = vadd.f32 %v1879, %v1881
  %2026 = vadd.xlane.f32.xlu0 %v2025
  %v2027 = vpop.xlane.xlu0 %2026
  %v2028 = vadd.f32 %v1883, %v1885
  %2029 = vadd.xlane.f32.xlu0 %v2028
  %v2030 = vpop.xlane.xlu0 %2029
  %v2031 = vadd.f32 %v1889, %v1891
  %2032 = vadd.xlane.f32.xlu0 %v2031
  %v2033 = vpop.xlane.xlu0 %2032
  %v2034 = vadd.f32 %v1893, %v1895
  %2035 = vadd.xlane.f32.xlu0 %v2034
  %v2036 = vpop.xlane.xlu0 %2035
  %v2037 = vadd.f32 %v1899, %v1901
  %2038 = vadd.xlane.f32.xlu0 %v2037
  %v2039 = vpop.xlane.xlu0 %2038
  %v2040 = vadd.f32 %v1903, %v1905
  %2041 = vadd.xlane.f32.xlu0 %v2040
  %v2042 = vpop.xlane.xlu0 %2041
  %v2043 = vadd.f32 %v1909, %v1911
  %2044 = vadd.xlane.f32.xlu0 %v2043
  %v2045 = vpop.xlane.xlu0 %2044
  %v2046 = vadd.f32 %v1913, %v1915
  %2047 = vadd.xlane.f32.xlu0 %v2046
  %v2048 = vpop.xlane.xlu0 %2047
  %v2049 = vadd.f32 %v1919, %v1921
  %2050 = vadd.xlane.f32.xlu0 %v2049
  %v2051 = vpop.xlane.xlu0 %2050
  %v2052 = vadd.f32 %v1923, %v1925
  %2053 = vadd.xlane.f32.xlu0 %v2052
  %v2054 = vpop.xlane.xlu0 %2053
  %v2055 = vadd.f32 %v1929, %v1931
  %2056 = vadd.xlane.f32.xlu0 %v2055
  %v2057 = vpop.xlane.xlu0 %2056
  %v2058 = vadd.f32 %v1933, %v1935
  %2059 = vadd.xlane.f32.xlu0 %v2058
  %v2060 = vpop.xlane.xlu0 %2059
  %v2061 = vadd.f32 %v1939, %v1941
  %2062 = vadd.xlane.f32.xlu0 %v2061
  %v2063 = vpop.xlane.xlu0 %2062
  %v2064 = vadd.f32 %v1943, %v1945
  %2065 = vadd.xlane.f32.xlu0 %v2064
  %v2066 = vpop.xlane.xlu0 %2065
  %v2067 = vadd.f32 %v1949, %v1951
  %2068 = vadd.xlane.f32.xlu0 %v2067
  %v2069 = vpop.xlane.xlu0 %2068
  %v2070 = vadd.f32 %v1953, %v1955
  %2071 = vadd.xlane.f32.xlu0 %v2070
  %v2072 = vpop.xlane.xlu0 %2071
  %v2073 = vadd.f32 %v1959, %v1961
  %2074 = vadd.xlane.f32.xlu0 %v2073
  %v2075 = vpop.xlane.xlu0 %2074
  %v2076 = vadd.f32 %v1963, %v1965
  %2077 = vadd.xlane.f32.xlu0 %v2076
  %v2078 = vpop.xlane.xlu0 %2077
  %v2079 = vadd.f32 %v1969, %v1971
  %2080 = vadd.xlane.f32.xlu0 %v2079
  %v2081 = vpop.xlane.xlu0 %2080
  %v2082 = vadd.f32 %v1973, %v1975
  %2083 = vadd.xlane.f32.xlu0 %v2082
  %v2084 = vpop.xlane.xlu0 %2083
  %v2085 = vadd.f32 %v1979, %v1981
  %2086 = vadd.xlane.f32.xlu0 %v2085
  %v2087 = vpop.xlane.xlu0 %2086
  %v2088 = vadd.f32 %v1983, %v1985
  %2089 = vadd.xlane.f32.xlu0 %v2088
  %v2090 = vpop.xlane.xlu0 %2089
  %v2091 = vadd.f32 %v1989, %v1991
  %2092 = vadd.xlane.f32.xlu0 %v2091
  %v2093 = vpop.xlane.xlu0 %2092
  %v2094 = vadd.f32 %v1993, %v1995
  %2095 = vadd.xlane.f32.xlu0 %v2094
  %v2096 = vpop.xlane.xlu0 %2095
  %v2097 = vadd.f32 %v1999, %v2001
  %2098 = vadd.xlane.f32.xlu0 %v2097
  %v2099 = vpop.xlane.xlu0 %2098
  %v2100 = vadd.f32 %v2003, %v2005
  %2101 = vadd.xlane.f32.xlu0 %v2100
  %v2102 = vpop.xlane.xlu0 %2101
  %v2103 = vmul.f32 %v2009, 0.00390625
  %v2104 = vmul.f32 %v2012, 0.00390625
  %v2105 = vmul.f32 %v2015, 0.00390625
  %v2106 = vmul.f32 %v2018, 0.00390625
  %v2107 = vmul.f32 %v2021, 0.00390625
  %v2108 = vmul.f32 %v2024, 0.00390625
  %v2109 = vmul.f32 %v2027, 0.00390625
  %v2110 = vmul.f32 %v2030, 0.00390625
  %v2111 = vmul.f32 %v2033, 0.00390625
  %v2112 = vmul.f32 %v2036, 0.00390625
  %v2113 = vmul.f32 %v2039, 0.00390625
  %v2114 = vmul.f32 %v2042, 0.00390625
  %v2115 = vmul.f32 %v2045, 0.00390625
  %v2116 = vmul.f32 %v2048, 0.00390625
  %v2117 = vmul.f32 %v2051, 0.00390625
  %v2118 = vmul.f32 %v2054, 0.00390625
  %v2119 = vmul.f32 %v2057, 0.00390625
  %v2120 = vmul.f32 %v2060, 0.00390625
  %v2121 = vmul.f32 %v2063, 0.00390625
  %v2122 = vmul.f32 %v2066, 0.00390625
  %v2123 = vmul.f32 %v2069, 0.00390625
  %v2124 = vmul.f32 %v2072, 0.00390625
  %v2125 = vmul.f32 %v2075, 0.00390625
  %v2126 = vmul.f32 %v2078, 0.00390625
  %v2127 = vmul.f32 %v2081, 0.00390625
  %v2128 = vmul.f32 %v2084, 0.00390625
  %v2129 = vmul.f32 %v2087, 0.00390625
  %v2130 = vmul.f32 %v2090, 0.00390625
  %v2131 = vmul.f32 %v2093, 0.00390625
  %v2132 = vmul.f32 %v2096, 0.00390625
  %v2133 = vmul.f32 %v2099, 0.00390625
  %v2134 = vmul.f32 %v2102, 0.00390625
  %v2135 = vmul.f32 %v1849, %v1849
  %v2136 = vmul.f32 %v1851, %v1851
  %v2137 = vmul.f32 %v1853, %v1853
  %v2138 = vmul.f32 %v1855, %v1855
  %v2139 = vmul.f32 %v1859, %v1859
  %v2140 = vmul.f32 %v1861, %v1861
  %v2141 = vmul.f32 %v1863, %v1863
  %v2142 = vmul.f32 %v1865, %v1865
  %v2143 = vmul.f32 %v1869, %v1869
  %v2144 = vmul.f32 %v1871, %v1871
  %v2145 = vmul.f32 %v1873, %v1873
  %v2146 = vmul.f32 %v1875, %v1875
  %v2147 = vmul.f32 %v1879, %v1879
  %v2148 = vmul.f32 %v1881, %v1881
  %v2149 = vmul.f32 %v1883, %v1883
  %v2150 = vmul.f32 %v1885, %v1885
  %v2151 = vmul.f32 %v1889, %v1889
  %v2152 = vmul.f32 %v1891, %v1891
  %v2153 = vmul.f32 %v1893, %v1893
  %v2154 = vmul.f32 %v1895, %v1895
  %v2155 = vmul.f32 %v1899, %v1899
  %v2156 = vmul.f32 %v1901, %v1901
  %v2157 = vmul.f32 %v1903, %v1903
  %v2158 = vmul.f32 %v1905, %v1905
  %v2159 = vmul.f32 %v1909, %v1909
  %v2160 = vmul.f32 %v1911, %v1911
  %v2161 = vmul.f32 %v1913, %v1913
  %v2162 = vmul.f32 %v1915, %v1915
  %v2163 = vmul.f32 %v1919, %v1919
  %v2164 = vmul.f32 %v1921, %v1921
  %v2165 = vmul.f32 %v1923, %v1923
  %v2166 = vmul.f32 %v1925, %v1925
  %v2167 = vmul.f32 %v1929, %v1929
  %v2168 = vmul.f32 %v1931, %v1931
  %v2169 = vmul.f32 %v1933, %v1933
  %v2170 = vmul.f32 %v1935, %v1935
  %v2171 = vmul.f32 %v1939, %v1939
  %v2172 = vmul.f32 %v1941, %v1941
  %v2173 = vmul.f32 %v1943, %v1943
  %v2174 = vmul.f32 %v1945, %v1945
  %v2175 = vmul.f32 %v1949, %v1949
  %v2176 = vmul.f32 %v1951, %v1951
  %v2177 = vmul.f32 %v1953, %v1953
  %v2178 = vmul.f32 %v1955, %v1955
  %v2179 = vmul.f32 %v1959, %v1959
  %v2180 = vmul.f32 %v1961, %v1961
  %v2181 = vmul.f32 %v1963, %v1963
  %v2182 = vmul.f32 %v1965, %v1965
  %v2183 = vmul.f32 %v1969, %v1969
  %v2184 = vmul.f32 %v1971, %v1971
  %v2185 = vmul.f32 %v1973, %v1973
  %v2186 = vmul.f32 %v1975, %v1975
  %v2187 = vmul.f32 %v1979, %v1979
  %v2188 = vmul.f32 %v1981, %v1981
  %v2189 = vmul.f32 %v1983, %v1983
  %v2190 = vmul.f32 %v1985, %v1985
  %v2191 = vmul.f32 %v1989, %v1989
  %v2192 = vmul.f32 %v1991, %v1991
  %v2193 = vmul.f32 %v1993, %v1993
  %v2194 = vmul.f32 %v1995, %v1995
  %v2195 = vmul.f32 %v1999, %v1999
  %v2196 = vmul.f32 %v2001, %v2001
  %v2197 = vmul.f32 %v2003, %v2003
  %v2198 = vmul.f32 %v2005, %v2005
  %v2199 = vadd.f32 %v2135, %v2136
  %2200 = vadd.xlane.f32.xlu0 %v2199
  %v2201 = vpop.xlane.xlu0 %2200
  %v2202 = vadd.f32 %v2137, %v2138
  %2203 = vadd.xlane.f32.xlu0 %v2202
  %v2204 = vpop.xlane.xlu0 %2203
  %v2205 = vadd.f32 %v2139, %v2140
  %2206 = vadd.xlane.f32.xlu0 %v2205
  %v2207 = vpop.xlane.xlu0 %2206
  %v2208 = vadd.f32 %v2141, %v2142
  %2209 = vadd.xlane.f32.xlu0 %v2208
  %v2210 = vpop.xlane.xlu0 %2209
  %v2211 = vadd.f32 %v2143, %v2144
  %2212 = vadd.xlane.f32.xlu0 %v2211
  %v2213 = vpop.xlane.xlu0 %2212
  %v2214 = vadd.f32 %v2145, %v2146
  %2215 = vadd.xlane.f32.xlu0 %v2214
  %v2216 = vpop.xlane.xlu0 %2215
  %v2217 = vadd.f32 %v2147, %v2148
  %2218 = vadd.xlane.f32.xlu0 %v2217
  %v2219 = vpop.xlane.xlu0 %2218
  %v2220 = vadd.f32 %v2149, %v2150
  %2221 = vadd.xlane.f32.xlu0 %v2220
  %v2222 = vpop.xlane.xlu0 %2221
  %v2223 = vadd.f32 %v2151, %v2152
  %2224 = vadd.xlane.f32.xlu0 %v2223
  %v2225 = vpop.xlane.xlu0 %2224
  %v2226 = vadd.f32 %v2153, %v2154
  %2227 = vadd.xlane.f32.xlu0 %v2226
  %v2228 = vpop.xlane.xlu0 %2227
  %v2229 = vadd.f32 %v2155, %v2156
  %2230 = vadd.xlane.f32.xlu0 %v2229
  %v2231 = vpop.xlane.xlu0 %2230
  %v2232 = vadd.f32 %v2157, %v2158
  %2233 = vadd.xlane.f32.xlu0 %v2232
  %v2234 = vpop.xlane.xlu0 %2233
  %v2235 = vadd.f32 %v2159, %v2160
  %2236 = vadd.xlane.f32.xlu0 %v2235
  %v2237 = vpop.xlane.xlu0 %2236
  %v2238 = vadd.f32 %v2161, %v2162
  %2239 = vadd.xlane.f32.xlu0 %v2238
  %v2240 = vpop.xlane.xlu0 %2239
  %v2241 = vadd.f32 %v2163, %v2164
  %2242 = vadd.xlane.f32.xlu0 %v2241
  %v2243 = vpop.xlane.xlu0 %2242
  %v2244 = vadd.f32 %v2165, %v2166
  %2245 = vadd.xlane.f32.xlu0 %v2244
  %v2246 = vpop.xlane.xlu0 %2245
  %v2247 = vadd.f32 %v2167, %v2168
  %2248 = vadd.xlane.f32.xlu0 %v2247
  %v2249 = vpop.xlane.xlu0 %2248
  %v2250 = vadd.f32 %v2169, %v2170
  %2251 = vadd.xlane.f32.xlu0 %v2250
  %v2252 = vpop.xlane.xlu0 %2251
  %v2253 = vadd.f32 %v2171, %v2172
  %2254 = vadd.xlane.f32.xlu0 %v2253
  %v2255 = vpop.xlane.xlu0 %2254
  %v2256 = vadd.f32 %v2173, %v2174
  %2257 = vadd.xlane.f32.xlu0 %v2256
  %v2258 = vpop.xlane.xlu0 %2257
  %v2259 = vadd.f32 %v2175, %v2176
  %2260 = vadd.xlane.f32.xlu0 %v2259
  %v2261 = vpop.xlane.xlu0 %2260
  %v2262 = vadd.f32 %v2177, %v2178
  %2263 = vadd.xlane.f32.xlu0 %v2262
  %v2264 = vpop.xlane.xlu0 %2263
  %v2265 = vadd.f32 %v2179, %v2180
  %2266 = vadd.xlane.f32.xlu0 %v2265
  %v2267 = vpop.xlane.xlu0 %2266
  %v2268 = vadd.f32 %v2181, %v2182
  %2269 = vadd.xlane.f32.xlu0 %v2268
  %v2270 = vpop.xlane.xlu0 %2269
  %v2271 = vadd.f32 %v2183, %v2184
  %2272 = vadd.xlane.f32.xlu0 %v2271
  %v2273 = vpop.xlane.xlu0 %2272
  %v2274 = vadd.f32 %v2185, %v2186
  %2275 = vadd.xlane.f32.xlu0 %v2274
  %v2276 = vpop.xlane.xlu0 %2275
  %v2277 = vadd.f32 %v2187, %v2188
  %2278 = vadd.xlane.f32.xlu0 %v2277
  %v2279 = vpop.xlane.xlu0 %2278
  %v2280 = vadd.f32 %v2189, %v2190
  %2281 = vadd.xlane.f32.xlu0 %v2280
  %v2282 = vpop.xlane.xlu0 %2281
  %v2283 = vadd.f32 %v2191, %v2192
  %2284 = vadd.xlane.f32.xlu0 %v2283
  %v2285 = vpop.xlane.xlu0 %2284
  %v2286 = vadd.f32 %v2193, %v2194
  %2287 = vadd.xlane.f32.xlu0 %v2286
  %v2288 = vpop.xlane.xlu0 %2287
  %v2289 = vadd.f32 %v2195, %v2196
  %2290 = vadd.xlane.f32.xlu0 %v2289
  %v2291 = vpop.xlane.xlu0 %2290
  %v2292 = vadd.f32 %v2197, %v2198
  %2293 = vadd.xlane.f32.xlu0 %v2292
  %v2294 = vpop.xlane.xlu0 %2293
  %v2295 = vmul.f32 %v2201, 0.00390625
  %v2296 = vmul.f32 %v2204, 0.00390625
  %v2297 = vmul.f32 %v2207, 0.00390625
  %v2298 = vmul.f32 %v2210, 0.00390625
  %v2299 = vmul.f32 %v2213, 0.00390625
  %v2300 = vmul.f32 %v2216, 0.00390625
  %v2301 = vmul.f32 %v2219, 0.00390625
  %v2302 = vmul.f32 %v2222, 0.00390625
  %v2303 = vmul.f32 %v2225, 0.00390625
  %v2304 = vmul.f32 %v2228, 0.00390625
  %v2305 = vmul.f32 %v2231, 0.00390625
  %v2306 = vmul.f32 %v2234, 0.00390625
  %v2307 = vmul.f32 %v2237, 0.00390625
  %v2308 = vmul.f32 %v2240, 0.00390625
  %v2309 = vmul.f32 %v2243, 0.00390625
  %v2310 = vmul.f32 %v2246, 0.00390625
  %v2311 = vmul.f32 %v2249, 0.00390625
  %v2312 = vmul.f32 %v2252, 0.00390625
  %v2313 = vmul.f32 %v2255, 0.00390625
  %v2314 = vmul.f32 %v2258, 0.00390625
  %v2315 = vmul.f32 %v2261, 0.00390625
  %v2316 = vmul.f32 %v2264, 0.00390625
  %v2317 = vmul.f32 %v2267, 0.00390625
  %v2318 = vmul.f32 %v2270, 0.00390625
  %v2319 = vmul.f32 %v2273, 0.00390625
  %v2320 = vmul.f32 %v2276, 0.00390625
  %v2321 = vmul.f32 %v2279, 0.00390625
  %v2322 = vmul.f32 %v2282, 0.00390625
  %v2323 = vmul.f32 %v2285, 0.00390625
  %v2324 = vmul.f32 %v2288, 0.00390625
  %v2325 = vmul.f32 %v2291, 0.00390625
  %v2326 = vmul.f32 %v2294, 0.00390625
  %v2327 = vmul.f32 %v2103, %v2103
  %v2328 = vmul.f32 %v2104, %v2104
  %v2329 = vmul.f32 %v2105, %v2105
  %v2330 = vmul.f32 %v2106, %v2106
  %v2331 = vmul.f32 %v2107, %v2107
  %v2332 = vmul.f32 %v2108, %v2108
  %v2333 = vmul.f32 %v2109, %v2109
  %v2334 = vmul.f32 %v2110, %v2110
  %v2335 = vmul.f32 %v2111, %v2111
  %v2336 = vmul.f32 %v2112, %v2112
  %v2337 = vmul.f32 %v2113, %v2113
  %v2338 = vmul.f32 %v2114, %v2114
  %v2339 = vmul.f32 %v2115, %v2115
  %v2340 = vmul.f32 %v2116, %v2116
  %v2341 = vmul.f32 %v2117, %v2117
  %v2342 = vmul.f32 %v2118, %v2118
  %v2343 = vmul.f32 %v2119, %v2119
  %v2344 = vmul.f32 %v2120, %v2120
  %v2345 = vmul.f32 %v2121, %v2121
  %v2346 = vmul.f32 %v2122, %v2122
  %v2347 = vmul.f32 %v2123, %v2123
  %v2348 = vmul.f32 %v2124, %v2124
  %v2349 = vmul.f32 %v2125, %v2125
  %v2350 = vmul.f32 %v2126, %v2126
  %v2351 = vmul.f32 %v2127, %v2127
  %v2352 = vmul.f32 %v2128, %v2128
  %v2353 = vmul.f32 %v2129, %v2129
  %v2354 = vmul.f32 %v2130, %v2130
  %v2355 = vmul.f32 %v2131, %v2131
  %v2356 = vmul.f32 %v2132, %v2132
  %v2357 = vmul.f32 %v2133, %v2133
  %v2358 = vmul.f32 %v2134, %v2134
  %v2359 = vsub.f32 %v2295, %v2327
  %v2360 = vsub.f32 %v2296, %v2328
  %v2361 = vsub.f32 %v2297, %v2329
  %v2362 = vsub.f32 %v2298, %v2330
  %v2363 = vsub.f32 %v2299, %v2331
  %v2364 = vsub.f32 %v2300, %v2332
  %v2365 = vsub.f32 %v2301, %v2333
  %v2366 = vsub.f32 %v2302, %v2334
  %v2367 = vsub.f32 %v2303, %v2335
  %v2368 = vsub.f32 %v2304, %v2336
  %v2369 = vsub.f32 %v2305, %v2337
  %v2370 = vsub.f32 %v2306, %v2338
  %v2371 = vsub.f32 %v2307, %v2339
  %v2372 = vsub.f32 %v2308, %v2340
  %v2373 = vsub.f32 %v2309, %v2341
  %v2374 = vsub.f32 %v2310, %v2342
  %v2375 = vsub.f32 %v2311, %v2343
  %v2376 = vsub.f32 %v2312, %v2344
  %v2377 = vsub.f32 %v2313, %v2345
  %v2378 = vsub.f32 %v2314, %v2346
  %v2379 = vsub.f32 %v2315, %v2347
  %v2380 = vsub.f32 %v2316, %v2348
  %v2381 = vsub.f32 %v2317, %v2349
  %v2382 = vsub.f32 %v2318, %v2350
  %v2383 = vsub.f32 %v2319, %v2351
  %v2384 = vsub.f32 %v2320, %v2352
  %v2385 = vsub.f32 %v2321, %v2353
  %v2386 = vsub.f32 %v2322, %v2354
  %v2387 = vsub.f32 %v2323, %v2355
  %v2388 = vsub.f32 %v2324, %v2356
  %v2389 = vsub.f32 %v2325, %v2357
  %v2390 = vsub.f32 %v2326, %v2358
  %v2391 = vsub.f32 %v1849, %v2103
  %v2392 = vsub.f32 %v1851, %v2103
  %v2393 = vsub.f32 %v1853, %v2104
  %v2394 = vsub.f32 %v1855, %v2104
  %v2395 = vsub.f32 %v1859, %v2105
  %v2396 = vsub.f32 %v1861, %v2105
  %v2397 = vsub.f32 %v1863, %v2106
  %v2398 = vsub.f32 %v1865, %v2106
  %v2399 = vsub.f32 %v1869, %v2107
  %v2400 = vsub.f32 %v1871, %v2107
  %v2401 = vsub.f32 %v1873, %v2108
  %v2402 = vsub.f32 %v1875, %v2108
  %v2403 = vsub.f32 %v1879, %v2109
  %v2404 = vsub.f32 %v1881, %v2109
  %v2405 = vsub.f32 %v1883, %v2110
  %v2406 = vsub.f32 %v1885, %v2110
  %v2407 = vsub.f32 %v1889, %v2111
  %v2408 = vsub.f32 %v1891, %v2111
  %v2409 = vsub.f32 %v1893, %v2112
  %v2410 = vsub.f32 %v1895, %v2112
  %v2411 = vsub.f32 %v1899, %v2113
  %v2412 = vsub.f32 %v1901, %v2113
  %v2413 = vsub.f32 %v1903, %v2114
  %v2414 = vsub.f32 %v1905, %v2114
  %v2415 = vsub.f32 %v1909, %v2115
  %v2416 = vsub.f32 %v1911, %v2115
  %v2417 = vsub.f32 %v1913, %v2116
  %v2418 = vsub.f32 %v1915, %v2116
  %v2419 = vsub.f32 %v1919, %v2117
  %v2420 = vsub.f32 %v1921, %v2117
  %v2421 = vsub.f32 %v1923, %v2118
  %v2422 = vsub.f32 %v1925, %v2118
  %v2423 = vsub.f32 %v1929, %v2119
  %v2424 = vsub.f32 %v1931, %v2119
  %v2425 = vsub.f32 %v1933, %v2120
  %v2426 = vsub.f32 %v1935, %v2120
  %v2427 = vsub.f32 %v1939, %v2121
  %v2428 = vsub.f32 %v1941, %v2121
  %v2429 = vsub.f32 %v1943, %v2122
  %v2430 = vsub.f32 %v1945, %v2122
  %v2431 = vsub.f32 %v1949, %v2123
  %v2432 = vsub.f32 %v1951, %v2123
  %v2433 = vsub.f32 %v1953, %v2124
  %v2434 = vsub.f32 %v1955, %v2124
  %v2435 = vsub.f32 %v1959, %v2125
  %v2436 = vsub.f32 %v1961, %v2125
  %v2437 = vsub.f32 %v1963, %v2126
  %v2438 = vsub.f32 %v1965, %v2126
  %v2439 = vsub.f32 %v1969, %v2127
  %v2440 = vsub.f32 %v1971, %v2127
  %v2441 = vsub.f32 %v1973, %v2128
  %v2442 = vsub.f32 %v1975, %v2128
  %v2443 = vsub.f32 %v1979, %v2129
  %v2444 = vsub.f32 %v1981, %v2129
  %v2445 = vsub.f32 %v1983, %v2130
  %v2446 = vsub.f32 %v1985, %v2130
  %v2447 = vsub.f32 %v1989, %v2131
  %v2448 = vsub.f32 %v1991, %v2131
  %v2449 = vsub.f32 %v1993, %v2132
  %v2450 = vsub.f32 %v1995, %v2132
  %v2451 = vsub.f32 %v1999, %v2133
  %v2452 = vsub.f32 %v2001, %v2133
  %v2453 = vsub.f32 %v2003, %v2134
  %v2454 = vsub.f32 %v2005, %v2134
  %v2455 = vadd.f32 %v2359, 1e-05
  %v2456 = vadd.f32 %v2360, 1e-05
  %v2457 = vadd.f32 %v2361, 1e-05
  %v2458 = vadd.f32 %v2362, 1e-05
  %v2459 = vadd.f32 %v2363, 1e-05
  %v2460 = vadd.f32 %v2364, 1e-05
  %v2461 = vadd.f32 %v2365, 1e-05
  %v2462 = vadd.f32 %v2366, 1e-05
  %v2463 = vadd.f32 %v2367, 1e-05
  %v2464 = vadd.f32 %v2368, 1e-05
  %v2465 = vadd.f32 %v2369, 1e-05
  %v2466 = vadd.f32 %v2370, 1e-05
  %v2467 = vadd.f32 %v2371, 1e-05
  %v2468 = vadd.f32 %v2372, 1e-05
  %v2469 = vadd.f32 %v2373, 1e-05
  %v2470 = vadd.f32 %v2374, 1e-05
  %v2471 = vadd.f32 %v2375, 1e-05
  %v2472 = vadd.f32 %v2376, 1e-05
  %v2473 = vadd.f32 %v2377, 1e-05
  %v2474 = vadd.f32 %v2378, 1e-05
  %v2475 = vadd.f32 %v2379, 1e-05
  %v2476 = vadd.f32 %v2380, 1e-05
  %v2477 = vadd.f32 %v2381, 1e-05
  %v2478 = vadd.f32 %v2382, 1e-05
  %v2479 = vadd.f32 %v2383, 1e-05
  %v2480 = vadd.f32 %v2384, 1e-05
  %v2481 = vadd.f32 %v2385, 1e-05
  %v2482 = vadd.f32 %v2386, 1e-05
  %v2483 = vadd.f32 %v2387, 1e-05
  %v2484 = vadd.f32 %v2388, 1e-05
  %v2485 = vadd.f32 %v2389, 1e-05
  %v2486 = vadd.f32 %v2390, 1e-05
  %v2487 = vrsqrt.pop %v2455
  %v2488 = vrsqrt.pop %v2456
  %v2489 = vrsqrt.pop %v2457
  %v2490 = vrsqrt.pop %v2458
  %v2491 = vrsqrt.pop %v2459
  %v2492 = vrsqrt.pop %v2460
  %v2493 = vrsqrt.pop %v2461
  %v2494 = vrsqrt.pop %v2462
  %v2495 = vrsqrt.pop %v2463
  %v2496 = vrsqrt.pop %v2464
  %v2497 = vrsqrt.pop %v2465
  %v2498 = vrsqrt.pop %v2466
  %v2499 = vrsqrt.pop %v2467
  %v2500 = vrsqrt.pop %v2468
  %v2501 = vrsqrt.pop %v2469
  %v2502 = vrsqrt.pop %v2470
  %v2503 = vrsqrt.pop %v2471
  %v2504 = vrsqrt.pop %v2472
  %v2505 = vrsqrt.pop %v2473
  %v2506 = vrsqrt.pop %v2474
  %v2507 = vrsqrt.pop %v2475
  %v2508 = vrsqrt.pop %v2476
  %v2509 = vrsqrt.pop %v2477
  %v2510 = vrsqrt.pop %v2478
  %v2511 = vrsqrt.pop %v2479
  %v2512 = vrsqrt.pop %v2480
  %v2513 = vrsqrt.pop %v2481
  %v2514 = vrsqrt.pop %v2482
  %v2515 = vrsqrt.pop %v2483
  %v2516 = vrsqrt.pop %v2484
  %v2517 = vrsqrt.pop %v2485
  %v2518 = vrsqrt.pop %v2486
  %v2519 = vmul.f32 %v2391, %v2487
  %v2520 = vmul.f32 %v2392, %v2487
  %v2521 = vmul.f32 %v2393, %v2488
  %v2522 = vmul.f32 %v2394, %v2488
  %v2523 = vmul.f32 %v2395, %v2489
  %v2524 = vmul.f32 %v2396, %v2489
  %v2525 = vmul.f32 %v2397, %v2490
  %v2526 = vmul.f32 %v2398, %v2490
  %v2527 = vmul.f32 %v2399, %v2491
  %v2528 = vmul.f32 %v2400, %v2491
  %v2529 = vmul.f32 %v2401, %v2492
  %v2530 = vmul.f32 %v2402, %v2492
  %v2531 = vmul.f32 %v2403, %v2493
  %v2532 = vmul.f32 %v2404, %v2493
  %v2533 = vmul.f32 %v2405, %v2494
  %v2534 = vmul.f32 %v2406, %v2494
  %v2535 = vmul.f32 %v2407, %v2495
  %v2536 = vmul.f32 %v2408, %v2495
  %v2537 = vmul.f32 %v2409, %v2496
  %v2538 = vmul.f32 %v2410, %v2496
  %v2539 = vmul.f32 %v2411, %v2497
  %v2540 = vmul.f32 %v2412, %v2497
  %v2541 = vmul.f32 %v2413, %v2498
  %v2542 = vmul.f32 %v2414, %v2498
  %v2543 = vmul.f32 %v2415, %v2499
  %v2544 = vmul.f32 %v2416, %v2499
  %v2545 = vmul.f32 %v2417, %v2500
  %v2546 = vmul.f32 %v2418, %v2500
  %v2547 = vmul.f32 %v2419, %v2501
  %v2548 = vmul.f32 %v2420, %v2501
  %v2549 = vmul.f32 %v2421, %v2502
  %v2550 = vmul.f32 %v2422, %v2502
  %v2551 = vmul.f32 %v2423, %v2503
  %v2552 = vmul.f32 %v2424, %v2503
  %v2553 = vmul.f32 %v2425, %v2504
  %v2554 = vmul.f32 %v2426, %v2504
  %v2555 = vmul.f32 %v2427, %v2505
  %v2556 = vmul.f32 %v2428, %v2505
  %v2557 = vmul.f32 %v2429, %v2506
  %v2558 = vmul.f32 %v2430, %v2506
  %v2559 = vmul.f32 %v2431, %v2507
  %v2560 = vmul.f32 %v2432, %v2507
  %v2561 = vmul.f32 %v2433, %v2508
  %v2562 = vmul.f32 %v2434, %v2508
  %v2563 = vmul.f32 %v2435, %v2509
  %v2564 = vmul.f32 %v2436, %v2509
  %v2565 = vmul.f32 %v2437, %v2510
  %v2566 = vmul.f32 %v2438, %v2510
  %v2567 = vmul.f32 %v2439, %v2511
  %v2568 = vmul.f32 %v2440, %v2511
  %v2569 = vmul.f32 %v2441, %v2512
  %v2570 = vmul.f32 %v2442, %v2512
  %v2571 = vmul.f32 %v2443, %v2513
  %v2572 = vmul.f32 %v2444, %v2513
  %v2573 = vmul.f32 %v2445, %v2514
  %v2574 = vmul.f32 %v2446, %v2514
  %v2575 = vmul.f32 %v2447, %v2515
  %v2576 = vmul.f32 %v2448, %v2515
  %v2577 = vmul.f32 %v2449, %v2516
  %v2578 = vmul.f32 %v2450, %v2516
  %v2579 = vmul.f32 %v2451, %v2517
  %v2580 = vmul.f32 %v2452, %v2517
  %v2581 = vmul.f32 %v2453, %v2518
  %v2582 = vmul.f32 %v2454, %v2518
  %v2584 = vlaneseq
  %v2585 = vshrl.u32 %v2584, 7
  %v2586 = vsub.s32 0, %v2585
  %v2587 = vrot.slane %v35, %v2586
  %v2588 = vlaneseq
  %v2589 = vshrl.u32 %v2588, 7
  %v2590 = vsub.s32 1, %v2589
  %v2591 = vrot.slane %v35, %v2590
  %v2594 = vmul.f32 %v2519, %v2587
  %v2595 = vmul.f32 %v2520, %v2591
  %v2596 = vmul.f32 %v2521, %v2587
  %v2597 = vmul.f32 %v2522, %v2591
  %v2598 = vmul.f32 %v2523, %v2587
  %v2599 = vmul.f32 %v2524, %v2591
  %v2600 = vmul.f32 %v2525, %v2587
  %v2601 = vmul.f32 %v2526, %v2591
  %v2602 = vmul.f32 %v2527, %v2587
  %v2603 = vmul.f32 %v2528, %v2591
  %v2604 = vmul.f32 %v2529, %v2587
  %v2605 = vmul.f32 %v2530, %v2591
  %v2606 = vmul.f32 %v2531, %v2587
  %v2607 = vmul.f32 %v2532, %v2591
  %v2608 = vmul.f32 %v2533, %v2587
  %v2609 = vmul.f32 %v2534, %v2591
  %v2610 = vmul.f32 %v2535, %v2587
  %v2611 = vmul.f32 %v2536, %v2591
  %v2612 = vmul.f32 %v2537, %v2587
  %v2613 = vmul.f32 %v2538, %v2591
  %v2614 = vmul.f32 %v2539, %v2587
  %v2615 = vmul.f32 %v2540, %v2591
  %v2616 = vmul.f32 %v2541, %v2587
  %v2617 = vmul.f32 %v2542, %v2591
  %v2618 = vmul.f32 %v2543, %v2587
  %v2619 = vmul.f32 %v2544, %v2591
  %v2620 = vmul.f32 %v2545, %v2587
  %v2621 = vmul.f32 %v2546, %v2591
  %v2622 = vmul.f32 %v2547, %v2587
  %v2623 = vmul.f32 %v2548, %v2591
  %v2624 = vmul.f32 %v2549, %v2587
  %v2625 = vmul.f32 %v2550, %v2591
  %v2626 = vmul.f32 %v2551, %v2587
  %v2627 = vmul.f32 %v2552, %v2591
  %v2628 = vmul.f32 %v2553, %v2587
  %v2629 = vmul.f32 %v2554, %v2591
  %v2630 = vmul.f32 %v2555, %v2587
  %v2631 = vmul.f32 %v2556, %v2591
  %v2632 = vmul.f32 %v2557, %v2587
  %v2633 = vmul.f32 %v2558, %v2591
  %v2634 = vmul.f32 %v2559, %v2587
  %v2635 = vmul.f32 %v2560, %v2591
  %v2636 = vmul.f32 %v2561, %v2587
  %v2637 = vmul.f32 %v2562, %v2591
  %v2638 = vmul.f32 %v2563, %v2587
  %v2639 = vmul.f32 %v2564, %v2591
  %v2640 = vmul.f32 %v2565, %v2587
  %v2641 = vmul.f32 %v2566, %v2591
  %v2642 = vmul.f32 %v2567, %v2587
  %v2643 = vmul.f32 %v2568, %v2591
  %v2644 = vmul.f32 %v2569, %v2587
  %v2645 = vmul.f32 %v2570, %v2591
  %v2646 = vmul.f32 %v2571, %v2587
  %v2647 = vmul.f32 %v2572, %v2591
  %v2648 = vmul.f32 %v2573, %v2587
  %v2649 = vmul.f32 %v2574, %v2591
  %v2650 = vmul.f32 %v2575, %v2587
  %v2651 = vmul.f32 %v2576, %v2591
  %v2652 = vmul.f32 %v2577, %v2587
  %v2653 = vmul.f32 %v2578, %v2591
  %v2654 = vmul.f32 %v2579, %v2587
  %v2655 = vmul.f32 %v2580, %v2591
  %v2656 = vmul.f32 %v2581, %v2587
  %v2657 = vmul.f32 %v2582, %v2591
  %v2659 = vlaneseq
  %v2660 = vshrl.u32 %v2659, 7
  %v2661 = vsub.s32 0, %v2660
  %v2662 = vrot.slane %v37, %v2661
  %v2663 = vlaneseq
  %v2664 = vshrl.u32 %v2663, 7
  %v2665 = vsub.s32 1, %v2664
  %v2666 = vrot.slane %v37, %v2665
  %v2669 = vadd.f32 %v2594, %v2662
  %v2670 = vadd.f32 %v2595, %v2666
  %v2671 = vadd.f32 %v2596, %v2662
  %v2672 = vadd.f32 %v2597, %v2666
  %v2673 = vadd.f32 %v2598, %v2662
  %v2674 = vadd.f32 %v2599, %v2666
  %v2675 = vadd.f32 %v2600, %v2662
  %v2676 = vadd.f32 %v2601, %v2666
  %v2677 = vadd.f32 %v2602, %v2662
  %v2678 = vadd.f32 %v2603, %v2666
  %v2679 = vadd.f32 %v2604, %v2662
  %v2680 = vadd.f32 %v2605, %v2666
  %v2681 = vadd.f32 %v2606, %v2662
  %v2682 = vadd.f32 %v2607, %v2666
  %v2683 = vadd.f32 %v2608, %v2662
  %v2684 = vadd.f32 %v2609, %v2666
  %v2685 = vadd.f32 %v2610, %v2662
  %v2686 = vadd.f32 %v2611, %v2666
  %v2687 = vadd.f32 %v2612, %v2662
  %v2688 = vadd.f32 %v2613, %v2666
  %v2689 = vadd.f32 %v2614, %v2662
  %v2690 = vadd.f32 %v2615, %v2666
  %v2691 = vadd.f32 %v2616, %v2662
  %v2692 = vadd.f32 %v2617, %v2666
  %v2693 = vadd.f32 %v2618, %v2662
  %v2694 = vadd.f32 %v2619, %v2666
  %v2695 = vadd.f32 %v2620, %v2662
  %v2696 = vadd.f32 %v2621, %v2666
  %v2697 = vadd.f32 %v2622, %v2662
  %v2698 = vadd.f32 %v2623, %v2666
  %v2699 = vadd.f32 %v2624, %v2662
  %v2700 = vadd.f32 %v2625, %v2666
  %v2701 = vadd.f32 %v2626, %v2662
  %v2702 = vadd.f32 %v2627, %v2666
  %v2703 = vadd.f32 %v2628, %v2662
  %v2704 = vadd.f32 %v2629, %v2666
  %v2705 = vadd.f32 %v2630, %v2662
  %v2706 = vadd.f32 %v2631, %v2666
  %v2707 = vadd.f32 %v2632, %v2662
  %v2708 = vadd.f32 %v2633, %v2666
  %v2709 = vadd.f32 %v2634, %v2662
  %v2710 = vadd.f32 %v2635, %v2666
  %v2711 = vadd.f32 %v2636, %v2662
  %v2712 = vadd.f32 %v2637, %v2666
  %v2713 = vadd.f32 %v2638, %v2662
  %v2714 = vadd.f32 %v2639, %v2666
  %v2715 = vadd.f32 %v2640, %v2662
  %v2716 = vadd.f32 %v2641, %v2666
  %v2717 = vadd.f32 %v2642, %v2662
  %v2718 = vadd.f32 %v2643, %v2666
  %v2719 = vadd.f32 %v2644, %v2662
  %v2720 = vadd.f32 %v2645, %v2666
  %v2721 = vadd.f32 %v2646, %v2662
  %v2722 = vadd.f32 %v2647, %v2666
  %v2723 = vadd.f32 %v2648, %v2662
  %v2724 = vadd.f32 %v2649, %v2666
  %v2725 = vadd.f32 %v2650, %v2662
  %v2726 = vadd.f32 %v2651, %v2666
  %v2727 = vadd.f32 %v2652, %v2662
  %v2728 = vadd.f32 %v2653, %v2666
  %v2729 = vadd.f32 %v2654, %v2662
  %v2730 = vadd.f32 %v2655, %v2666
  %v2731 = vadd.f32 %v2656, %v2662
  %v2732 = vadd.f32 %v2657, %v2666
  %v2733 = vmax.f32 %v2669, 0.0
  %v2734 = vmax.f32 %v2670, 0.0
  %v2735 = vmax.f32 %v2671, 0.0
  %v2736 = vmax.f32 %v2672, 0.0
  %v2737 = vmax.f32 %v2673, 0.0
  %v2738 = vmax.f32 %v2674, 0.0
  %v2739 = vmax.f32 %v2675, 0.0
  %v2740 = vmax.f32 %v2676, 0.0
  %v2741 = vmax.f32 %v2677, 0.0
  %v2742 = vmax.f32 %v2678, 0.0
  %v2743 = vmax.f32 %v2679, 0.0
  %v2744 = vmax.f32 %v2680, 0.0
  %v2745 = vmax.f32 %v2681, 0.0
  %v2746 = vmax.f32 %v2682, 0.0
  %v2747 = vmax.f32 %v2683, 0.0
  %v2748 = vmax.f32 %v2684, 0.0
  %v2749 = vmax.f32 %v2685, 0.0
  %v2750 = vmax.f32 %v2686, 0.0
  %v2751 = vmax.f32 %v2687, 0.0
  %v2752 = vmax.f32 %v2688, 0.0
  %v2753 = vmax.f32 %v2689, 0.0
  %v2754 = vmax.f32 %v2690, 0.0
  %v2755 = vmax.f32 %v2691, 0.0
  %v2756 = vmax.f32 %v2692, 0.0
  %v2757 = vmax.f32 %v2693, 0.0
  %v2758 = vmax.f32 %v2694, 0.0
  %v2759 = vmax.f32 %v2695, 0.0
  %v2760 = vmax.f32 %v2696, 0.0
  %v2761 = vmax.f32 %v2697, 0.0
  %v2762 = vmax.f32 %v2698, 0.0
  %v2763 = vmax.f32 %v2699, 0.0
  %v2764 = vmax.f32 %v2700, 0.0
  %v2765 = vmax.f32 %v2701, 0.0
  %v2766 = vmax.f32 %v2702, 0.0
  %v2767 = vmax.f32 %v2703, 0.0
  %v2768 = vmax.f32 %v2704, 0.0
  %v2769 = vmax.f32 %v2705, 0.0
  %v2770 = vmax.f32 %v2706, 0.0
  %v2771 = vmax.f32 %v2707, 0.0
  %v2772 = vmax.f32 %v2708, 0.0
  %v2773 = vmax.f32 %v2709, 0.0
  %v2774 = vmax.f32 %v2710, 0.0
  %v2775 = vmax.f32 %v2711, 0.0
  %v2776 = vmax.f32 %v2712, 0.0
  %v2777 = vmax.f32 %v2713, 0.0
  %v2778 = vmax.f32 %v2714, 0.0
  %v2779 = vmax.f32 %v2715, 0.0
  %v2780 = vmax.f32 %v2716, 0.0
  %v2781 = vmax.f32 %v2717, 0.0
  %v2782 = vmax.f32 %v2718, 0.0
  %v2783 = vmax.f32 %v2719, 0.0
  %v2784 = vmax.f32 %v2720, 0.0
  %v2785 = vmax.f32 %v2721, 0.0
  %v2786 = vmax.f32 %v2722, 0.0
  %v2787 = vmax.f32 %v2723, 0.0
  %v2788 = vmax.f32 %v2724, 0.0
  %v2789 = vmax.f32 %v2725, 0.0
  %v2790 = vmax.f32 %v2726, 0.0
  %v2791 = vmax.f32 %v2727, 0.0
  %v2792 = vmax.f32 %v2728, 0.0
  %v2793 = vmax.f32 %v2729, 0.0
  %v2794 = vmax.f32 %v2730, 0.0
  %v2795 = vmax.f32 %v2731, 0.0
  %v2796 = vmax.f32 %v2732, 0.0
  %v2797 = vpack.c.bf16 %v2735, %v2733
  %v2798 = vpack.c.bf16 %v2736, %v2734
  %v2799 = vpack.c.bf16 %v2739, %v2737
  %v2800 = vpack.c.bf16 %v2740, %v2738
  %v2801 = vpack.c.bf16 %v2743, %v2741
  %v2802 = vpack.c.bf16 %v2744, %v2742
  %v2803 = vpack.c.bf16 %v2747, %v2745
  %v2804 = vpack.c.bf16 %v2748, %v2746
  %v2805 = vpack.c.bf16 %v2751, %v2749
  %v2806 = vpack.c.bf16 %v2752, %v2750
  %v2807 = vpack.c.bf16 %v2755, %v2753
  %v2808 = vpack.c.bf16 %v2756, %v2754
  %v2809 = vpack.c.bf16 %v2759, %v2757
  %v2810 = vpack.c.bf16 %v2760, %v2758
  %v2811 = vpack.c.bf16 %v2763, %v2761
  %v2812 = vpack.c.bf16 %v2764, %v2762
  %v2813 = vpack.c.bf16 %v2767, %v2765
  %v2814 = vpack.c.bf16 %v2768, %v2766
  %v2815 = vpack.c.bf16 %v2771, %v2769
  %v2816 = vpack.c.bf16 %v2772, %v2770
  %v2817 = vpack.c.bf16 %v2775, %v2773
  %v2818 = vpack.c.bf16 %v2776, %v2774
  %v2819 = vpack.c.bf16 %v2779, %v2777
  %v2820 = vpack.c.bf16 %v2780, %v2778
  %v2821 = vpack.c.bf16 %v2783, %v2781
  %v2822 = vpack.c.bf16 %v2784, %v2782
  %v2823 = vpack.c.bf16 %v2787, %v2785
  %v2824 = vpack.c.bf16 %v2788, %v2786
  %v2825 = vpack.c.bf16 %v2791, %v2789
  %v2826 = vpack.c.bf16 %v2792, %v2790
  %v2827 = vpack.c.bf16 %v2795, %v2793
  %v2828 = vpack.c.bf16 %v2796, %v2794
  %v2829 = vld [vmem:[%s5] sm:$0xf]
  %v2830 = vld [vmem:[%s5 + $0x4] sm:$0xf]
  %v2831 = vld [vmem:[%s5 + $0x8] sm:$0xf]
  %v2832 = vld [vmem:[%s5 + $0xc] sm:$0xf]
  %v2833 = vld [vmem:[%s5 + $0x10] sm:$0xf]
  %v2834 = vld [vmem:[%s5 + $0x14] sm:$0xf]
  %v2835 = vld [vmem:[%s5 + $0x18] sm:$0xf]
  %v2836 = vld [vmem:[%s5 + $0x1c] sm:$0xf]
  %v2837 = vld [vmem:[%s5 + $0x20] sm:$0xf]
  %v2838 = vld [vmem:[%s5 + $0x24] sm:$0xf]
  %v2839 = vld [vmem:[%s5 + $0x28] sm:$0xf]
  %v2840 = vld [vmem:[%s5 + $0x2c] sm:$0xf]
  %v2841 = vld [vmem:[%s5 + $0x30] sm:$0xf]
  %v2842 = vld [vmem:[%s5 + $0x34] sm:$0xf]
  %v2843 = vld [vmem:[%s5 + $0x38] sm:$0xf]
  %v2844 = vld [vmem:[%s5 + $0x3c] sm:$0xf]
  %v2845 = vld [vmem:[%s5 + $0x40] sm:$0xf]
  %v2846 = vld [vmem:[%s5 + $0x44] sm:$0xf]
  %v2847 = vld [vmem:[%s5 + $0x48] sm:$0xf]
  %v2848 = vld [vmem:[%s5 + $0x4c] sm:$0xf]
  %v2849 = vld [vmem:[%s5 + $0x50] sm:$0xf]
  %v2850 = vld [vmem:[%s5 + $0x54] sm:$0xf]
  %v2851 = vld [vmem:[%s5 + $0x58] sm:$0xf]
  %v2852 = vld [vmem:[%s5 + $0x5c] sm:$0xf]
  %v2853 = vld [vmem:[%s5 + $0x60] sm:$0xf]
  %v2854 = vld [vmem:[%s5 + $0x64] sm:$0xf]
  %v2855 = vld [vmem:[%s5 + $0x68] sm:$0xf]
  %v2856 = vld [vmem:[%s5 + $0x6c] sm:$0xf]
  %v2857 = vld [vmem:[%s5 + $0x70] sm:$0xf]
  %v2858 = vld [vmem:[%s5 + $0x74] sm:$0xf]
  %v2859 = vld [vmem:[%s5 + $0x78] sm:$0xf]
  %v2860 = vld [vmem:[%s5 + $0x7c] sm:$0xf]
  %v2893 = vunpack.c.l.b16 %v2829
  %v2894 = vunpack.c.l.b16 %v2830
  %v2895 = vunpack.c.l.b16 %v2831
  %v2896 = vunpack.c.l.b16 %v2832
  %v2897 = vunpack.c.l.b16 %v2833
  %v2898 = vunpack.c.l.b16 %v2834
  %v2899 = vunpack.c.l.b16 %v2835
  %v2900 = vunpack.c.l.b16 %v2836
  %v2901 = vunpack.c.l.b16 %v2837
  %v2902 = vunpack.c.l.b16 %v2838
  %v2903 = vunpack.c.l.b16 %v2839
  %v2904 = vunpack.c.l.b16 %v2840
  %v2905 = vunpack.c.l.b16 %v2841
  %v2906 = vunpack.c.l.b16 %v2842
  %v2907 = vunpack.c.l.b16 %v2843
  %v2908 = vunpack.c.l.b16 %v2844
  %v2909 = vunpack.c.l.b16 %v2845
  %v2910 = vunpack.c.l.b16 %v2846
  %v2911 = vunpack.c.l.b16 %v2847
  %v2912 = vunpack.c.l.b16 %v2848
  %v2913 = vunpack.c.l.b16 %v2849
  %v2914 = vunpack.c.l.b16 %v2850
  %v2915 = vunpack.c.l.b16 %v2851
  %v2916 = vunpack.c.l.b16 %v2852
  %v2917 = vunpack.c.l.b16 %v2853
  %v2918 = vunpack.c.l.b16 %v2854
  %v2919 = vunpack.c.l.b16 %v2855
  %v2920 = vunpack.c.l.b16 %v2856
  %v2921 = vunpack.c.l.b16 %v2857
  %v2922 = vunpack.c.l.b16 %v2858
  %v2923 = vunpack.c.l.b16 %v2859
  %v2924 = vunpack.c.l.b16 %v2860
  %v2925 = vpack.c.b16 %v2894, %v2893
  %v2926 = vpack.c.b16 %v2896, %v2895
  %v2927 = vpack.c.b16 %v2898, %v2897
  %v2928 = vpack.c.b16 %v2900, %v2899
  %v2929 = vpack.c.b16 %v2902, %v2901
  %v2930 = vpack.c.b16 %v2904, %v2903
  %v2931 = vpack.c.b16 %v2906, %v2905
  %v2932 = vpack.c.b16 %v2908, %v2907
  %v2933 = vpack.c.b16 %v2910, %v2909
  %v2934 = vpack.c.b16 %v2912, %v2911
  %v2935 = vpack.c.b16 %v2914, %v2913
  %v2936 = vpack.c.b16 %v2916, %v2915
  %v2937 = vpack.c.b16 %v2918, %v2917
  %v2938 = vpack.c.b16 %v2920, %v2919
  %v2939 = vpack.c.b16 %v2922, %v2921
  %v2940 = vpack.c.b16 %v2924, %v2923
  %2957 = vmatprep.subr.bf16.mxu0 0
  %2958 = vmatpush1.bf16.msra.mxu0 %v2925
  %2959 = vmatprep.subr.bf16.mxu0 0
  %2960 = vmatpush1.bf16.msra.mxu0 %v2926
  %2961 = vmatprep.subr.bf16.mxu0 0
  %2962 = vmatpush1.bf16.msra.mxu0 %v2927
  %2963 = vmatprep.subr.bf16.mxu0 0
  %2964 = vmatpush1.bf16.msra.mxu0 %v2928
  %2965 = vmatprep.subr.bf16.mxu0 0
  %2966 = vmatpush1.bf16.msra.mxu0 %v2929
  %2967 = vmatprep.subr.bf16.mxu0 0
  %2968 = vmatpush1.bf16.msra.mxu0 %v2930
  %2969 = vmatprep.subr.bf16.mxu0 0
  %2970 = vmatpush1.bf16.msra.mxu0 %v2931
  %2971 = vmatprep.subr.bf16.mxu0 0
  %2972 = vmatpush1.bf16.msra.mxu0 %v2932
  %2973 = vmatprep.subr.bf16.mxu0 0
  %2974 = vmatpush1.bf16.msra.mxu0 %v2933
  %2975 = vmatprep.subr.bf16.mxu0 0
  %2976 = vmatpush1.bf16.msra.mxu0 %v2934
  %2977 = vmatprep.subr.bf16.mxu0 0
  %2978 = vmatpush1.bf16.msra.mxu0 %v2935
  %2979 = vmatprep.subr.bf16.mxu0 0
  %2980 = vmatpush1.bf16.msra.mxu0 %v2936
  %2981 = vmatprep.subr.bf16.mxu0 0
  %2982 = vmatpush1.bf16.msra.mxu0 %v2937
  %2983 = vmatprep.subr.bf16.mxu0 0
  %2984 = vmatpush1.bf16.msra.mxu0 %v2938
  %2985 = vmatprep.subr.bf16.mxu0 0
  %2986 = vmatpush1.bf16.msra.mxu0 %v2939
  %2987 = vmatprep.subr.bf16.mxu0 0
  %2988 = vmatpush1.bf16.msra.mxu0 %v2940
  %2989 = vmatprep.mubr.bf16.mxu0 %v2798
  %2990 = vmatmul.mubr.bf16.gmra.mrb[0].mxu0 %v2797
  %v2991 = vpop.f32.mrb[0].mxu0
  %v2992 = vadd.f32 %v38, %v2991
  %v2993 = vpop.f32.mrb[0].mxu0
  %v2994 = vpop.f32.mrb[0].mxu0
  %v2995 = vadd.f32 %v38, %v2994
  %v2996 = vpop.f32.mrb[0].mxu0
  %2997 = vmatprep.mubr.bf16.mxu0 %v2800
  %2998 = vmatmul.mubr.bf16.gmra.mrb[0].mxu0 %v2799
  %v2999 = vpop.f32.mrb[0].mxu0
  %v3000 = vadd.f32 %v38, %v2999
  %v3001 = vpop.f32.mrb[0].mxu0
  %v3002 = vpop.f32.mrb[0].mxu0
  %v3003 = vadd.f32 %v38, %v3002
  %v3004 = vpop.f32.mrb[0].mxu0
  %3005 = vmatprep.mubr.bf16.mxu0 %v2802
  %3006 = vmatmul.mubr.bf16.gmra.mrb[0].mxu0 %v2801
  %v3007 = vpop.f32.mrb[0].mxu0
  %v3008 = vadd.f32 %v38, %v3007
  %v3009 = vpop.f32.mrb[0].mxu0
  %v3010 = vpop.f32.mrb[0].mxu0
  %v3011 = vadd.f32 %v38, %v3010
  %v3012 = vpop.f32.mrb[0].mxu0
  %3013 = vmatprep.mubr.bf16.mxu0 %v2804
  %3014 = vmatmul.mubr.bf16.gmra.mrb[0].mxu0 %v2803
  %v3015 = vpop.f32.mrb[0].mxu0
  %v3016 = vadd.f32 %v38, %v3015
  %v3017 = vpop.f32.mrb[0].mxu0
  %v3018 = vpop.f32.mrb[0].mxu0
  %v3019 = vadd.f32 %v38, %v3018
  %v3020 = vpop.f32.mrb[0].mxu0
  %3021 = vmatprep.mubr.bf16.mxu0 %v2806
  %3022 = vmatmul.mubr.bf16.gmra.mrb[0].mxu0 %v2805
  %v3023 = vpop.f32.mrb[0].mxu0
  %v3024 = vadd.f32 %v38, %v3023
  %v3025 = vpop.f32.mrb[0].mxu0
  %v3026 = vpop.f32.mrb[0].mxu0
  %v3027 = vadd.f32 %v38, %v3026
  %v3028 = vpop.f32.mrb[0].mxu0
  %3029 = vmatprep.mubr.bf16.mxu0 %v2808
  %3030 = vmatmul.mubr.bf16.gmra.mrb[0].mxu0 %v2807
  %v3031 = vpop.f32.mrb[0].mxu0
  %v3032 = vadd.f32 %v38, %v3031
  %v3033 = vpop.f32.mrb[0].mxu0
  %v3034 = vpop.f32.mrb[0].mxu0
  %v3035 = vadd.f32 %v38, %v3034
  %v3036 = vpop.f32.mrb[0].mxu0
  %3037 = vmatprep.mubr.bf16.mxu0 %v2810
  %3038 = vmatmul.mubr.bf16.gmra.mrb[0].mxu0 %v2809
  %v3039 = vpop.f32.mrb[0].mxu0
  %v3040 = vadd.f32 %v38, %v3039
  %v3041 = vpop.f32.mrb[0].mxu0
  %v3042 = vpop.f32.mrb[0].mxu0
  %v3043 = vadd.f32 %v38, %v3042
  %v3044 = vpop.f32.mrb[0].mxu0
  %3045 = vmatprep.mubr.bf16.mxu0 %v2812
  %3046 = vmatmul.mubr.bf16.gmra.mrb[0].mxu0 %v2811
  %v3047 = vpop.f32.mrb[0].mxu0
  %v3048 = vadd.f32 %v38, %v3047
  %v3049 = vpop.f32.mrb[0].mxu0
  %v3050 = vpop.f32.mrb[0].mxu0
  %v3051 = vadd.f32 %v38, %v3050
  %v3052 = vpop.f32.mrb[0].mxu0
  %3053 = vmatprep.mubr.bf16.mxu0 %v2814
  %3054 = vmatmul.mubr.bf16.gmra.mrb[0].mxu0 %v2813
  %v3055 = vpop.f32.mrb[0].mxu0
  %v3056 = vadd.f32 %v38, %v3055
  %v3057 = vpop.f32.mrb[0].mxu0
  %v3058 = vpop.f32.mrb[0].mxu0
  %v3059 = vadd.f32 %v38, %v3058
  %v3060 = vpop.f32.mrb[0].mxu0
  %3061 = vmatprep.mubr.bf16.mxu0 %v2816
  %3062 = vmatmul.mubr.bf16.gmra.mrb[0].mxu0 %v2815
  %v3063 = vpop.f32.mrb[0].mxu0
  %v3064 = vadd.f32 %v38, %v3063
  %v3065 = vpop.f32.mrb[0].mxu0
  %v3066 = vpop.f32.mrb[0].mxu0
  %v3067 = vadd.f32 %v38, %v3066
  %v3068 = vpop.f32.mrb[0].mxu0
  %3069 = vmatprep.mubr.bf16.mxu0 %v2818
  %3070 = vmatmul.mubr.bf16.gmra.mrb[0].mxu0 %v2817
  %v3071 = vpop.f32.mrb[0].mxu0
  %v3072 = vadd.f32 %v38, %v3071
  %v3073 = vpop.f32.mrb[0].mxu0
  %v3074 = vpop.f32.mrb[0].mxu0
  %v3075 = vadd.f32 %v38, %v3074
  %v3076 = vpop.f32.mrb[0].mxu0
  %3077 = vmatprep.mubr.bf16.mxu0 %v2820
  %3078 = vmatmul.mubr.bf16.gmra.mrb[0].mxu0 %v2819
  %v3079 = vpop.f32.mrb[0].mxu0
  %v3080 = vadd.f32 %v38, %v3079
  %v3081 = vpop.f32.mrb[0].mxu0
  %v3082 = vpop.f32.mrb[0].mxu0
  %v3083 = vadd.f32 %v38, %v3082
  %v3084 = vpop.f32.mrb[0].mxu0
  %3085 = vmatprep.mubr.bf16.mxu0 %v2822
  %3086 = vmatmul.mubr.bf16.gmra.mrb[0].mxu0 %v2821
  %v3087 = vpop.f32.mrb[0].mxu0
  %v3088 = vadd.f32 %v38, %v3087
  %v3089 = vpop.f32.mrb[0].mxu0
  %v3090 = vpop.f32.mrb[0].mxu0
  %v3091 = vadd.f32 %v38, %v3090
  %v3092 = vpop.f32.mrb[0].mxu0
  %3093 = vmatprep.mubr.bf16.mxu0 %v2824
  %3094 = vmatmul.mubr.bf16.gmra.mrb[0].mxu0 %v2823
  %v3095 = vpop.f32.mrb[0].mxu0
  %v3096 = vadd.f32 %v38, %v3095
  %v3097 = vpop.f32.mrb[0].mxu0
  %v3098 = vpop.f32.mrb[0].mxu0
  %v3099 = vadd.f32 %v38, %v3098
  %v3100 = vpop.f32.mrb[0].mxu0
  %3101 = vmatprep.mubr.bf16.mxu0 %v2826
  %3102 = vmatmul.mubr.bf16.gmra.mrb[0].mxu0 %v2825
  %v3103 = vpop.f32.mrb[0].mxu0
  %v3104 = vadd.f32 %v38, %v3103
  %v3105 = vpop.f32.mrb[0].mxu0
  %v3106 = vpop.f32.mrb[0].mxu0
  %v3107 = vadd.f32 %v38, %v3106
  %v3108 = vpop.f32.mrb[0].mxu0
  %3109 = vmatprep.mubr.bf16.mxu0 %v2828
  %3110 = vmatmul.mubr.bf16.gmra.mrb[0].mxu0 %v2827
  %v3111 = vpop.f32.mrb[0].mxu0
  %v3112 = vadd.f32 %v38, %v3111
  %v3113 = vpop.f32.mrb[0].mxu0
  %v3114 = vpop.f32.mrb[0].mxu0
  %v3115 = vadd.f32 %v38, %v3114
  %v3116 = vpop.f32.mrb[0].mxu0
  %3117 = vdwg.mxu0
  %v3118 = vtanh.pop %v2992
  %v3119 = vtanh.pop %v2995
  %v3120 = vtanh.pop %v3000
  %v3121 = vtanh.pop %v3003
  %v3122 = vtanh.pop %v3008
  %v3123 = vtanh.pop %v3011
  %v3124 = vtanh.pop %v3016
  %v3125 = vtanh.pop %v3019
  %v3126 = vtanh.pop %v3024
  %v3127 = vtanh.pop %v3027
  %v3128 = vtanh.pop %v3032
  %v3129 = vtanh.pop %v3035
  %v3130 = vtanh.pop %v3040
  %v3131 = vtanh.pop %v3043
  %v3132 = vtanh.pop %v3048
  %v3133 = vtanh.pop %v3051
  %v3134 = vtanh.pop %v3056
  %v3135 = vtanh.pop %v3059
  %v3136 = vtanh.pop %v3064
  %v3137 = vtanh.pop %v3067
  %v3138 = vtanh.pop %v3072
  %v3139 = vtanh.pop %v3075
  %v3140 = vtanh.pop %v3080
  %v3141 = vtanh.pop %v3083
  %v3142 = vtanh.pop %v3088
  %v3143 = vtanh.pop %v3091
  %v3144 = vtanh.pop %v3096
  %v3145 = vtanh.pop %v3099
  %v3146 = vtanh.pop %v3104
  %v3147 = vtanh.pop %v3107
  %v3148 = vtanh.pop %v3112
  %v3149 = vtanh.pop %v3115
  %v3150 = vpack.c.bf16 %v3119, %v3118
  %v3151 = vpack.c.bf16 %v3121, %v3120
  %v3152 = vpack.c.bf16 %v3123, %v3122
  %v3153 = vpack.c.bf16 %v3125, %v3124
  %v3154 = vpack.c.bf16 %v3127, %v3126
  %v3155 = vpack.c.bf16 %v3129, %v3128
  %v3156 = vpack.c.bf16 %v3131, %v3130
  %v3157 = vpack.c.bf16 %v3133, %v3132
  %v3158 = vpack.c.bf16 %v3135, %v3134
  %v3159 = vpack.c.bf16 %v3137, %v3136
  %v3160 = vpack.c.bf16 %v3139, %v3138
  %v3161 = vpack.c.bf16 %v3141, %v3140
  %v3162 = vpack.c.bf16 %v3143, %v3142
  %v3163 = vpack.c.bf16 %v3145, %v3144
  %v3164 = vpack.c.bf16 %v3147, %v3146
  %v3165 = vpack.c.bf16 %v3149, %v3148
  %v3182 = vunpack.c.l.b16 %v3150
  %v3183 = vunpack.c.h.b16 %v3150
  %v3184 = vunpack.c.l.b16 %v3151
  %v3185 = vunpack.c.h.b16 %v3151
  %v3186 = vunpack.c.l.b16 %v3152
  %v3187 = vunpack.c.h.b16 %v3152
  %v3188 = vunpack.c.l.b16 %v3153
  %v3189 = vunpack.c.h.b16 %v3153
  %v3190 = vunpack.c.l.b16 %v3154
  %v3191 = vunpack.c.h.b16 %v3154
  %v3192 = vunpack.c.l.b16 %v3155
  %v3193 = vunpack.c.h.b16 %v3155
  %v3194 = vunpack.c.l.b16 %v3156
  %v3195 = vunpack.c.h.b16 %v3156
  %v3196 = vunpack.c.l.b16 %v3157
  %v3197 = vunpack.c.h.b16 %v3157
  %v3198 = vunpack.c.l.b16 %v3158
  %v3199 = vunpack.c.h.b16 %v3158
  %v3200 = vunpack.c.l.b16 %v3159
  %v3201 = vunpack.c.h.b16 %v3159
  %v3202 = vunpack.c.l.b16 %v3160
  %v3203 = vunpack.c.h.b16 %v3160
  %v3204 = vunpack.c.l.b16 %v3161
  %v3205 = vunpack.c.h.b16 %v3161
  %v3206 = vunpack.c.l.b16 %v3162
  %v3207 = vunpack.c.h.b16 %v3162
  %v3208 = vunpack.c.l.b16 %v3163
  %v3209 = vunpack.c.h.b16 %v3163
  %v3210 = vunpack.c.l.b16 %v3164
  %v3211 = vunpack.c.h.b16 %v3164
  %v3212 = vunpack.c.l.b16 %v3165
  %v3213 = vunpack.c.h.b16 %v3165
  %v3214 = vpack.c.b16 %v3182, %v3182
  %v3215 = vpack.c.b16 %v3183, %v3183
  %v3216 = vpack.c.b16 %v3184, %v3184
  %v3217 = vpack.c.b16 %v3185, %v3185
  %v3218 = vpack.c.b16 %v3186, %v3186
  %v3219 = vpack.c.b16 %v3187, %v3187
  %v3220 = vpack.c.b16 %v3188, %v3188
  %v3221 = vpack.c.b16 %v3189, %v3189
  %v3222 = vpack.c.b16 %v3190, %v3190
  %v3223 = vpack.c.b16 %v3191, %v3191
  %v3224 = vpack.c.b16 %v3192, %v3192
  %v3225 = vpack.c.b16 %v3193, %v3193
  %v3226 = vpack.c.b16 %v3194, %v3194
  %v3227 = vpack.c.b16 %v3195, %v3195
  %v3228 = vpack.c.b16 %v3196, %v3196
  %v3229 = vpack.c.b16 %v3197, %v3197
  %v3230 = vpack.c.b16 %v3198, %v3198
  %v3231 = vpack.c.b16 %v3199, %v3199
  %v3232 = vpack.c.b16 %v3200, %v3200
  %v3233 = vpack.c.b16 %v3201, %v3201
  %v3234 = vpack.c.b16 %v3202, %v3202
  %v3235 = vpack.c.b16 %v3203, %v3203
  %v3236 = vpack.c.b16 %v3204, %v3204
  %v3237 = vpack.c.b16 %v3205, %v3205
  %v3238 = vpack.c.b16 %v3206, %v3206
  %v3239 = vpack.c.b16 %v3207, %v3207
  %v3240 = vpack.c.b16 %v3208, %v3208
  %v3241 = vpack.c.b16 %v3209, %v3209
  %v3242 = vpack.c.b16 %v3210, %v3210
  %v3243 = vpack.c.b16 %v3211, %v3211
  %v3244 = vpack.c.b16 %v3212, %v3212
  %v3245 = vpack.c.b16 %v3213, %v3213
  %3278 = vst [vmem:[%s7] sm:$0xf] %v3214
  %3279 = vst [vmem:[%s7 + $0x4] sm:$0xf] %v3215
  %3280 = vst [vmem:[%s7 + $0x8] sm:$0xf] %v3216
  %3281 = vst [vmem:[%s7 + $0xc] sm:$0xf] %v3217
  %3282 = vst [vmem:[%s7 + $0x10] sm:$0xf] %v3218
  %3283 = vst [vmem:[%s7 + $0x14] sm:$0xf] %v3219
  %3284 = vst [vmem:[%s7 + $0x18] sm:$0xf] %v3220
  %3285 = vst [vmem:[%s7 + $0x1c] sm:$0xf] %v3221
  %3286 = vst [vmem:[%s7 + $0x20] sm:$0xf] %v3222
  %3287 = vst [vmem:[%s7 + $0x24] sm:$0xf] %v3223
  %3288 = vst [vmem:[%s7 + $0x28] sm:$0xf] %v3224
  %3289 = vst [vmem:[%s7 + $0x2c] sm:$0xf] %v3225
  %3290 = vst [vmem:[%s7 + $0x30] sm:$0xf] %v3226
  %3291 = vst [vmem:[%s7 + $0x34] sm:$0xf] %v3227
  %3292 = vst [vmem:[%s7 + $0x38] sm:$0xf] %v3228
  %3293 = vst [vmem:[%s7 + $0x3c] sm:$0xf] %v3229
  %3294 = vst [vmem:[%s7 + $0x40] sm:$0xf] %v3230
  %3295 = vst [vmem:[%s7 + $0x44] sm:$0xf] %v3231
  %3296 = vst [vmem:[%s7 + $0x48] sm:$0xf] %v3232
  %3297 = vst [vmem:[%s7 + $0x4c] sm:$0xf] %v3233
  %3298 = vst [vmem:[%s7 + $0x50] sm:$0xf] %v3234
  %3299 = vst [vmem:[%s7 + $0x54] sm:$0xf] %v3235
  %3300 = vst [vmem:[%s7 + $0x58] sm:$0xf] %v3236
  %3301 = vst [vmem:[%s7 + $0x5c] sm:$0xf] %v3237
  %3302 = vst [vmem:[%s7 + $0x60] sm:$0xf] %v3238
  %3303 = vst [vmem:[%s7 + $0x64] sm:$0xf] %v3239
  %3304 = vst [vmem:[%s7 + $0x68] sm:$0xf] %v3240
  %3305 = vst [vmem:[%s7 + $0x6c] sm:$0xf] %v3241
  %3306 = vst [vmem:[%s7 + $0x70] sm:$0xf] %v3242
  %3307 = vst [vmem:[%s7 + $0x74] sm:$0xf] %v3243
  %3308 = vst [vmem:[%s7 + $0x78] sm:$0xf] %v3244
  %3309 = vst [vmem:[%s7 + $0x7c] sm:$0xf] %v3245
  // Predicated region
  $region30: #{actor_forward.1} parent=0 // pred_check
    _
  $region31: #{actor_forward.1} parent=0 // pred_check_branch
    %3311 = sbr.rel (0) target = $region33
  $region32: #{actor_forward.1} parent=0 // pred_region
    _
  $region33: #{actor_forward.1} parent=0 // pred_fallthru
    _
  // Predicated region
  $region34: #{actor_forward.1} parent=0 // pred_check
    _
  $region35: #{actor_forward.1} parent=0 // pred_check_branch
    %3313 = sbr.rel (0) target = $region37
  $region36: #{actor_forward.1} parent=0 // pred_region
    _
  $region37: #{actor_forward.1} parent=0 // pred_fallthru
    _

</llo_original>
